<compile_context>
chip_gen: v5e
topology: v5e:2x2
jax: 0.10.0
libtpu: 0.0.40
codegen_flags: <defaults>
</compile_context>

<pallas_src>
import math
import functools

import jax
import jax.numpy as jnp
from jax.experimental import pallas as pl
from jax.experimental.pallas import tpu as pltpu

# MXU input dtype (f32 accumulation everywhere).  Set to jnp.float32 for bit-exact matmuls.
MXU_DTYPE = jnp.bfloat16

_SQRT_2_OVER_PI = math.sqrt(2.0 / math.pi)


# ----------------------------- small math helpers ------------------------------------

def _mxu_dot(a, b):
    return jnp.dot(a.astype(MXU_DTYPE), b.astype(MXU_DTYPE),
                   preferred_element_type=jnp.float32)


def _mxu_einsum(eq, a, b):
    return jnp.einsum(eq, a.astype(MXU_DTYPE), b.astype(MXU_DTYPE),
                      preferred_element_type=jnp.float32)


def _gelu_tanh(x):
    # tanh-approx GELU (EUP tanh).  PyTorch activation='gelu' is the exact erf form;
    # the approximation differs by <3e-3 absolute, well inside the 5e-2 check below.
    return 0.5 * x * (1.0 + jnp.tanh(_SQRT_2_OVER_PI * (x + 0.044715 * x * x * x)))


def _layernorm(x, gamma, beta, eps=1e-5):
    mu = jnp.mean(x, axis=-1, keepdims=True)
    var = jnp.mean((x - mu) ** 2, axis=-1, keepdims=True)
    return (x - mu) * jax.lax.rsqrt(var + eps) * gamma + beta


# ----------------------------- shared transformer math --------------------------------
# Used verbatim by BOTH the Pallas kernel body (on loaded ref values) and the pure-JAX
# "mirror" reference, so the Pallas plumbing can be checked op-for-op.

def _embed_and_posenc(src, emb, pe, d_model):
    """Token-id -> embedded+pos-encoded rows.

    src: (nb, L) int32, emb: (Vpad8, D) f32, pe: (L, D) f32 -> (nb*L, D) f32.
    The gather is an exact-in-f32 one-hot matmul (in-kernel dynamic gather has no clean
    Pallas lowering; a 64x56 @ 56x32 matmul is negligible).
    """
    nb, L = src.shape
    V = emb.shape[0]
    iota = jax.lax.broadcasted_iota(jnp.int32, (nb, L, V), 2)
    one_hot = (src[:, :, None] == iota).astype(jnp.float32).reshape(nb * L, V)
    x = jnp.dot(one_hot, emb, preferred_element_type=jnp.float32) * math.sqrt(d_model)
    x = x.reshape(nb, L, d_model) + pe[None, :, :]        # pe broadcast over axis 0
    return x.reshape(nb * L, d_model)


def _encoder_stack(x_flat, N, L, mask, wqkv_all, wo_all, w1_all, w2_all, bias_all,
                   dec_w, dec_b, nhead, *, in_pallas):
    """x_flat: (N*L, D) f32 -> logits (N*L, Vpad) f32.

    wqkv_all / wo_all / w1_all / w2_all / bias_all may be Pallas Refs (kernel) or arrays
    (mirror); they are indexed per layer so Mosaic can bound live ranges.
    """
    NL, D = x_flat.shape
    nlayers = wqkv_all.shape[0]
    d_hid = w1_all.shape[2]
    hd = D // nhead

    # hoisted additive-mask broadcast (JAX doesn't CSE broadcast_in_dim per use)
    mask_b = jnp.broadcast_to(mask[None, :, :], (N * nhead, L, L))

    xf = x_flat
    for l in range(nlayers):                   # static unroll: nlayers=2, body is small
        wqkv = wqkv_all[l]                     # (D, 3D)  (1/sqrt(hd) folded into Q cols)
        wo = wo_all[l]                         # (D, D)
        w1 = w1_all[l]                         # (D, d_hid)
        w2 = w2_all[l]                         # (d_hid, D)
        b = bias_all[l]                        # (8, W) packed slab
        bqkv = b[0:1, :3 * D]
        b1 = b[1:2, :d_hid]
        bo = b[2:3, :D]
        b2 = b[3:4, :D]
        g1 = b[4:5, :D]
        be1 = b[5:6, :D]
        g2 = b[6:7, :D]
        be2 = b[7:8, :D]

        # fused QKV projection (scale pre-folded at pack time)
        qkv = _mxu_dot(xf, wqkv) + bqkv        # (N*L, 3D)

        # head-batched attention: stack heads onto the batch axis (outer-dim concat) so
        # scores / softmax / context are ONE einsum each instead of nhead tiny ones.
        def split_heads(t):                    # (N*L, D) -> (N*nhead, L, hd)
            return jnp.concatenate(
                [t[:, h * hd:(h + 1) * hd].reshape(N, L, hd) for h in range(nhead)],
                axis=0)

        qh = split_heads(qkv[:, 0:D])
        kh = split_heads(qkv[:, D:2 * D])
        vh = split_heads(qkv[:, 2 * D:3 * D])

        s = _mxu_einsum('bqd,bkd->bqk', qh, kh) + mask_b     # (N*nhead, L, L)
        # no row-max subtraction: scores are O(1) and exp(-1e30 mask) flushes to 0.0 in f32
        p = jnp.exp(s)
        denom = jnp.sum(p, axis=-1, keepdims=True)
        if in_pallas:
            p = p * pl.reciprocal(denom, approx=True)        # EUP slot, ~free
        else:
            p = p / denom
        ctx = _mxu_einsum('bqk,bkd->bqd', p, vh)             # (N*nhead, L, hd)

        # output projection applied per head (avoids an unaligned lane-dim concat)
        attn = bo
        for h in range(nhead):
            attn = attn + _mxu_dot(ctx[h * N:(h + 1) * N].reshape(NL, hd),
                                   wo[h * hd:(h + 1) * hd, :])

        # post-norm residual blocks (PyTorch default norm_first=False)
        x1 = _layernorm(xf + attn, g1, be1)
        z = _gelu_tanh(_mxu_dot(x1, w1) + b1)
        ff = _mxu_dot(z, w2) + b2
        xf = _layernorm(x1 + ff, g2, be2)

    # fused decoder Linear -> lane-dense padded vocab
    return _mxu_dot(xf, dec_w) + dec_b                       # (N*L, Vpad)


# ----------------------------- Pallas kernel -------------------------------------------

def fused_transformer_kernel(nhead, src_ref, mask_ref, emb_ref, pe_ref,
                             wqkv_ref, wo_ref, w1_ref, w2_ref, bias_ref,
                             dec_w_ref, dec_b_ref, out_ref):
    nb, L, vp = out_ref.shape
    d_model = emb_ref.shape[1]

    # rows of src handled by this grid step / TensorCore
    i0 = pl.program_id(0)
    src = src_ref[pl.ds(i0 * nb, nb), :]                     # (nb, L) int32

    x_flat = _embed_and_posenc(src, emb_ref[...], pe_ref[0:L, :], d_model)

    logits = _encoder_stack(
        x_flat, nb, L, mask_ref[...],
        wqkv_ref, wo_ref, w1_ref, w2_ref, bias_ref,          # stacked refs, indexed per layer
        dec_w_ref[...], dec_b_ref[...], nhead, in_pallas=True)

    out_ref[...] = logits.reshape(nb, L, vp)                 # lane-dense unmasked store


# ----------------------------- wrapper --------------------------------------------------

def _num_tensorcores():
    """2 TensorCores per chip only on v7x; v5e/v6e are single-TC."""
    try:
        kind = jax.devices()[0].device_kind.lower()
    except Exception:
        return 1
    return 2 if ("v7" in kind or "7x" in kind) else 1


def transformer_forward(params, src, src_mask, d_model, nhead, ntoken):
    N, L = src.shape
    # batch_first=True makes axis 1 the attention sequence axis -> mask must be (L, L).
    assert src_mask.shape == (L, L), (
        f"additive attention mask must be {(L, L)}, got {src_mask.shape}")

    V8, D = params["emb"].shape
    assert D == d_model
    max_len = params["pe"].shape[0]
    nlayers = params["wqkv"].shape[0]
    d_hid = params["w1"].shape[2]
    bw = params["bias"].shape[2]
    vp = params["dec_w"].shape[1]               # vocab padded to 128 lanes

    # Generation-aware batch split: single grid step on single-TC chips (v5e/v6e);
    # 2-way CORE_PARALLEL split only where there are 2 TensorCores (v7x).
    ncores = _num_tensorcores()
    NB = ncores if (ncores > 1 and N % ncores == 0) else 1
    nb = N // NB
    dim_sem = ((getattr(pltpu, "CORE_PARALLEL", "parallel"),) if NB > 1
               else ("arbitrary",))

    out = pl.pallas_call(
        functools.partial(fused_transformer_kernel, nhead),
        out_shape=jax.ShapeDtypeStruct((N, L, vp), jnp.float32),
        grid=(NB,),
        in_specs=[
            pl.BlockSpec((N, L), lambda i: (0, 0)),                   # src token ids (int32)
            pl.BlockSpec((L, L), lambda i: (0, 0)),                   # additive attention mask
            pl.BlockSpec((V8, D), lambda i: (0, 0)),                  # embedding table (padded)
            pl.BlockSpec((max_len, D), lambda i: (0, 0)),             # positional-encoding table
            pl.BlockSpec((nlayers, D, 3 * D), lambda i: (0, 0, 0)),   # fused QKV weights
            pl.BlockSpec((nlayers, D, D), lambda i: (0, 0, 0)),       # output projection
            pl.BlockSpec((nlayers, D, d_hid), lambda i: (0, 0, 0)),   # FFN w1
            pl.BlockSpec((nlayers, d_hid, D), lambda i: (0, 0, 0)),   # FFN w2
            pl.BlockSpec((nlayers, 8, bw), lambda i: (0, 0, 0)),      # packed bias/LN slab
            pl.BlockSpec((D, vp), lambda i: (0, 0)),                  # decoder weight (padded)
            pl.BlockSpec((1, vp), lambda i: (0, 0)),                  # decoder bias (padded)
        ],
        out_specs=pl.BlockSpec((nb, L, vp), lambda i: (i, 0, 0)),     # direct (N, L, vp)
        compiler_params=pltpu.CompilerParams(dimension_semantics=dim_sem),
    )(src, src_mask, params["emb"], params["pe"], params["wqkv"], params["wo"],
      params["w1"], params["w2"], params["bias"], params["dec_w"], params["dec_b"])

    return out[:, :, :ntoken]


# ----------------------------- parameters ----------------------------------------------

def make_params(key, ntoken, d_model, nhead, d_hid, nlayers, max_len):
    """Raw per-layer parameters (PyTorch-style, weights pre-transposed to (in, out))."""
    keys = jax.random.split(key, 2 + nlayers)
    f32 = jnp.float32

    emb = jax.random.uniform(keys[0], (ntoken, d_model), f32, -0.1, 0.1)

    # PositionalEncoding buffer: pe.transpose(1, 0) -> (1, max_len, d_model)
    position = jnp.arange(max_len, dtype=f32)[:, None]
    div_term = jnp.exp(jnp.arange(0, d_model, 2, dtype=f32) * (-math.log(10000.0) / d_model))
    pe = jnp.zeros((max_len, d_model), f32)
    pe = pe.at[:, 0::2].set(jnp.sin(position * div_term))
    pe = pe.at[:, 1::2].set(jnp.cos(position * div_term))
    pe = pe[None, :, :]

    layers = []
    for l in range(nlayers):
        lk = jax.random.split(keys[2 + l], 16)
        s = 0.05
        layers.append(dict(
            wq=s * jax.random.normal(lk[0], (d_model, d_model), f32),
            wk=s * jax.random.normal(lk[1], (d_model, d_model), f32),
            wv=s * jax.random.normal(lk[2], (d_model, d_model), f32),
            bq=0.02 * jax.random.normal(lk[3], (d_model,), f32),
            bk=0.02 * jax.random.normal(lk[4], (d_model,), f32),
            bv=0.02 * jax.random.normal(lk[5], (d_model,), f32),
            wo=s * jax.random.normal(lk[6], (d_model, d_model), f32),
            bo=0.02 * jax.random.normal(lk[7], (d_model,), f32),
            g1=1.0 + 0.02 * jax.random.normal(lk[8], (d_model,), f32),
            be1=0.02 * jax.random.normal(lk[9], (d_model,), f32),
            w1=s * jax.random.normal(lk[10], (d_model, d_hid), f32),
            b1=0.02 * jax.random.normal(lk[11], (d_hid,), f32),
            w2=s * jax.random.normal(lk[12], (d_hid, d_model), f32),
            b2=0.02 * jax.random.normal(lk[13], (d_model,), f32),
            g2=1.0 + 0.02 * jax.random.normal(lk[14], (d_model,), f32),
            be2=0.02 * jax.random.normal(lk[15], (d_model,), f32),
        ))

    dec_w = jax.random.uniform(keys[1], (d_model, ntoken), f32, -0.1, 0.1)  # pre-transposed
    dec_b = jnp.zeros((ntoken,), f32)                                       # init_weights zeros

    return dict(emb=emb, pe=pe, layers=layers, dec_w=dec_w, dec_b=dec_b)


def pack_params(raw, ntoken, d_model, nhead, d_hid):
    """Fuse / stack / pad the raw params into the kernel-friendly layout."""
    nlayers = len(raw["layers"])
    hd = d_model // nhead
    inv_sqrt_hd = 1.0 / math.sqrt(hd)
    bw = max(3 * d_model, d_hid)

    def pad_vec(v):
        v = v.reshape(-1)
        return jnp.pad(v, (0, bw - v.shape[0]))

    wqkv, wo, w1, w2, bias = [], [], [], [], []
    for lp in raw["layers"]:
        # fold the 1/sqrt(hd) attention scale into the Q projection (parameter transform)
        wq = lp["wq"] * inv_sqrt_hd
        bq = lp["bq"] * inv_sqrt_hd
        wqkv.append(jnp.concatenate([wq, lp["wk"], lp["wv"]], axis=1))      # (D, 3D)
        wo.append(lp["wo"])
        w1.append(lp["w1"])
        w2.append(lp["w2"])
        bqkv = jnp.concatenate([bq, lp["bk"], lp["bv"]])
        bias.append(jnp.stack([pad_vec(bqkv), pad_vec(lp["b1"]), pad_vec(lp["bo"]),
                               pad_vec(lp["b2"]), pad_vec(lp["g1"]), pad_vec(lp["be1"]),
                               pad_vec(lp["g2"]), pad_vec(lp["be2"])]))      # (8, bw)

    V8 = ((ntoken + 7) // 8) * 8                # sublane-pad embedding rows (zeros unused)
    emb = jnp.pad(raw["emb"], ((0, V8 - ntoken), (0, 0)))
    pe2d = raw["pe"][0]                         # (max_len, d_model)

    vp = ((ntoken + 127) // 128) * 128          # lane-dense padded vocab
    dec_w = jnp.pad(raw["dec_w"], ((0, 0), (0, vp - ntoken)))
    dec_b = jnp.pad(raw["dec_b"].reshape(1, -1), ((0, 0), (0, vp - ntoken)))

    return dict(emb=emb, pe=pe2d,
                wqkv=jnp.stack(wqkv), wo=jnp.stack(wo),
                w1=jnp.stack(w1), w2=jnp.stack(w2), bias=jnp.stack(bias),
                dec_w=dec_w, dec_b=dec_b)


# ----------------------------- references ----------------------------------------------

def ref_forward_mirror(params, src, src_mask, d_model, nhead, ntoken):
    """Pure-JAX op-for-op mirror of the kernel math (same bf16 casts, same GELU/softmax)."""
    N, L = src.shape
    x_flat = _embed_and_posenc(src, params["emb"], params["pe"][:L, :], d_model)
    vp = params["dec_w"].shape[1]
    logits = _encoder_stack(x_flat, N, L, src_mask,
                            params["wqkv"], params["wo"], params["w1"], params["w2"],
                            params["bias"], params["dec_w"], params["dec_b"],
                            nhead, in_pallas=False)
    return logits.reshape(N, L, vp)[:, :, :ntoken]


def ref_forward_exact(raw, src, src_mask, d_model, nhead):
    """PyTorch-faithful full-f32 reference (exact erf GELU, standard softmax)."""
    x = raw["emb"][src] * math.sqrt(d_model)
    x = x + raw["pe"][:, :src.shape[1], :]
    for lp in raw["layers"]:
        N, L, D = x.shape
        hd = D // nhead
        q = x @ lp["wq"] + lp["bq"]
        k = x @ lp["wk"] + lp["bk"]
        v = x @ lp["wv"] + lp["bv"]
        qh = q.reshape(N, L, nhead, hd).transpose(0, 2, 1, 3)
        kh = k.reshape(N, L, nhead, hd).transpose(0, 2, 1, 3)
        vh = v.reshape(N, L, nhead, hd).transpose(0, 2, 1, 3)
        s = (qh / math.sqrt(hd)) @ kh.transpose(0, 1, 3, 2) + src_mask
        p = jax.nn.softmax(s, axis=-1)
        o = (p @ vh).transpose(0, 2, 1, 3).reshape(N, L, D)
        attn = o @ lp["wo"] + lp["bo"]
        x1 = _layernorm(x + attn, lp["g1"], lp["be1"])
        h = x1 @ lp["w1"] + lp["b1"]
        z = 0.5 * h * (1.0 + jax.scipy.special.erf(h / math.sqrt(2.0)))
        ff = z @ lp["w2"] + lp["b2"]
        x = _layernorm(x1 + ff, lp["g2"], lp["be2"])
    return x @ raw["dec_w"] + raw["dec_b"]


# ----------------------------- main ----------------------------------------------------

if __name__ == "__main__":
    ntoken, d_model, nhead, d_hid, nlayers, max_len = 50, 32, 2, 64, 2, 10
    seq_len, batch = 8, 8   # seq_len == batch so the (seq_len, seq_len) mask shape is valid

    key = jax.random.PRNGKey(0)
    pkey, skey = jax.random.split(key)

    raw = make_params(pkey, ntoken, d_model, nhead, d_hid, nlayers, max_len)
    packed = pack_params(raw, ntoken, d_model, nhead, d_hid)

    src = jax.random.randint(skey, (seq_len, batch), 0, ntoken, dtype=jnp.int32)

    # causal additive float mask (PyTorch uses -inf; large finite negative is equivalent)
    idx = jnp.arange(batch)
    src_mask = jnp.where(idx[None, :] <= idx[:, None], 0.0, -1e30).astype(jnp.float32)

    # TODO(synk): nn.Dropout layers are identity (eval mode); exact erf GELU approximated by tanh.
    fwd = jax.jit(lambda p, s, m: transformer_forward(p, s, m, d_model, nhead, ntoken))
    out = jax.block_until_ready(fwd(packed, src, src_mask))

    assert out.shape == (seq_len, batch, ntoken), out.shape
    assert bool(jnp.all(jnp.isfinite(out)))

    # 1) check vs the op-for-op JAX mirror (validates the Pallas plumbing; the only
    #    intentional divergence is pl.reciprocal(approx=True) in the kernel softmax)
    mirror = jax.block_until_ready(
        ref_forward_mirror(packed, src, src_mask, d_model, nhead, ntoken))
    err_mirror = float(jnp.max(jnp.abs(out - mirror)))
    assert err_mirror < 1e-2, f"kernel vs mirror mismatch: {err_mirror}"

    # 2) loose check vs the full-f32 PyTorch-faithful reference (bf16 MXU + tanh-GELU drift)
    exact = jax.block_until_ready(ref_forward_exact(raw, src, src_mask, d_model, nhead))
    err_exact = float(jnp.max(jnp.abs(out - exact)))
    assert err_exact < 5e-2, f"kernel vs f32 reference mismatch: {err_exact}"

    print("KERNEL_OK")
</pallas_src>

<mosaic_0001>
module attributes {stable_mosaic.version = 11 : i64} {
  func.func @fused_transformer_kernel(%arg0: i32, %arg1: memref<8x8xi32, #tpu.memory_space<vmem>>, %arg2: memref<8x8xf32, #tpu.memory_space<vmem>>, %arg3: memref<56x32xf32, #tpu.memory_space<vmem>>, %arg4: memref<10x32xf32, #tpu.memory_space<vmem>>, %arg5: memref<2x32x96xf32, #tpu.memory_space<vmem>>, %arg6: memref<2x32x32xf32, #tpu.memory_space<vmem>>, %arg7: memref<2x32x64xf32, #tpu.memory_space<vmem>>, %arg8: memref<2x64x32xf32, #tpu.memory_space<vmem>>, %arg9: memref<2x8x96xf32, #tpu.memory_space<vmem>>, %arg10: memref<32x128xf32, #tpu.memory_space<vmem>>, %arg11: memref<1x128xf32, #tpu.memory_space<vmem>>, %arg12: memref<8x8x128xf32, #tpu.memory_space<vmem>>) attributes {dimension_semantics = [#tpu.dimension_semantics<arbitrary>], iteration_bounds = array<i64: 1>, scalar_prefetch = 0 : i64, scratch_operands = 0 : i64, tpu.core_type = #tpu.core_type<tc>, window_params = [{pipeline_mode = #tpu.pipeline_mode<synchronous>, transform_indices = @transform_0, window_bounds = array<i64: 8, 8>}, {pipeline_mode = #tpu.pipeline_mode<synchronous>, transform_indices = @transform_1, window_bounds = array<i64: 8, 8>}, {pipeline_mode = #tpu.pipeline_mode<synchronous>, transform_indices = @transform_2, window_bounds = array<i64: 56, 32>}, {pipeline_mode = #tpu.pipeline_mode<synchronous>, transform_indices = @transform_3, window_bounds = array<i64: 10, 32>}, {pipeline_mode = #tpu.pipeline_mode<synchronous>, transform_indices = @transform_4, window_bounds = array<i64: 2, 32, 96>}, {pipeline_mode = #tpu.pipeline_mode<synchronous>, transform_indices = @transform_5, window_bounds = array<i64: 2, 32, 32>}, {pipeline_mode = #tpu.pipeline_mode<synchronous>, transform_indices = @transform_6, window_bounds = array<i64: 2, 32, 64>}, {pipeline_mode = #tpu.pipeline_mode<synchronous>, transform_indices = @transform_7, window_bounds = array<i64: 2, 64, 32>}, {pipeline_mode = #tpu.pipeline_mode<synchronous>, transform_indices = @transform_8, window_bounds = array<i64: 2, 8, 96>}, {pipeline_mode = #tpu.pipeline_mode<synchronous>, transform_indices = @transform_9, window_bounds = array<i64: 32, 128>}, {pipeline_mode = #tpu.pipeline_mode<synchronous>, transform_indices = @transform_10, window_bounds = array<i64: 1, 128>}, {transform_indices = @transform_11, window_bounds = array<i64: 8, 8, 128>}]} {
    %c8_i32 = arith.constant 8 : i32
    %0 = arith.muli %arg0, %c8_i32 : i32
    %1 = arith.index_cast %0 : i32 to index
    %c0 = arith.constant 0 : index
    %2 = vector.load %arg1[%1, %c0] : memref<8x8xi32, #tpu.memory_space<vmem>>, vector<8x8xi32>
    %c0_0 = arith.constant 0 : index
    %c0_1 = arith.constant 0 : index
    %3 = vector.load %arg3[%c0_0, %c0_1] : memref<56x32xf32, #tpu.memory_space<vmem>>, vector<56x32xf32>
    %c0_2 = arith.constant 0 : index
    %c0_3 = arith.constant 0 : index
    %4 = vector.load %arg4[%c0_2, %c0_3] : memref<10x32xf32, #tpu.memory_space<vmem>>, vector<8x32xf32>
    %5 = tpu.iota {dimensions = array<i32: 2>} : vector<8x8x56xi32>
    %6 = vector.shape_cast %2 : vector<8x8xi32> to vector<8x8x1xi32>
    %7 = vector.broadcast %6 : vector<8x8x1xi32> to vector<8x8x56xi32>
    %8 = arith.cmpi eq, %7, %5 : vector<8x8x56xi32>
    %9 = arith.extui %8 : vector<8x8x56xi1> to vector<8x8x56xi32>
    %10 = arith.sitofp %9 : vector<8x8x56xi32> to vector<8x8x56xf32>
    %11 = vector.shape_cast %10 : vector<8x8x56xf32> to vector<64x56xf32>
    %cst = arith.constant dense<0.000000e+00> : vector<64x32xf32>
    %12 = tpu.matmul %11, %3, %cst {dimension_numbers = #tpu.dot_dimension_numbers<[1], [0], [0], [1], [0, 0, 1, 1], [], []>} : vector<64x56xf32>, vector<56x32xf32>, vector<64x32xf32> -> vector<64x32xf32>
    %cst_4 = arith.constant 5.65685415 : f32
    %13 = vector.broadcast %cst_4 : f32 to vector<64x32xf32>
    %14 = arith.mulf %12, %13 : vector<64x32xf32>
    %15 = vector.shape_cast %14 : vector<64x32xf32> to vector<8x8x32xf32>
    %16 = vector.shape_cast %4 : vector<8x32xf32> to vector<1x8x32xf32>
    %17 = vector.broadcast %16 : vector<1x8x32xf32> to vector<8x8x32xf32>
    %18 = arith.addf %15, %17 : vector<8x8x32xf32>
    %19 = vector.shape_cast %18 : vector<8x8x32xf32> to vector<64x32xf32>
    %c0_5 = arith.constant 0 : index
    %c0_6 = arith.constant 0 : index
    %20 = vector.load %arg2[%c0_5, %c0_6] : memref<8x8xf32, #tpu.memory_space<vmem>>, vector<8x8xf32>
    %c0_7 = arith.constant 0 : index
    %c0_8 = arith.constant 0 : index
    %21 = vector.load %arg10[%c0_7, %c0_8] : memref<32x128xf32, #tpu.memory_space<vmem>>, vector<32x128xf32>
    %c0_9 = arith.constant 0 : index
    %c0_10 = arith.constant 0 : index
    %22 = vector.load %arg11[%c0_9, %c0_10] : memref<1x128xf32, #tpu.memory_space<vmem>>, vector<1x128xf32>
    %23 = vector.shape_cast %20 : vector<8x8xf32> to vector<1x8x8xf32>
    %24 = vector.shape_cast %23 : vector<1x8x8xf32> to vector<1x8x8xf32>
    %25 = vector.broadcast %24 : vector<1x8x8xf32> to vector<16x8x8xf32>
    %c0_11 = arith.constant 0 : index
    %c0_12 = arith.constant 0 : index
    %c0_13 = arith.constant 0 : index
    %26 = vector.load %arg5[%c0_11, %c0_12, %c0_13] : memref<2x32x96xf32, #tpu.memory_space<vmem>>, vector<1x32x96xf32>
    %27 = vector.shape_cast %26 : vector<1x32x96xf32> to vector<32x96xf32>
    %c0_14 = arith.constant 0 : index
    %c0_15 = arith.constant 0 : index
    %c0_16 = arith.constant 0 : index
    %28 = vector.load %arg6[%c0_14, %c0_15, %c0_16] : memref<2x32x32xf32, #tpu.memory_space<vmem>>, vector<1x32x32xf32>
    %29 = vector.shape_cast %28 : vector<1x32x32xf32> to vector<32x32xf32>
    %c0_17 = arith.constant 0 : index
    %c0_18 = arith.constant 0 : index
    %c0_19 = arith.constant 0 : index
    %30 = vector.load %arg7[%c0_17, %c0_18, %c0_19] : memref<2x32x64xf32, #tpu.memory_space<vmem>>, vector<1x32x64xf32>
    %31 = vector.shape_cast %30 : vector<1x32x64xf32> to vector<32x64xf32>
    %c0_20 = arith.constant 0 : index
    %c0_21 = arith.constant 0 : index
    %c0_22 = arith.constant 0 : index
    %32 = vector.load %arg8[%c0_20, %c0_21, %c0_22] : memref<2x64x32xf32, #tpu.memory_space<vmem>>, vector<1x64x32xf32>
    %33 = vector.shape_cast %32 : vector<1x64x32xf32> to vector<64x32xf32>
    %c0_23 = arith.constant 0 : index
    %c0_24 = arith.constant 0 : index
    %c0_25 = arith.constant 0 : index
    %34 = vector.load %arg9[%c0_23, %c0_24, %c0_25] : memref<2x8x96xf32, #tpu.memory_space<vmem>>, vector<1x8x96xf32>
    %35 = vector.shape_cast %34 : vector<1x8x96xf32> to vector<8x96xf32>
    %36 = vector.extract_strided_slice %35 {offsets = [0, 0], sizes = [1, 96], strides = [1, 1]} : vector<8x96xf32> to vector<1x96xf32>
    %37 = vector.extract_strided_slice %35 {offsets = [1, 0], sizes = [1, 64], strides = [1, 1]} : vector<8x96xf32> to vector<1x64xf32>
    %38 = vector.extract_strided_slice %35 {offsets = [2, 0], sizes = [1, 32], strides = [1, 1]} : vector<8x96xf32> to vector<1x32xf32>
    %39 = vector.extract_strided_slice %35 {offsets = [3, 0], sizes = [1, 32], strides = [1, 1]} : vector<8x96xf32> to vector<1x32xf32>
    %40 = vector.extract_strided_slice %35 {offsets = [4, 0], sizes = [1, 32], strides = [1, 1]} : vector<8x96xf32> to vector<1x32xf32>
    %41 = vector.extract_strided_slice %35 {offsets = [5, 0], sizes = [1, 32], strides = [1, 1]} : vector<8x96xf32> to vector<1x32xf32>
    %42 = vector.extract_strided_slice %35 {offsets = [6, 0], sizes = [1, 32], strides = [1, 1]} : vector<8x96xf32> to vector<1x32xf32>
    %43 = vector.extract_strided_slice %35 {offsets = [7, 0], sizes = [1, 32], strides = [1, 1]} : vector<8x96xf32> to vector<1x32xf32>
    %44 = arith.truncf %19 : vector<64x32xf32> to vector<64x32xbf16>
    %45 = arith.truncf %27 : vector<32x96xf32> to vector<32x96xbf16>
    %cst_26 = arith.constant dense<0.000000e+00> : vector<64x96xf32>
    %46 = tpu.matmul %44, %45, %cst_26 {dimension_numbers = #tpu.dot_dimension_numbers<[1], [0], [0], [1], [0, 0, 1, 1], [], []>} : vector<64x32xbf16>, vector<32x96xbf16>, vector<64x96xf32> -> vector<64x96xf32>
    %47 = vector.broadcast %36 : vector<1x96xf32> to vector<64x96xf32>
    %48 = arith.addf %46, %47 : vector<64x96xf32>
    %49 = vector.extract_strided_slice %48 {offsets = [0, 0], sizes = [64, 32], strides = [1, 1]} : vector<64x96xf32> to vector<64x32xf32>
    %50 = vector.extract_strided_slice %49 {offsets = [0, 0], sizes = [64, 16], strides = [1, 1]} : vector<64x32xf32> to vector<64x16xf32>
    %51 = vector.shape_cast %50 : vector<64x16xf32> to vector<8x8x16xf32>
    %52 = vector.extract_strided_slice %49 {offsets = [0, 16], sizes = [64, 16], strides = [1, 1]} : vector<64x32xf32> to vector<64x16xf32>
    %53 = vector.shape_cast %52 : vector<64x16xf32> to vector<8x8x16xf32>
    %54 = tpu.concatenate %51, %53 in 0 : vector<8x8x16xf32>, vector<8x8x16xf32> -> vector<16x8x16xf32>
    %55 = vector.extract_strided_slice %48 {offsets = [0, 32], sizes = [64, 32], strides = [1, 1]} : vector<64x96xf32> to vector<64x32xf32>
    %56 = vector.extract_strided_slice %55 {offsets = [0, 0], sizes = [64, 16], strides = [1, 1]} : vector<64x32xf32> to vector<64x16xf32>
    %57 = vector.shape_cast %56 : vector<64x16xf32> to vector<8x8x16xf32>
    %58 = vector.extract_strided_slice %55 {offsets = [0, 16], sizes = [64, 16], strides = [1, 1]} : vector<64x32xf32> to vector<64x16xf32>
    %59 = vector.shape_cast %58 : vector<64x16xf32> to vector<8x8x16xf32>
    %60 = tpu.concatenate %57, %59 in 0 : vector<8x8x16xf32>, vector<8x8x16xf32> -> vector<16x8x16xf32>
    %61 = vector.extract_strided_slice %48 {offsets = [0, 64], sizes = [64, 32], strides = [1, 1]} : vector<64x96xf32> to vector<64x32xf32>
    %62 = vector.extract_strided_slice %61 {offsets = [0, 0], sizes = [64, 16], strides = [1, 1]} : vector<64x32xf32> to vector<64x16xf32>
    %63 = vector.shape_cast %62 : vector<64x16xf32> to vector<8x8x16xf32>
    %64 = vector.extract_strided_slice %61 {offsets = [0, 16], sizes = [64, 16], strides = [1, 1]} : vector<64x32xf32> to vector<64x16xf32>
    %65 = vector.shape_cast %64 : vector<64x16xf32> to vector<8x8x16xf32>
    %66 = tpu.concatenate %63, %65 in 0 : vector<8x8x16xf32>, vector<8x8x16xf32> -> vector<16x8x16xf32>
    %67 = arith.truncf %54 : vector<16x8x16xf32> to vector<16x8x16xbf16>
    %68 = arith.truncf %60 : vector<16x8x16xf32> to vector<16x8x16xbf16>
    "tpu.trace_start"() <{level = 10 : i32, message = "bqd,bkd->bqk"}> : () -> ()
    %cst_27 = arith.constant dense<0.000000e+00> : vector<16x8x8xf32>
    %69 = tpu.matmul %67, %68, %cst_27 {dimension_numbers = #tpu.dot_dimension_numbers<[2], [2], [1], [1], [0, 0, 0, 1, 1, 1], [0], [0]>} : vector<16x8x16xbf16>, vector<16x8x16xbf16>, vector<16x8x8xf32> -> vector<16x8x8xf32>
    "tpu.trace_stop"() : () -> ()
    %70 = arith.addf %69, %25 : vector<16x8x8xf32>
    %71 = math.exp %70 : vector<16x8x8xf32>
    %cst_28 = arith.constant dense<0.000000e+00> : vector<16x8xf32>
    %72 = vector.multi_reduction <add>, %71, %cst_28 [2] : vector<16x8x8xf32> to vector<16x8xf32>
    %73 = vector.shape_cast %72 : vector<16x8xf32> to vector<16x8x1xf32>
    %74 = tpu.reciprocal %73 {approx = true} : vector<16x8x1xf32> -> vector<16x8x1xf32>
    %75 = vector.broadcast %74 : vector<16x8x1xf32> to vector<16x8x8xf32>
    %76 = arith.mulf %71, %75 : vector<16x8x8xf32>
    %77 = arith.truncf %76 : vector<16x8x8xf32> to vector<16x8x8xbf16>
    %78 = arith.truncf %66 : vector<16x8x16xf32> to vector<16x8x16xbf16>
    "tpu.trace_start"() <{level = 10 : i32, message = "bqk,bkd->bqd"}> : () -> ()
    %cst_29 = arith.constant dense<0.000000e+00> : vector<16x8x16xf32>
    %79 = tpu.matmul %77, %78, %cst_29 {dimension_numbers = #tpu.dot_dimension_numbers<[2], [1], [1], [2], [0, 0, 0, 1, 1, 2], [0], [0]>} : vector<16x8x8xbf16>, vector<16x8x16xbf16>, vector<16x8x16xf32> -> vector<16x8x16xf32>
    "tpu.trace_stop"() : () -> ()
    %80 = vector.extract_strided_slice %79 {offsets = [0, 0, 0], sizes = [8, 8, 16], strides = [1, 1, 1]} : vector<16x8x16xf32> to vector<8x8x16xf32>
    %81 = vector.shape_cast %80 : vector<8x8x16xf32> to vector<64x16xf32>
    %82 = vector.extract_strided_slice %29 {offsets = [0, 0], sizes = [16, 32], strides = [1, 1]} : vector<32x32xf32> to vector<16x32xf32>
    %83 = arith.truncf %81 : vector<64x16xf32> to vector<64x16xbf16>
    %84 = arith.truncf %82 : vector<16x32xf32> to vector<16x32xbf16>
    %cst_30 = arith.constant dense<0.000000e+00> : vector<64x32xf32>
    %85 = tpu.matmul %83, %84, %cst_30 {dimension_numbers = #tpu.dot_dimension_numbers<[1], [0], [0], [1], [0, 0, 1, 1], [], []>} : vector<64x16xbf16>, vector<16x32xbf16>, vector<64x32xf32> -> vector<64x32xf32>
    %86 = vector.broadcast %38 : vector<1x32xf32> to vector<64x32xf32>
    %87 = arith.addf %86, %85 : vector<64x32xf32>
    %88 = vector.extract_strided_slice %79 {offsets = [8, 0, 0], sizes = [8, 8, 16], strides = [1, 1, 1]} : vector<16x8x16xf32> to vector<8x8x16xf32>
    %89 = vector.shape_cast %88 : vector<8x8x16xf32> to vector<64x16xf32>
    %90 = vector.extract_strided_slice %29 {offsets = [16, 0], sizes = [16, 32], strides = [1, 1]} : vector<32x32xf32> to vector<16x32xf32>
    %91 = arith.truncf %89 : vector<64x16xf32> to vector<64x16xbf16>
    %92 = arith.truncf %90 : vector<16x32xf32> to vector<16x32xbf16>
    %cst_31 = arith.constant dense<0.000000e+00> : vector<64x32xf32>
    %93 = tpu.matmul %91, %92, %cst_31 {dimension_numbers = #tpu.dot_dimension_numbers<[1], [0], [0], [1], [0, 0, 1, 1], [], []>} : vector<64x16xbf16>, vector<16x32xbf16>, vector<64x32xf32> -> vector<64x32xf32>
    %94 = arith.addf %87, %93 : vector<64x32xf32>
    %95 = arith.addf %19, %94 : vector<64x32xf32>
    %cst_32 = arith.constant dense<0.000000e+00> : vector<64xf32>
    %96 = vector.multi_reduction <add>, %95, %cst_32 [1] : vector<64x32xf32> to vector<64xf32>
    %97 = vector.shape_cast %96 : vector<64xf32> to vector<64x1xf32>
    %cst_33 = arith.constant 3.200000e+01 : f32
    %98 = vector.broadcast %cst_33 : f32 to vector<64x1xf32>
    %99 = arith.divf %97, %98 : vector<64x1xf32>
    %100 = vector.broadcast %99 : vector<64x1xf32> to vector<64x32xf32>
    %101 = arith.subf %95, %100 : vector<64x32xf32>
    %102 = arith.mulf %101, %101 : vector<64x32xf32>
    %cst_34 = arith.constant dense<0.000000e+00> : vector<64xf32>
    %103 = vector.multi_reduction <add>, %102, %cst_34 [1] : vector<64x32xf32> to vector<64xf32>
    %104 = vector.shape_cast %103 : vector<64xf32> to vector<64x1xf32>
    %cst_35 = arith.constant 3.200000e+01 : f32
    %105 = vector.broadcast %cst_35 : f32 to vector<64x1xf32>
    %106 = arith.divf %104, %105 : vector<64x1xf32>
    %107 = vector.broadcast %99 : vector<64x1xf32> to vector<64x32xf32>
    %108 = arith.subf %95, %107 : vector<64x32xf32>
    %cst_36 = arith.constant 9.99999974E-6 : f32
    %109 = vector.broadcast %cst_36 : f32 to vector<64x1xf32>
    %110 = arith.addf %106, %109 : vector<64x1xf32>
    %111 = math.rsqrt %110 : vector<64x1xf32>
    %112 = vector.broadcast %111 : vector<64x1xf32> to vector<64x32xf32>
    %113 = arith.mulf %108, %112 : vector<64x32xf32>
    %114 = vector.broadcast %40 : vector<1x32xf32> to vector<64x32xf32>
    %115 = arith.mulf %113, %114 : vector<64x32xf32>
    %116 = vector.broadcast %41 : vector<1x32xf32> to vector<64x32xf32>
    %117 = arith.addf %115, %116 : vector<64x32xf32>
    %118 = arith.truncf %117 : vector<64x32xf32> to vector<64x32xbf16>
    %119 = arith.truncf %31 : vector<32x64xf32> to vector<32x64xbf16>
    %cst_37 = arith.constant dense<0.000000e+00> : vector<64x64xf32>
    %120 = tpu.matmul %118, %119, %cst_37 {dimension_numbers = #tpu.dot_dimension_numbers<[1], [0], [0], [1], [0, 0, 1, 1], [], []>} : vector<64x32xbf16>, vector<32x64xbf16>, vector<64x64xf32> -> vector<64x64xf32>
    %121 = vector.broadcast %37 : vector<1x64xf32> to vector<64x64xf32>
    %122 = arith.addf %120, %121 : vector<64x64xf32>
    %cst_38 = arith.constant 5.000000e-01 : f32
    %123 = vector.broadcast %cst_38 : f32 to vector<64x64xf32>
    %124 = arith.mulf %123, %122 : vector<64x64xf32>
    %cst_39 = arith.constant 4.471500e-02 : f32
    %125 = vector.broadcast %cst_39 : f32 to vector<64x64xf32>
    %126 = arith.mulf %125, %122 : vector<64x64xf32>
    %127 = arith.mulf %126, %122 : vector<64x64xf32>
    %128 = arith.mulf %127, %122 : vector<64x64xf32>
    %129 = arith.addf %122, %128 : vector<64x64xf32>
    %cst_40 = arith.constant 0.797884583 : f32
    %130 = vector.broadcast %cst_40 : f32 to vector<64x64xf32>
    %131 = arith.mulf %130, %129 : vector<64x64xf32>
    %132 = math.tanh %131 : vector<64x64xf32>
    %cst_41 = arith.constant 1.000000e+00 : f32
    %133 = vector.broadcast %cst_41 : f32 to vector<64x64xf32>
    %134 = arith.addf %133, %132 : vector<64x64xf32>
    %135 = arith.mulf %124, %134 : vector<64x64xf32>
    %136 = arith.truncf %135 : vector<64x64xf32> to vector<64x64xbf16>
    %137 = arith.truncf %33 : vector<64x32xf32> to vector<64x32xbf16>
    %cst_42 = arith.constant dense<0.000000e+00> : vector<64x32xf32>
    %138 = tpu.matmul %136, %137, %cst_42 {dimension_numbers = #tpu.dot_dimension_numbers<[1], [0], [0], [1], [0, 0, 1, 1], [], []>} : vector<64x64xbf16>, vector<64x32xbf16>, vector<64x32xf32> -> vector<64x32xf32>
    %139 = vector.broadcast %39 : vector<1x32xf32> to vector<64x32xf32>
    %140 = arith.addf %138, %139 : vector<64x32xf32>
    %141 = arith.addf %117, %140 : vector<64x32xf32>
    %cst_43 = arith.constant dense<0.000000e+00> : vector<64xf32>
    %142 = vector.multi_reduction <add>, %141, %cst_43 [1] : vector<64x32xf32> to vector<64xf32>
    %143 = vector.shape_cast %142 : vector<64xf32> to vector<64x1xf32>
    %cst_44 = arith.constant 3.200000e+01 : f32
    %144 = vector.broadcast %cst_44 : f32 to vector<64x1xf32>
    %145 = arith.divf %143, %144 : vector<64x1xf32>
    %146 = vector.broadcast %145 : vector<64x1xf32> to vector<64x32xf32>
    %147 = arith.subf %141, %146 : vector<64x32xf32>
    %148 = arith.mulf %147, %147 : vector<64x32xf32>
    %cst_45 = arith.constant dense<0.000000e+00> : vector<64xf32>
    %149 = vector.multi_reduction <add>, %148, %cst_45 [1] : vector<64x32xf32> to vector<64xf32>
    %150 = vector.shape_cast %149 : vector<64xf32> to vector<64x1xf32>
    %cst_46 = arith.constant 3.200000e+01 : f32
    %151 = vector.broadcast %cst_46 : f32 to vector<64x1xf32>
    %152 = arith.divf %150, %151 : vector<64x1xf32>
    %153 = vector.broadcast %145 : vector<64x1xf32> to vector<64x32xf32>
    %154 = arith.subf %141, %153 : vector<64x32xf32>
    %cst_47 = arith.constant 9.99999974E-6 : f32
    %155 = vector.broadcast %cst_47 : f32 to vector<64x1xf32>
    %156 = arith.addf %152, %155 : vector<64x1xf32>
    %157 = math.rsqrt %156 : vector<64x1xf32>
    %158 = vector.broadcast %157 : vector<64x1xf32> to vector<64x32xf32>
    %159 = arith.mulf %154, %158 : vector<64x32xf32>
    %160 = vector.broadcast %42 : vector<1x32xf32> to vector<64x32xf32>
    %161 = arith.mulf %159, %160 : vector<64x32xf32>
    %162 = vector.broadcast %43 : vector<1x32xf32> to vector<64x32xf32>
    %163 = arith.addf %161, %162 : vector<64x32xf32>
    %c1 = arith.constant 1 : index
    %c0_48 = arith.constant 0 : index
    %c0_49 = arith.constant 0 : index
    %164 = vector.load %arg5[%c1, %c0_48, %c0_49] : memref<2x32x96xf32, #tpu.memory_space<vmem>>, vector<1x32x96xf32>
    %165 = vector.shape_cast %164 : vector<1x32x96xf32> to vector<32x96xf32>
    %c1_50 = arith.constant 1 : index
    %c0_51 = arith.constant 0 : index
    %c0_52 = arith.constant 0 : index
    %166 = vector.load %arg6[%c1_50, %c0_51, %c0_52] : memref<2x32x32xf32, #tpu.memory_space<vmem>>, vector<1x32x32xf32>
    %167 = vector.shape_cast %166 : vector<1x32x32xf32> to vector<32x32xf32>
    %c1_53 = arith.constant 1 : index
    %c0_54 = arith.constant 0 : index
    %c0_55 = arith.constant 0 : index
    %168 = vector.load %arg7[%c1_53, %c0_54, %c0_55] : memref<2x32x64xf32, #tpu.memory_space<vmem>>, vector<1x32x64xf32>
    %169 = vector.shape_cast %168 : vector<1x32x64xf32> to vector<32x64xf32>
    %c1_56 = arith.constant 1 : index
    %c0_57 = arith.constant 0 : index
    %c0_58 = arith.constant 0 : index
    %170 = vector.load %arg8[%c1_56, %c0_57, %c0_58] : memref<2x64x32xf32, #tpu.memory_space<vmem>>, vector<1x64x32xf32>
    %171 = vector.shape_cast %170 : vector<1x64x32xf32> to vector<64x32xf32>
    %c1_59 = arith.constant 1 : index
    %c0_60 = arith.constant 0 : index
    %c0_61 = arith.constant 0 : index
    %172 = vector.load %arg9[%c1_59, %c0_60, %c0_61] : memref<2x8x96xf32, #tpu.memory_space<vmem>>, vector<1x8x96xf32>
    %173 = vector.shape_cast %172 : vector<1x8x96xf32> to vector<8x96xf32>
    %174 = vector.extract_strided_slice %173 {offsets = [0, 0], sizes = [1, 96], strides = [1, 1]} : vector<8x96xf32> to vector<1x96xf32>
    %175 = vector.extract_strided_slice %173 {offsets = [1, 0], sizes = [1, 64], strides = [1, 1]} : vector<8x96xf32> to vector<1x64xf32>
    %176 = vector.extract_strided_slice %173 {offsets = [2, 0], sizes = [1, 32], strides = [1, 1]} : vector<8x96xf32> to vector<1x32xf32>
    %177 = vector.extract_strided_slice %173 {offsets = [3, 0], sizes = [1, 32], strides = [1, 1]} : vector<8x96xf32> to vector<1x32xf32>
    %178 = vector.extract_strided_slice %173 {offsets = [4, 0], sizes = [1, 32], strides = [1, 1]} : vector<8x96xf32> to vector<1x32xf32>
    %179 = vector.extract_strided_slice %173 {offsets = [5, 0], sizes = [1, 32], strides = [1, 1]} : vector<8x96xf32> to vector<1x32xf32>
    %180 = vector.extract_strided_slice %173 {offsets = [6, 0], sizes = [1, 32], strides = [1, 1]} : vector<8x96xf32> to vector<1x32xf32>
    %181 = vector.extract_strided_slice %173 {offsets = [7, 0], sizes = [1, 32], strides = [1, 1]} : vector<8x96xf32> to vector<1x32xf32>
    %182 = arith.truncf %163 : vector<64x32xf32> to vector<64x32xbf16>
    %183 = arith.truncf %165 : vector<32x96xf32> to vector<32x96xbf16>
    %cst_62 = arith.constant dense<0.000000e+00> : vector<64x96xf32>
    %184 = tpu.matmul %182, %183, %cst_62 {dimension_numbers = #tpu.dot_dimension_numbers<[1], [0], [0], [1], [0, 0, 1, 1], [], []>} : vector<64x32xbf16>, vector<32x96xbf16>, vector<64x96xf32> -> vector<64x96xf32>
    %185 = vector.broadcast %174 : vector<1x96xf32> to vector<64x96xf32>
    %186 = arith.addf %184, %185 : vector<64x96xf32>
    %187 = vector.extract_strided_slice %186 {offsets = [0, 0], sizes = [64, 32], strides = [1, 1]} : vector<64x96xf32> to vector<64x32xf32>
    %188 = vector.extract_strided_slice %187 {offsets = [0, 0], sizes = [64, 16], strides = [1, 1]} : vector<64x32xf32> to vector<64x16xf32>
    %189 = vector.shape_cast %188 : vector<64x16xf32> to vector<8x8x16xf32>
    %190 = vector.extract_strided_slice %187 {offsets = [0, 16], sizes = [64, 16], strides = [1, 1]} : vector<64x32xf32> to vector<64x16xf32>
    %191 = vector.shape_cast %190 : vector<64x16xf32> to vector<8x8x16xf32>
    %192 = tpu.concatenate %189, %191 in 0 : vector<8x8x16xf32>, vector<8x8x16xf32> -> vector<16x8x16xf32>
    %193 = vector.extract_strided_slice %186 {offsets = [0, 32], sizes = [64, 32], strides = [1, 1]} : vector<64x96xf32> to vector<64x32xf32>
    %194 = vector.extract_strided_slice %193 {offsets = [0, 0], sizes = [64, 16], strides = [1, 1]} : vector<64x32xf32> to vector<64x16xf32>
    %195 = vector.shape_cast %194 : vector<64x16xf32> to vector<8x8x16xf32>
    %196 = vector.extract_strided_slice %193 {offsets = [0, 16], sizes = [64, 16], strides = [1, 1]} : vector<64x32xf32> to vector<64x16xf32>
    %197 = vector.shape_cast %196 : vector<64x16xf32> to vector<8x8x16xf32>
    %198 = tpu.concatenate %195, %197 in 0 : vector<8x8x16xf32>, vector<8x8x16xf32> -> vector<16x8x16xf32>
    %199 = vector.extract_strided_slice %186 {offsets = [0, 64], sizes = [64, 32], strides = [1, 1]} : vector<64x96xf32> to vector<64x32xf32>
    %200 = vector.extract_strided_slice %199 {offsets = [0, 0], sizes = [64, 16], strides = [1, 1]} : vector<64x32xf32> to vector<64x16xf32>
    %201 = vector.shape_cast %200 : vector<64x16xf32> to vector<8x8x16xf32>
    %202 = vector.extract_strided_slice %199 {offsets = [0, 16], sizes = [64, 16], strides = [1, 1]} : vector<64x32xf32> to vector<64x16xf32>
    %203 = vector.shape_cast %202 : vector<64x16xf32> to vector<8x8x16xf32>
    %204 = tpu.concatenate %201, %203 in 0 : vector<8x8x16xf32>, vector<8x8x16xf32> -> vector<16x8x16xf32>
    %205 = arith.truncf %192 : vector<16x8x16xf32> to vector<16x8x16xbf16>
    %206 = arith.truncf %198 : vector<16x8x16xf32> to vector<16x8x16xbf16>
    "tpu.trace_start"() <{level = 10 : i32, message = "bqd,bkd->bqk"}> : () -> ()
    %cst_63 = arith.constant dense<0.000000e+00> : vector<16x8x8xf32>
    %207 = tpu.matmul %205, %206, %cst_63 {dimension_numbers = #tpu.dot_dimension_numbers<[2], [2], [1], [1], [0, 0, 0, 1, 1, 1], [0], [0]>} : vector<16x8x16xbf16>, vector<16x8x16xbf16>, vector<16x8x8xf32> -> vector<16x8x8xf32>
    "tpu.trace_stop"() : () -> ()
    %208 = arith.addf %207, %25 : vector<16x8x8xf32>
    %209 = math.exp %208 : vector<16x8x8xf32>
    %cst_64 = arith.constant dense<0.000000e+00> : vector<16x8xf32>
    %210 = vector.multi_reduction <add>, %209, %cst_64 [2] : vector<16x8x8xf32> to vector<16x8xf32>
    %211 = vector.shape_cast %210 : vector<16x8xf32> to vector<16x8x1xf32>
    %212 = tpu.reciprocal %211 {approx = true} : vector<16x8x1xf32> -> vector<16x8x1xf32>
    %213 = vector.broadcast %212 : vector<16x8x1xf32> to vector<16x8x8xf32>
    %214 = arith.mulf %209, %213 : vector<16x8x8xf32>
    %215 = arith.truncf %214 : vector<16x8x8xf32> to vector<16x8x8xbf16>
    %216 = arith.truncf %204 : vector<16x8x16xf32> to vector<16x8x16xbf16>
    "tpu.trace_start"() <{level = 10 : i32, message = "bqk,bkd->bqd"}> : () -> ()
    %cst_65 = arith.constant dense<0.000000e+00> : vector<16x8x16xf32>
    %217 = tpu.matmul %215, %216, %cst_65 {dimension_numbers = #tpu.dot_dimension_numbers<[2], [1], [1], [2], [0, 0, 0, 1, 1, 2], [0], [0]>} : vector<16x8x8xbf16>, vector<16x8x16xbf16>, vector<16x8x16xf32> -> vector<16x8x16xf32>
    "tpu.trace_stop"() : () -> ()
    %218 = vector.extract_strided_slice %217 {offsets = [0, 0, 0], sizes = [8, 8, 16], strides = [1, 1, 1]} : vector<16x8x16xf32> to vector<8x8x16xf32>
    %219 = vector.shape_cast %218 : vector<8x8x16xf32> to vector<64x16xf32>
    %220 = vector.extract_strided_slice %167 {offsets = [0, 0], sizes = [16, 32], strides = [1, 1]} : vector<32x32xf32> to vector<16x32xf32>
    %221 = arith.truncf %219 : vector<64x16xf32> to vector<64x16xbf16>
    %222 = arith.truncf %220 : vector<16x32xf32> to vector<16x32xbf16>
    %cst_66 = arith.constant dense<0.000000e+00> : vector<64x32xf32>
    %223 = tpu.matmul %221, %222, %cst_66 {dimension_numbers = #tpu.dot_dimension_numbers<[1], [0], [0], [1], [0, 0, 1, 1], [], []>} : vector<64x16xbf16>, vector<16x32xbf16>, vector<64x32xf32> -> vector<64x32xf32>
    %224 = vector.broadcast %176 : vector<1x32xf32> to vector<64x32xf32>
    %225 = arith.addf %224, %223 : vector<64x32xf32>
    %226 = vector.extract_strided_slice %217 {offsets = [8, 0, 0], sizes = [8, 8, 16], strides = [1, 1, 1]} : vector<16x8x16xf32> to vector<8x8x16xf32>
    %227 = vector.shape_cast %226 : vector<8x8x16xf32> to vector<64x16xf32>
    %228 = vector.extract_strided_slice %167 {offsets = [16, 0], sizes = [16, 32], strides = [1, 1]} : vector<32x32xf32> to vector<16x32xf32>
    %229 = arith.truncf %227 : vector<64x16xf32> to vector<64x16xbf16>
    %230 = arith.truncf %228 : vector<16x32xf32> to vector<16x32xbf16>
    %cst_67 = arith.constant dense<0.000000e+00> : vector<64x32xf32>
    %231 = tpu.matmul %229, %230, %cst_67 {dimension_numbers = #tpu.dot_dimension_numbers<[1], [0], [0], [1], [0, 0, 1, 1], [], []>} : vector<64x16xbf16>, vector<16x32xbf16>, vector<64x32xf32> -> vector<64x32xf32>
    %232 = arith.addf %225, %231 : vector<64x32xf32>
    %233 = arith.addf %163, %232 : vector<64x32xf32>
    %cst_68 = arith.constant dense<0.000000e+00> : vector<64xf32>
    %234 = vector.multi_reduction <add>, %233, %cst_68 [1] : vector<64x32xf32> to vector<64xf32>
    %235 = vector.shape_cast %234 : vector<64xf32> to vector<64x1xf32>
    %cst_69 = arith.constant 3.200000e+01 : f32
    %236 = vector.broadcast %cst_69 : f32 to vector<64x1xf32>
    %237 = arith.divf %235, %236 : vector<64x1xf32>
    %238 = vector.broadcast %237 : vector<64x1xf32> to vector<64x32xf32>
    %239 = arith.subf %233, %238 : vector<64x32xf32>
    %240 = arith.mulf %239, %239 : vector<64x32xf32>
    %cst_70 = arith.constant dense<0.000000e+00> : vector<64xf32>
    %241 = vector.multi_reduction <add>, %240, %cst_70 [1] : vector<64x32xf32> to vector<64xf32>
    %242 = vector.shape_cast %241 : vector<64xf32> to vector<64x1xf32>
    %cst_71 = arith.constant 3.200000e+01 : f32
    %243 = vector.broadcast %cst_71 : f32 to vector<64x1xf32>
    %244 = arith.divf %242, %243 : vector<64x1xf32>
    %245 = vector.broadcast %237 : vector<64x1xf32> to vector<64x32xf32>
    %246 = arith.subf %233, %245 : vector<64x32xf32>
    %cst_72 = arith.constant 9.99999974E-6 : f32
    %247 = vector.broadcast %cst_72 : f32 to vector<64x1xf32>
    %248 = arith.addf %244, %247 : vector<64x1xf32>
    %249 = math.rsqrt %248 : vector<64x1xf32>
    %250 = vector.broadcast %249 : vector<64x1xf32> to vector<64x32xf32>
    %251 = arith.mulf %246, %250 : vector<64x32xf32>
    %252 = vector.broadcast %178 : vector<1x32xf32> to vector<64x32xf32>
    %253 = arith.mulf %251, %252 : vector<64x32xf32>
    %254 = vector.broadcast %179 : vector<1x32xf32> to vector<64x32xf32>
    %255 = arith.addf %253, %254 : vector<64x32xf32>
    %256 = arith.truncf %255 : vector<64x32xf32> to vector<64x32xbf16>
    %257 = arith.truncf %169 : vector<32x64xf32> to vector<32x64xbf16>
    %cst_73 = arith.constant dense<0.000000e+00> : vector<64x64xf32>
    %258 = tpu.matmul %256, %257, %cst_73 {dimension_numbers = #tpu.dot_dimension_numbers<[1], [0], [0], [1], [0, 0, 1, 1], [], []>} : vector<64x32xbf16>, vector<32x64xbf16>, vector<64x64xf32> -> vector<64x64xf32>
    %259 = vector.broadcast %175 : vector<1x64xf32> to vector<64x64xf32>
    %260 = arith.addf %258, %259 : vector<64x64xf32>
    %cst_74 = arith.constant 5.000000e-01 : f32
    %261 = vector.broadcast %cst_74 : f32 to vector<64x64xf32>
    %262 = arith.mulf %261, %260 : vector<64x64xf32>
    %cst_75 = arith.constant 4.471500e-02 : f32
    %263 = vector.broadcast %cst_75 : f32 to vector<64x64xf32>
    %264 = arith.mulf %263, %260 : vector<64x64xf32>
    %265 = arith.mulf %264, %260 : vector<64x64xf32>
    %266 = arith.mulf %265, %260 : vector<64x64xf32>
    %267 = arith.addf %260, %266 : vector<64x64xf32>
    %cst_76 = arith.constant 0.797884583 : f32
    %268 = vector.broadcast %cst_76 : f32 to vector<64x64xf32>
    %269 = arith.mulf %268, %267 : vector<64x64xf32>
    %270 = math.tanh %269 : vector<64x64xf32>
    %cst_77 = arith.constant 1.000000e+00 : f32
    %271 = vector.broadcast %cst_77 : f32 to vector<64x64xf32>
    %272 = arith.addf %271, %270 : vector<64x64xf32>
    %273 = arith.mulf %262, %272 : vector<64x64xf32>
    %274 = arith.truncf %273 : vector<64x64xf32> to vector<64x64xbf16>
    %275 = arith.truncf %171 : vector<64x32xf32> to vector<64x32xbf16>
    %cst_78 = arith.constant dense<0.000000e+00> : vector<64x32xf32>
    %276 = tpu.matmul %274, %275, %cst_78 {dimension_numbers = #tpu.dot_dimension_numbers<[1], [0], [0], [1], [0, 0, 1, 1], [], []>} : vector<64x64xbf16>, vector<64x32xbf16>, vector<64x32xf32> -> vector<64x32xf32>
    %277 = vector.broadcast %177 : vector<1x32xf32> to vector<64x32xf32>
    %278 = arith.addf %276, %277 : vector<64x32xf32>
    %279 = arith.addf %255, %278 : vector<64x32xf32>
    %cst_79 = arith.constant dense<0.000000e+00> : vector<64xf32>
    %280 = vector.multi_reduction <add>, %279, %cst_79 [1] : vector<64x32xf32> to vector<64xf32>
    %281 = vector.shape_cast %280 : vector<64xf32> to vector<64x1xf32>
    %cst_80 = arith.constant 3.200000e+01 : f32
    %282 = vector.broadcast %cst_80 : f32 to vector<64x1xf32>
    %283 = arith.divf %281, %282 : vector<64x1xf32>
    %284 = vector.broadcast %283 : vector<64x1xf32> to vector<64x32xf32>
    %285 = arith.subf %279, %284 : vector<64x32xf32>
    %286 = arith.mulf %285, %285 : vector<64x32xf32>
    %cst_81 = arith.constant dense<0.000000e+00> : vector<64xf32>
    %287 = vector.multi_reduction <add>, %286, %cst_81 [1] : vector<64x32xf32> to vector<64xf32>
    %288 = vector.shape_cast %287 : vector<64xf32> to vector<64x1xf32>
    %cst_82 = arith.constant 3.200000e+01 : f32
    %289 = vector.broadcast %cst_82 : f32 to vector<64x1xf32>
    %290 = arith.divf %288, %289 : vector<64x1xf32>
    %291 = vector.broadcast %283 : vector<64x1xf32> to vector<64x32xf32>
    %292 = arith.subf %279, %291 : vector<64x32xf32>
    %cst_83 = arith.constant 9.99999974E-6 : f32
    %293 = vector.broadcast %cst_83 : f32 to vector<64x1xf32>
    %294 = arith.addf %290, %293 : vector<64x1xf32>
    %295 = math.rsqrt %294 : vector<64x1xf32>
    %296 = vector.broadcast %295 : vector<64x1xf32> to vector<64x32xf32>
    %297 = arith.mulf %292, %296 : vector<64x32xf32>
    %298 = vector.broadcast %180 : vector<1x32xf32> to vector<64x32xf32>
    %299 = arith.mulf %297, %298 : vector<64x32xf32>
    %300 = vector.broadcast %181 : vector<1x32xf32> to vector<64x32xf32>
    %301 = arith.addf %299, %300 : vector<64x32xf32>
    %302 = arith.truncf %301 : vector<64x32xf32> to vector<64x32xbf16>
    %303 = arith.truncf %21 : vector<32x128xf32> to vector<32x128xbf16>
    %cst_84 = arith.constant dense<0.000000e+00> : vector<64x128xf32>
    %304 = tpu.matmul %302, %303, %cst_84 {dimension_numbers = #tpu.dot_dimension_numbers<[1], [0], [0], [1], [0, 0, 1, 1], [], []>} : vector<64x32xbf16>, vector<32x128xbf16>, vector<64x128xf32> -> vector<64x128xf32>
    %305 = vector.broadcast %22 : vector<1x128xf32> to vector<64x128xf32>
    %306 = arith.addf %304, %305 : vector<64x128xf32>
    %307 = vector.shape_cast %306 : vector<64x128xf32> to vector<8x8x128xf32>
    %c0_85 = arith.constant 0 : index
    %c0_86 = arith.constant 0 : index
    %c0_87 = arith.constant 0 : index
    %308 = vector.load %arg12[%c0_85, %c0_86, %c0_87] : memref<8x8x128xf32, #tpu.memory_space<vmem>>, vector<8x8x128xf32>
    tpu.vector_store %arg12[%c0_85, %c0_86, %c0_87], %307 {strides = array<i32>} : memref<8x8x128xf32, #tpu.memory_space<vmem>>, vector<8x8x128xf32>,
    return
  }
  func.func @transform_0(%arg0: i32) -> (i32, i32) {
    %c0_i32 = arith.constant 0 : i32
    %c0_i32_0 = arith.constant 0 : i32
    %c0_i32_1 = arith.constant 0 : i32
    return %c0_i32, %c0_i32_0 : i32, i32
  }
  func.func @transform_1(%arg0: i32) -> (i32, i32) {
    %c0_i32 = arith.constant 0 : i32
    %c0_i32_0 = arith.constant 0 : i32
    %c0_i32_1 = arith.constant 0 : i32
    return %c0_i32, %c0_i32_0 : i32, i32
  }
  func.func @transform_2(%arg0: i32) -> (i32, i32) {
    %c0_i32 = arith.constant 0 : i32
    %c0_i32_0 = arith.constant 0 : i32
    %c0_i32_1 = arith.constant 0 : i32
    return %c0_i32, %c0_i32_0 : i32, i32
  }
  func.func @transform_3(%arg0: i32) -> (i32, i32) {
    %c0_i32 = arith.constant 0 : i32
    %c0_i32_0 = arith.constant 0 : i32
    %c0_i32_1 = arith.constant 0 : i32
    return %c0_i32, %c0_i32_0 : i32, i32
  }
  func.func @transform_4(%arg0: i32) -> (i32, i32, i32) {
    %c0_i32 = arith.constant 0 : i32
    %c0_i32_0 = arith.constant 0 : i32
    %c0_i32_1 = arith.constant 0 : i32
    %c0_i32_2 = arith.constant 0 : i32
    return %c0_i32, %c0_i32_0, %c0_i32_1 : i32, i32, i32
  }
  func.func @transform_5(%arg0: i32) -> (i32, i32, i32) {
    %c0_i32 = arith.constant 0 : i32
    %c0_i32_0 = arith.constant 0 : i32
    %c0_i32_1 = arith.constant 0 : i32
    %c0_i32_2 = arith.constant 0 : i32
    return %c0_i32, %c0_i32_0, %c0_i32_1 : i32, i32, i32
  }
  func.func @transform_6(%arg0: i32) -> (i32, i32, i32) {
    %c0_i32 = arith.constant 0 : i32
    %c0_i32_0 = arith.constant 0 : i32
    %c0_i32_1 = arith.constant 0 : i32
    %c0_i32_2 = arith.constant 0 : i32
    return %c0_i32, %c0_i32_0, %c0_i32_1 : i32, i32, i32
  }
  func.func @transform_7(%arg0: i32) -> (i32, i32, i32) {
    %c0_i32 = arith.constant 0 : i32
    %c0_i32_0 = arith.constant 0 : i32
    %c0_i32_1 = arith.constant 0 : i32
    %c0_i32_2 = arith.constant 0 : i32
    return %c0_i32, %c0_i32_0, %c0_i32_1 : i32, i32, i32
  }
  func.func @transform_8(%arg0: i32) -> (i32, i32, i32) {
    %c0_i32 = arith.constant 0 : i32
    %c0_i32_0 = arith.constant 0 : i32
    %c0_i32_1 = arith.constant 0 : i32
    %c0_i32_2 = arith.constant 0 : i32
    return %c0_i32, %c0_i32_0, %c0_i32_1 : i32, i32, i32
  }
  func.func @transform_9(%arg0: i32) -> (i32, i32) {
    %c0_i32 = arith.constant 0 : i32
    %c0_i32_0 = arith.constant 0 : i32
    %c0_i32_1 = arith.constant 0 : i32
    return %c0_i32, %c0_i32_0 : i32, i32
  }
  func.func @transform_10(%arg0: i32) -> (i32, i32) {
    %c0_i32 = arith.constant 0 : i32
    %c0_i32_0 = arith.constant 0 : i32
    %c0_i32_1 = arith.constant 0 : i32
    return %c0_i32, %c0_i32_0 : i32, i32
  }
  func.func @transform_11(%arg0: i32) -> (i32, i32, i32) {
    %c0_i32 = arith.constant 0 : i32
    %c0_i32_0 = arith.constant 0 : i32
    %c0_i32_1 = arith.constant 0 : i32
    return %arg0, %c0_i32, %c0_i32_0 : i32, i32, i32
  }
}

</mosaic_0001>

<llo_original>
// kernel: _lambda_.1
$region0: #{_lambda_.1}
  #allocation0 [shape = 'u32[]', space=smem, size = 0x4, offset = 0x4, fixed_abs, tag = 'smem constant byte address 0x4 - core index']
  #allocation1 [shape = 'u32[72,128]{1,0:T(1,128)}', space=vmem, size = 0x9000, scoped, tag = 'internal scratch']
  %s0 = inlined_call_operand.vmem [shape: s32[8,8], index: 0, kind: input, shape index: {}]
  %s1 = inlined_call_operand.hbm [shape: f32[8,8], index: 1, kind: input, shape index: {}]
  %s2 = inlined_call_operand.vmem [shape: f32[56,32], index: 2, kind: input, shape index: {}]
  %s3 = inlined_call_operand.vmem [shape: f32[10,32], index: 3, kind: input, shape index: {}]
  %s4 = inlined_call_operand.vmem [shape: f32[2,32,96], index: 4, kind: input, shape index: {}]
  %s5 = inlined_call_operand.vmem [shape: f32[2,32,32], index: 5, kind: input, shape index: {}]
  %s6 = inlined_call_operand.vmem [shape: f32[2,32,64], index: 6, kind: input, shape index: {}]
  %s7 = inlined_call_operand.vmem [shape: f32[2,64,32], index: 7, kind: input, shape index: {}]
  %s8 = inlined_call_operand.hbm [shape: f32[2,8,96], index: 8, kind: input, shape index: {}]
  %s9 = inlined_call_operand.hbm [shape: f32[32,128], index: 9, kind: input, shape index: {}]
  %s10 = inlined_call_operand.vmem [shape: f32[1,128], index: 10, kind: input, shape index: {}]
  %s11 = inlined_call_operand.hbm [shape: f32[8,8,128], index: 11, kind: output, shape index: {}]
  %s12 = sld [smem:[#allocation0]]
  $region66: #{_lambda_.1} parent=0
    _
  %s14 = ssub.s32 1, %s12
  %s15 = scalar_select 0, %s14, %s12
  $region1: #{_lambda_.1} parent=0
    #allocation2 [shape = 'u8[4096]{0}', space=vmem, size = 0x1000, scoped, tag = 'input window, operand 1, single buffered']
    #allocation3 [shape = 's32[1]{0}', space=sflag, size = 0x4, scoped, tag = 'scoped memory for _lambda_.1']
    #allocation4 [shape = 's32[1]{0}', space=sflag, size = 0x4, scoped, tag = 'scoped memory for _lambda_.1']
    #allocation5 [shape = 'u8[8192]{0}', space=vmem, size = 0x2000, scoped, tag = 'input window, operand 8, single buffered']
    #allocation6 [shape = 's32[1]{0}', space=sflag, size = 0x4, scoped, tag = 'scoped memory for _lambda_.1']
    #allocation7 [shape = 'u8[16384]{0}', space=vmem, size = 0x4000, scoped, tag = 'input window, operand 9, single buffered']
    #allocation8 [shape = 'u8[32768]{0}', space=vmem, size = 0x8000, scoped, tag = 'output window, operand 0, single buffered']
    %16 = vsyncpa [#allocation3], 0
    %17 = vsyncpa [#allocation6], 0
    %18 = vsyncpa [#allocation4], 0
    // Predicated region
    $region2: #{_lambda_.1} parent=1 // pred_check
      _
    $region3: #{_lambda_.1} parent=1 // pred_check_branch
      %20 = sbr.rel (0) target = $region5
    $region4: #{_lambda_.1} parent=1 // pred_region
      _
    $region5: #{_lambda_.1} parent=1 // pred_fallthru
      _
    // Predicated region
    $region6: #{_lambda_.1} parent=1 // pred_check
      _
    $region7: #{_lambda_.1} parent=1 // pred_check_branch
      %22 = sbr.rel (0) target = $region9
    $region8: #{_lambda_.1} parent=1 // pred_region
      %24 = vsyncadd [#allocation3], 0
      %s26 = sshll.u32 %s1, 4
      %s27 = int_to_ptr.hbm [resolvable:$true] %s26
      %s28 = sshll.u32 [#allocation2], 4
      %s29 = int_to_ptr.vmem [resolvable:$true] %s28
      %31 = dma.hbm_to_vmem [thread:$0]  %s27, 128, %s29, [#allocation3]
    $region9: #{_lambda_.1} parent=1 // pred_fallthru
      _
    // Predicated region
    $region10: #{_lambda_.1} parent=1 // pred_check
      _
    $region11: #{_lambda_.1} parent=1 // pred_check_branch
      %33 = sbr.rel (0) target = $region13
    $region12: #{_lambda_.1} parent=1 // pred_region
      _
    $region13: #{_lambda_.1} parent=1 // pred_fallthru
      _
    // Predicated region
    $region14: #{_lambda_.1} parent=1 // pred_check
      _
    $region15: #{_lambda_.1} parent=1 // pred_check_branch
      %35 = sbr.rel (0) target = $region17
    $region16: #{_lambda_.1} parent=1 // pred_region
      _
    $region17: #{_lambda_.1} parent=1 // pred_fallthru
      _
    // Predicated region
    $region18: #{_lambda_.1} parent=1 // pred_check
      _
    $region19: #{_lambda_.1} parent=1 // pred_check_branch
      %37 = sbr.rel (0) target = $region21
    $region20: #{_lambda_.1} parent=1 // pred_region
      _
    $region21: #{_lambda_.1} parent=1 // pred_fallthru
      _
    // Predicated region
    $region22: #{_lambda_.1} parent=1 // pred_check
      _
    $region23: #{_lambda_.1} parent=1 // pred_check_branch
      %39 = sbr.rel (0) target = $region25
    $region24: #{_lambda_.1} parent=1 // pred_region
      _
    $region25: #{_lambda_.1} parent=1 // pred_fallthru
      _
    // Predicated region
    $region26: #{_lambda_.1} parent=1 // pred_check
      _
    $region27: #{_lambda_.1} parent=1 // pred_check_branch
      %41 = sbr.rel (0) target = $region29
    $region28: #{_lambda_.1} parent=1 // pred_region
      _
    $region29: #{_lambda_.1} parent=1 // pred_fallthru
      _
    // Predicated region
    $region30: #{_lambda_.1} parent=1 // pred_check
      _
    $region31: #{_lambda_.1} parent=1 // pred_check_branch
      %43 = sbr.rel (0) target = $region33
    $region32: #{_lambda_.1} parent=1 // pred_region
      _
    $region33: #{_lambda_.1} parent=1 // pred_fallthru
      _
    // Predicated region
    $region34: #{_lambda_.1} parent=1 // pred_check
      _
    $region35: #{_lambda_.1} parent=1 // pred_check_branch
      %45 = sbr.rel (0) target = $region37
    $region36: #{_lambda_.1} parent=1 // pred_region
      %47 = vsyncadd [#allocation6], 0
      %s48 = sshll.u32 %s8, 4
      %s49 = int_to_ptr.hbm [resolvable:$true] %s48
      %s50 = sshll.u32 [#allocation5], 4
      %s51 = int_to_ptr.vmem [resolvable:$true] %s50
      %56 = dma.hbm_to_vmem [thread:$0]  %s49, 256, %s51, [#allocation6], 128, 128, 8
    $region37: #{_lambda_.1} parent=1 // pred_fallthru
      _
    // Predicated region
    $region38: #{_lambda_.1} parent=1 // pred_check
      _
    $region39: #{_lambda_.1} parent=1 // pred_check_branch
      %58 = sbr.rel (0) target = $region41
    $region40: #{_lambda_.1} parent=1 // pred_region
      %60 = vsyncadd [#allocation6], 0
      %s61 = sshll.u32 %s9, 4
      %s62 = int_to_ptr.hbm [resolvable:$true] %s61
      %s63 = sshll.u32 [#allocation7], 4
      %s64 = int_to_ptr.vmem [resolvable:$true] %s63
      %69 = dma.hbm_to_vmem [thread:$0]  %s62, 512, %s64, [#allocation6], 128, 128, 8
    $region41: #{_lambda_.1} parent=1 // pred_fallthru
      _
    // Predicated region
    $region42: #{_lambda_.1} parent=1 // pred_check
      _
    $region43: #{_lambda_.1} parent=1 // pred_check_branch
      %71 = sbr.rel (0) target = $region45
    $region44: #{_lambda_.1} parent=1 // pred_region
      _
    $region45: #{_lambda_.1} parent=1 // pred_fallthru
      _
    // Predicated region
    $region46: #{_lambda_.1} parent=1 // pred_check
      _
    $region47: #{_lambda_.1} parent=1 // pred_check_branch
      %73 = sbr.rel (0) target = $region49
    $region48: #{_lambda_.1} parent=1 // pred_region
      %75 = dma.done [#allocation3], 128
    $region49: #{_lambda_.1} parent=1 // pred_fallthru
      _
    // Predicated region
    $region50: #{_lambda_.1} parent=1 // pred_check
      _
    $region51: #{_lambda_.1} parent=1 // pred_check_branch
      %77 = sbr.rel (0) target = $region53
    $region52: #{_lambda_.1} parent=1 // pred_region
      %79 = dma.done [#allocation6], 256
    $region53: #{_lambda_.1} parent=1 // pred_fallthru
      _
    // Predicated region
    $region54: #{_lambda_.1} parent=1 // pred_check
      _
    $region55: #{_lambda_.1} parent=1 // pred_check_branch
      %81 = sbr.rel (0) target = $region57
    $region56: #{_lambda_.1} parent=1 // pred_region
      %83 = dma.done [#allocation6], 512
    $region57: #{_lambda_.1} parent=1 // pred_fallthru
      _
    %s85 = smul.u32 0, 8
    %s86 = scalar_lea.vmem %s0, %s85
    %v87 = vld [vmem:[%s86] sm:$0xff]
    %v88 = vld [vmem:[%s2] sm:$0xff]
    %v89 = vld [vmem:[%s2 + $0x8] sm:$0xff]
    %v90 = vld [vmem:[%s2 + $0x10] sm:$0xff]
    %v91 = vld [vmem:[%s2 + $0x18] sm:$0xff]
    %v92 = vld [vmem:[%s2 + $0x20] sm:$0xff]
    %v93 = vld [vmem:[%s2 + $0x28] sm:$0xff]
    %v94 = vld [vmem:[%s2 + $0x30] sm:$0xff]
    %v95 = vld [vmem:[%s3] sm:$0xff]
    %v96 = vlaneseq
    %v97 = vand.u32 %v96, 127
    %v98 = vperm.slane %v87, 0
    %v99 = vlaneseq
    %v100 = vshrl.u32 %v99, 7
    %102 = vset.pattern.permute.xlu0 %v100
    %103 = vperm.xlu0 %102, %v98
    %v104 = vpop.permute.xlu0 %103
    %v105 = vperm.slane %v87, 1
    %v106 = vlaneseq
    %v107 = vshrl.u32 %v106, 7
    %109 = vset.pattern.permute.xlu0 %v107
    %110 = vperm.xlu0 %109, %v105
    %v111 = vpop.permute.xlu0 %110
    %v112 = vperm.slane %v87, 2
    %v113 = vlaneseq
    %v114 = vshrl.u32 %v113, 7
    %116 = vset.pattern.permute.xlu0 %v114
    %117 = vperm.xlu0 %116, %v112
    %v118 = vpop.permute.xlu0 %117
    %v119 = vperm.slane %v87, 3
    %v120 = vlaneseq
    %v121 = vshrl.u32 %v120, 7
    %123 = vset.pattern.permute.xlu0 %v121
    %124 = vperm.xlu0 %123, %v119
    %v125 = vpop.permute.xlu0 %124
    %v126 = vperm.slane %v87, 4
    %v127 = vlaneseq
    %v128 = vshrl.u32 %v127, 7
    %130 = vset.pattern.permute.xlu0 %v128
    %131 = vperm.xlu0 %130, %v126
    %v132 = vpop.permute.xlu0 %131
    %v133 = vperm.slane %v87, 5
    %v134 = vlaneseq
    %v135 = vshrl.u32 %v134, 7
    %137 = vset.pattern.permute.xlu0 %v135
    %138 = vperm.xlu0 %137, %v133
    %v139 = vpop.permute.xlu0 %138
    %v140 = vperm.slane %v87, 6
    %v141 = vlaneseq
    %v142 = vshrl.u32 %v141, 7
    %144 = vset.pattern.permute.xlu0 %v142
    %145 = vperm.xlu0 %144, %v140
    %v146 = vpop.permute.xlu0 %145
    %v147 = vperm.slane %v87, 7
    %v148 = vlaneseq
    %v149 = vshrl.u32 %v148, 7
    %151 = vset.pattern.permute.xlu0 %v149
    %152 = vperm.xlu0 %151, %v147
    %v153 = vpop.permute.xlu0 %152
    %vm154 = vcmp.eq.s32.totalorder %v104, %v97
    %vm155 = vcmp.eq.s32.totalorder %v111, %v97
    %vm156 = vcmp.eq.s32.totalorder %v118, %v97
    %vm157 = vcmp.eq.s32.totalorder %v125, %v97
    %vm158 = vcmp.eq.s32.totalorder %v132, %v97
    %vm159 = vcmp.eq.s32.totalorder %v139, %v97
    %vm160 = vcmp.eq.s32.totalorder %v146, %v97
    %vm161 = vcmp.eq.s32.totalorder %v153, %v97
    %v162 = vsel %vm154, 1, 0
    %v163 = vsel %vm155, 1, 0
    %v164 = vsel %vm156, 1, 0
    %v165 = vsel %vm157, 1, 0
    %v166 = vsel %vm158, 1, 0
    %v167 = vsel %vm159, 1, 0
    %v168 = vsel %vm160, 1, 0
    %v169 = vsel %vm161, 1, 0
    %v170 = vcvt.s32.f32 %v162
    %v171 = vcvt.s32.f32 %v163
    %v172 = vcvt.s32.f32 %v164
    %v173 = vcvt.s32.f32 %v165
    %v174 = vcvt.s32.f32 %v166
    %v175 = vcvt.s32.f32 %v167
    %v176 = vcvt.s32.f32 %v168
    %v177 = vcvt.s32.f32 %v169
    %vm178 = vcmask 457728
    %v180 = vsel %vm178, %v170, 0
    %v183 = vsel %vm178, %v171, 0
    %v186 = vsel %vm178, %v172, 0
    %v189 = vsel %vm178, %v173, 0
    %v192 = vsel %vm178, %v174, 0
    %v195 = vsel %vm178, %v175, 0
    %v198 = vsel %vm178, %v176, 0
    %v201 = vsel %vm178, %v177, 0
    %203 = vmatpush.msra.mxu0 0.0
    %204 = vmatpush.msra.mxu0 0.0
    %205 = vmatpush.msra.mxu0 0.0
    %206 = vmatpush.msra.mxu0 0.0
    %207 = vmatpush.msra.mxu0 0.0
    %208 = vmatpush.msra.mxu0 0.0
    %209 = vmatpush.msra.mxu0 0.0
    %210 = vmatpush.msra.mxu0 0.0
    %211 = vmatpush.msra.mxu0 0.0
    %212 = vmatpush.msra.mxu0 %v94
    %213 = vmatpush.msra.mxu0 %v93
    %214 = vmatpush.msra.mxu0 %v92
    %215 = vmatpush.msra.mxu0 %v91
    %216 = vmatpush.msra.mxu0 %v90
    %217 = vmatpush.msra.mxu0 %v89
    %218 = vmatpush.msra.mxu0 %v88
    %219 = vmatmul.f32.gmra.mxu0 %v180
    %v220 = vpop.f32.mrf.mxu0
    %v221 = vadd.f32 0.0, %v220
    %222 = vmatmul.f32.gmra.mxu0 %v183
    %v223 = vpop.f32.mrf.mxu0
    %v224 = vadd.f32 0.0, %v223
    %225 = vmatmul.f32.gmra.mxu0 %v186
    %v226 = vpop.f32.mrf.mxu0
    %v227 = vadd.f32 0.0, %v226
    %228 = vmatmul.f32.gmra.mxu0 %v189
    %v229 = vpop.f32.mrf.mxu0
    %v230 = vadd.f32 0.0, %v229
    %231 = vmatmul.f32.gmra.mxu0 %v192
    %v232 = vpop.f32.mrf.mxu0
    %v233 = vadd.f32 0.0, %v232
    %234 = vmatmul.f32.gmra.mxu0 %v195
    %v235 = vpop.f32.mrf.mxu0
    %v236 = vadd.f32 0.0, %v235
    %237 = vmatmul.f32.gmra.mxu0 %v198
    %v238 = vpop.f32.mrf.mxu0
    %v239 = vadd.f32 0.0, %v238
    %240 = vmatmul.f32.gmra.mxu0 %v201
    %v241 = vpop.f32.mrf.mxu0
    %v242 = vadd.f32 0.0, %v241
    %243 = vdwg.mxu0
    %v244 = vmul.f32 %v221, 5.656854
    %v245 = vmul.f32 %v224, 5.656854
    %v246 = vmul.f32 %v227, 5.656854
    %v247 = vmul.f32 %v230, 5.656854
    %v248 = vmul.f32 %v233, 5.656854
    %v249 = vmul.f32 %v236, 5.656854
    %v250 = vmul.f32 %v239, 5.656854
    %v251 = vmul.f32 %v242, 5.656854
    %v252 = vadd.f32 %v244, %v95
    %v253 = vadd.f32 %v245, %v95
    %v254 = vadd.f32 %v246, %v95
    %v255 = vadd.f32 %v247, %v95
    %v256 = vadd.f32 %v248, %v95
    %v257 = vadd.f32 %v249, %v95
    %v258 = vadd.f32 %v250, %v95
    %v259 = vadd.f32 %v251, %v95
    %v260 = vld [vmem:[#allocation2] sm:$0xff]
    %v261 = vld [vmem:[#allocation7] sm:$0xff]
    %v262 = vld [vmem:[#allocation7 + $0x8] sm:$0xff]
    %v263 = vld [vmem:[#allocation7 + $0x10] sm:$0xff]
    %v264 = vld [vmem:[#allocation7 + $0x18] sm:$0xff]
    %v265 = vld [vmem:[%s10] sm:$0x1]
    %v266 = vld [vmem:[%s4] sm:$0xff]
    %v267 = vld [vmem:[%s4 + $0x8] sm:$0xff]
    %v268 = vld [vmem:[%s4 + $0x10] sm:$0xff]
    %v269 = vld [vmem:[%s4 + $0x18] sm:$0xff]
    %v270 = vld [vmem:[%s5] sm:$0xff]
    %v271 = vld [vmem:[%s5 + $0x8] sm:$0xff]
    %v272 = vld [vmem:[%s5 + $0x10] sm:$0xff]
    %v273 = vld [vmem:[%s5 + $0x18] sm:$0xff]
    %v274 = vld [vmem:[%s6] sm:$0xff]
    %v275 = vld [vmem:[%s6 + $0x8] sm:$0xff]
    %v276 = vld [vmem:[%s6 + $0x10] sm:$0xff]
    %v277 = vld [vmem:[%s6 + $0x18] sm:$0xff]
    %v278 = vld [vmem:[%s7] sm:$0xff]
    %v279 = vld [vmem:[%s7 + $0x8] sm:$0xff]
    %v280 = vld [vmem:[%s7 + $0x10] sm:$0xff]
    %v281 = vld [vmem:[%s7 + $0x18] sm:$0xff]
    %v282 = vld [vmem:[%s7 + $0x20] sm:$0xff]
    %v283 = vld [vmem:[%s7 + $0x28] sm:$0xff]
    %v284 = vld [vmem:[%s7 + $0x30] sm:$0xff]
    %v285 = vld [vmem:[%s7 + $0x38] sm:$0xff]
    %v286 = vld [vmem:[#allocation5] sm:$0xff]
    %v287 = vpack.c.bf16 %v253, %v252
    %v288 = vpack.c.bf16 %v255, %v254
    %v289 = vpack.c.bf16 %v257, %v256
    %v290 = vpack.c.bf16 %v259, %v258
    %v291 = vpack.c.bf16 %v267, %v266
    %v292 = vpack.c.bf16 %v269, %v268
    %v293 = vperm.slane %v286, 0
    %vm294 = vcmask 261120
    %v296 = vsel %vm294, %v287, 0
    %v299 = vsel %vm294, %v288, 0
    %v302 = vsel %vm294, %v289, 0
    %v305 = vsel %vm294, %v290, 0
    %307 = vmatpush.bf16.msra.mxu0 0
    %308 = vmatpush.bf16.msra.mxu0 0
    %309 = vmatpush.bf16.msra.mxu0 0
    %310 = vmatpush.bf16.msra.mxu0 0
    %311 = vmatpush.bf16.msra.mxu0 0
    %312 = vmatpush.bf16.msra.mxu0 0
    %313 = vmatpush.bf16.msra.mxu0 %v292
    %314 = vmatpush.bf16.msra.mxu0 %v291
    %315 = vmatmul.bf16.gmra.mxu0 %v296
    %v316 = vpop.f32.mrf.mxu0
    %v317 = vadd.f32 %v293, %v316
    %v318 = vpop.f32.mrf.mxu0
    %v319 = vadd.f32 %v293, %v318
    %320 = vmatmul.bf16.gmra.mxu0 %v299
    %v321 = vpop.f32.mrf.mxu0
    %v322 = vadd.f32 %v293, %v321
    %v323 = vpop.f32.mrf.mxu0
    %v324 = vadd.f32 %v293, %v323
    %325 = vmatmul.bf16.gmra.mxu0 %v302
    %v326 = vpop.f32.mrf.mxu0
    %v327 = vadd.f32 %v293, %v326
    %v328 = vpop.f32.mrf.mxu0
    %v329 = vadd.f32 %v293, %v328
    %330 = vmatmul.bf16.gmra.mxu0 %v305
    %v331 = vpop.f32.mrf.mxu0
    %v332 = vadd.f32 %v293, %v331
    %v333 = vpop.f32.mrf.mxu0
    %v334 = vadd.f32 %v293, %v333
    %335 = vdwg.mxu0
    %344 = vrot.lane.b32.xlu0 %v317, 112
    %v345 = vpop.permute.xlu0 %344
    %346 = vrot.lane.b32.xlu0 %v319, 112
    %v347 = vpop.permute.xlu0 %346
    %348 = vrot.lane.b32.xlu0 %v322, 112
    %v349 = vpop.permute.xlu0 %348
    %350 = vrot.lane.b32.xlu0 %v324, 112
    %v351 = vpop.permute.xlu0 %350
    %352 = vrot.lane.b32.xlu0 %v327, 112
    %v353 = vpop.permute.xlu0 %352
    %354 = vrot.lane.b32.xlu0 %v329, 112
    %v355 = vpop.permute.xlu0 %354
    %356 = vrot.lane.b32.xlu0 %v332, 112
    %v357 = vpop.permute.xlu0 %356
    %358 = vrot.lane.b32.xlu0 %v334, 112
    %v359 = vpop.permute.xlu0 %358
    %v368 = vpack.c.bf16 %v317, %v317
    %v369 = vpack.c.bf16 %v319, %v319
    %v370 = vpack.c.bf16 %v322, %v322
    %v371 = vpack.c.bf16 %v324, %v324
    %v372 = vpack.c.bf16 %v327, %v327
    %v373 = vpack.c.bf16 %v329, %v329
    %v374 = vpack.c.bf16 %v332, %v332
    %v375 = vpack.c.bf16 %v334, %v334
    %v376 = vpack.c.bf16 %v345, %v345
    %v377 = vpack.c.bf16 %v347, %v347
    %v378 = vpack.c.bf16 %v349, %v349
    %v379 = vpack.c.bf16 %v351, %v351
    %v380 = vpack.c.bf16 %v353, %v353
    %v381 = vpack.c.bf16 %v355, %v355
    %v382 = vpack.c.bf16 %v357, %v357
    %v383 = vpack.c.bf16 %v359, %v359
    %v385 = vunpack.c.l.b16 %v368
    %v386 = vpack.c.b16 %v385, %v385
    %387 = vrot.lane.b32.xlu0 %v386, 96
    %v388 = vpop.permute.xlu0 %387
    %vm389 = vcmask 130048
    %v391 = vsel %vm389, %v368, 0
    %v394 = vsel %vm389, %v388, 0
    %396 = vmatpush.bf16.xpose.msra.mxu0 0
    %397 = vmatpush.bf16.xpose.msra.mxu0 0
    %398 = vmatpush.bf16.xpose.msra.mxu0 0
    %399 = vmatpush.bf16.xpose.msra.mxu0 0
    %400 = vmatpush.bf16.xpose.msra.mxu0 0
    %401 = vmatpush.bf16.xpose.msra.mxu0 0
    %402 = vmatpush.bf16.xpose.msra.mxu0 0
    %403 = vmatpush.bf16.xpose.msra.mxu0 %v394
    %404 = vmatmul.bf16.gmra.mxu0 %v391
    %v405 = vpop.f32.mrf.mxu0
    %v406 = vadd.f32 %v260, %v405
    %v407 = vpop.f32.mrf.mxu0
    %408 = vdwg.mxu0
    %v410 = vunpack.c.l.b16 %v369
    %v411 = vpack.c.b16 %v410, %v410
    %412 = vrot.lane.b32.xlu0 %v411, 96
    %v413 = vpop.permute.xlu0 %412
    %v415 = vsel %vm389, %v369, 0
    %v418 = vsel %vm389, %v413, 0
    %420 = vmatpush.bf16.xpose.msra.mxu0 0
    %421 = vmatpush.bf16.xpose.msra.mxu0 0
    %422 = vmatpush.bf16.xpose.msra.mxu0 0
    %423 = vmatpush.bf16.xpose.msra.mxu0 0
    %424 = vmatpush.bf16.xpose.msra.mxu0 0
    %425 = vmatpush.bf16.xpose.msra.mxu0 0
    %426 = vmatpush.bf16.xpose.msra.mxu0 0
    %427 = vmatpush.bf16.xpose.msra.mxu0 %v418
    %428 = vmatmul.bf16.gmra.mxu0 %v415
    %v429 = vpop.f32.mrf.mxu0
    %v430 = vadd.f32 %v260, %v429
    %v431 = vpop.f32.mrf.mxu0
    %432 = vdwg.mxu0
    %v434 = vunpack.c.l.b16 %v370
    %v435 = vpack.c.b16 %v434, %v434
    %436 = vrot.lane.b32.xlu0 %v435, 96
    %v437 = vpop.permute.xlu0 %436
    %v439 = vsel %vm389, %v370, 0
    %v442 = vsel %vm389, %v437, 0
    %444 = vmatpush.bf16.xpose.msra.mxu0 0
    %445 = vmatpush.bf16.xpose.msra.mxu0 0
    %446 = vmatpush.bf16.xpose.msra.mxu0 0
    %447 = vmatpush.bf16.xpose.msra.mxu0 0
    %448 = vmatpush.bf16.xpose.msra.mxu0 0
    %449 = vmatpush.bf16.xpose.msra.mxu0 0
    %450 = vmatpush.bf16.xpose.msra.mxu0 0
    %451 = vmatpush.bf16.xpose.msra.mxu0 %v442
    %452 = vmatmul.bf16.gmra.mxu0 %v439
    %v453 = vpop.f32.mrf.mxu0
    %v454 = vadd.f32 %v260, %v453
    %v455 = vpop.f32.mrf.mxu0
    %456 = vdwg.mxu0
    %v458 = vunpack.c.l.b16 %v371
    %v459 = vpack.c.b16 %v458, %v458
    %460 = vrot.lane.b32.xlu0 %v459, 96
    %v461 = vpop.permute.xlu0 %460
    %v463 = vsel %vm389, %v371, 0
    %v466 = vsel %vm389, %v461, 0
    %468 = vmatpush.bf16.xpose.msra.mxu0 0
    %469 = vmatpush.bf16.xpose.msra.mxu0 0
    %470 = vmatpush.bf16.xpose.msra.mxu0 0
    %471 = vmatpush.bf16.xpose.msra.mxu0 0
    %472 = vmatpush.bf16.xpose.msra.mxu0 0
    %473 = vmatpush.bf16.xpose.msra.mxu0 0
    %474 = vmatpush.bf16.xpose.msra.mxu0 0
    %475 = vmatpush.bf16.xpose.msra.mxu0 %v466
    %476 = vmatmul.bf16.gmra.mxu0 %v463
    %v477 = vpop.f32.mrf.mxu0
    %v478 = vadd.f32 %v260, %v477
    %v479 = vpop.f32.mrf.mxu0
    %480 = vdwg.mxu0
    %v482 = vunpack.c.l.b16 %v372
    %v483 = vpack.c.b16 %v482, %v482
    %484 = vrot.lane.b32.xlu0 %v483, 96
    %v485 = vpop.permute.xlu0 %484
    %v487 = vsel %vm389, %v372, 0
    %v490 = vsel %vm389, %v485, 0
    %492 = vmatpush.bf16.xpose.msra.mxu0 0
    %493 = vmatpush.bf16.xpose.msra.mxu0 0
    %494 = vmatpush.bf16.xpose.msra.mxu0 0
    %495 = vmatpush.bf16.xpose.msra.mxu0 0
    %496 = vmatpush.bf16.xpose.msra.mxu0 0
    %497 = vmatpush.bf16.xpose.msra.mxu0 0
    %498 = vmatpush.bf16.xpose.msra.mxu0 0
    %499 = vmatpush.bf16.xpose.msra.mxu0 %v490
    %500 = vmatmul.bf16.gmra.mxu0 %v487
    %v501 = vpop.f32.mrf.mxu0
    %v502 = vadd.f32 %v260, %v501
    %v503 = vpop.f32.mrf.mxu0
    %504 = vdwg.mxu0
    %v506 = vunpack.c.l.b16 %v373
    %v507 = vpack.c.b16 %v506, %v506
    %508 = vrot.lane.b32.xlu0 %v507, 96
    %v509 = vpop.permute.xlu0 %508
    %v511 = vsel %vm389, %v373, 0
    %v514 = vsel %vm389, %v509, 0
    %516 = vmatpush.bf16.xpose.msra.mxu0 0
    %517 = vmatpush.bf16.xpose.msra.mxu0 0
    %518 = vmatpush.bf16.xpose.msra.mxu0 0
    %519 = vmatpush.bf16.xpose.msra.mxu0 0
    %520 = vmatpush.bf16.xpose.msra.mxu0 0
    %521 = vmatpush.bf16.xpose.msra.mxu0 0
    %522 = vmatpush.bf16.xpose.msra.mxu0 0
    %523 = vmatpush.bf16.xpose.msra.mxu0 %v514
    %524 = vmatmul.bf16.gmra.mxu0 %v511
    %v525 = vpop.f32.mrf.mxu0
    %v526 = vadd.f32 %v260, %v525
    %v527 = vpop.f32.mrf.mxu0
    %528 = vdwg.mxu0
    %v530 = vunpack.c.l.b16 %v374
    %v531 = vpack.c.b16 %v530, %v530
    %532 = vrot.lane.b32.xlu0 %v531, 96
    %v533 = vpop.permute.xlu0 %532
    %v535 = vsel %vm389, %v374, 0
    %v538 = vsel %vm389, %v533, 0
    %540 = vmatpush.bf16.xpose.msra.mxu0 0
    %541 = vmatpush.bf16.xpose.msra.mxu0 0
    %542 = vmatpush.bf16.xpose.msra.mxu0 0
    %543 = vmatpush.bf16.xpose.msra.mxu0 0
    %544 = vmatpush.bf16.xpose.msra.mxu0 0
    %545 = vmatpush.bf16.xpose.msra.mxu0 0
    %546 = vmatpush.bf16.xpose.msra.mxu0 0
    %547 = vmatpush.bf16.xpose.msra.mxu0 %v538
    %548 = vmatmul.bf16.gmra.mxu0 %v535
    %v549 = vpop.f32.mrf.mxu0
    %v550 = vadd.f32 %v260, %v549
    %v551 = vpop.f32.mrf.mxu0
    %552 = vdwg.mxu0
    %v554 = vunpack.c.l.b16 %v375
    %v555 = vpack.c.b16 %v554, %v554
    %556 = vrot.lane.b32.xlu0 %v555, 96
    %v557 = vpop.permute.xlu0 %556
    %v559 = vsel %vm389, %v375, 0
    %v562 = vsel %vm389, %v557, 0
    %564 = vmatpush.bf16.xpose.msra.mxu0 0
    %565 = vmatpush.bf16.xpose.msra.mxu0 0
    %566 = vmatpush.bf16.xpose.msra.mxu0 0
    %567 = vmatpush.bf16.xpose.msra.mxu0 0
    %568 = vmatpush.bf16.xpose.msra.mxu0 0
    %569 = vmatpush.bf16.xpose.msra.mxu0 0
    %570 = vmatpush.bf16.xpose.msra.mxu0 0
    %571 = vmatpush.bf16.xpose.msra.mxu0 %v562
    %572 = vmatmul.bf16.gmra.mxu0 %v559
    %v573 = vpop.f32.mrf.mxu0
    %v574 = vadd.f32 %v260, %v573
    %v575 = vpop.f32.mrf.mxu0
    %576 = vdwg.mxu0
    %v578 = vunpack.c.l.b16 %v376
    %v579 = vpack.c.b16 %v578, %v578
    %580 = vrot.lane.b32.xlu0 %v579, 96
    %v581 = vpop.permute.xlu0 %580
    %v583 = vsel %vm389, %v376, 0
    %v586 = vsel %vm389, %v581, 0
    %588 = vmatpush.bf16.xpose.msra.mxu0 0
    %589 = vmatpush.bf16.xpose.msra.mxu0 0
    %590 = vmatpush.bf16.xpose.msra.mxu0 0
    %591 = vmatpush.bf16.xpose.msra.mxu0 0
    %592 = vmatpush.bf16.xpose.msra.mxu0 0
    %593 = vmatpush.bf16.xpose.msra.mxu0 0
    %594 = vmatpush.bf16.xpose.msra.mxu0 0
    %595 = vmatpush.bf16.xpose.msra.mxu0 %v586
    %596 = vmatmul.bf16.gmra.mxu0 %v583
    %v597 = vpop.f32.mrf.mxu0
    %v598 = vadd.f32 %v260, %v597
    %v599 = vpop.f32.mrf.mxu0
    %600 = vdwg.mxu0
    %v602 = vunpack.c.l.b16 %v377
    %v603 = vpack.c.b16 %v602, %v602
    %604 = vrot.lane.b32.xlu0 %v603, 96
    %v605 = vpop.permute.xlu0 %604
    %v607 = vsel %vm389, %v377, 0
    %v610 = vsel %vm389, %v605, 0
    %612 = vmatpush.bf16.xpose.msra.mxu0 0
    %613 = vmatpush.bf16.xpose.msra.mxu0 0
    %614 = vmatpush.bf16.xpose.msra.mxu0 0
    %615 = vmatpush.bf16.xpose.msra.mxu0 0
    %616 = vmatpush.bf16.xpose.msra.mxu0 0
    %617 = vmatpush.bf16.xpose.msra.mxu0 0
    %618 = vmatpush.bf16.xpose.msra.mxu0 0
    %619 = vmatpush.bf16.xpose.msra.mxu0 %v610
    %620 = vmatmul.bf16.gmra.mxu0 %v607
    %v621 = vpop.f32.mrf.mxu0
    %v622 = vadd.f32 %v260, %v621
    %v623 = vpop.f32.mrf.mxu0
    %624 = vdwg.mxu0
    %v626 = vunpack.c.l.b16 %v378
    %v627 = vpack.c.b16 %v626, %v626
    %628 = vrot.lane.b32.xlu0 %v627, 96
    %v629 = vpop.permute.xlu0 %628
    %v631 = vsel %vm389, %v378, 0
    %v634 = vsel %vm389, %v629, 0
    %636 = vmatpush.bf16.xpose.msra.mxu0 0
    %637 = vmatpush.bf16.xpose.msra.mxu0 0
    %638 = vmatpush.bf16.xpose.msra.mxu0 0
    %639 = vmatpush.bf16.xpose.msra.mxu0 0
    %640 = vmatpush.bf16.xpose.msra.mxu0 0
    %641 = vmatpush.bf16.xpose.msra.mxu0 0
    %642 = vmatpush.bf16.xpose.msra.mxu0 0
    %643 = vmatpush.bf16.xpose.msra.mxu0 %v634
    %644 = vmatmul.bf16.gmra.mxu0 %v631
    %v645 = vpop.f32.mrf.mxu0
    %v646 = vadd.f32 %v260, %v645
    %v647 = vpop.f32.mrf.mxu0
    %648 = vdwg.mxu0
    %v650 = vunpack.c.l.b16 %v379
    %v651 = vpack.c.b16 %v650, %v650
    %652 = vrot.lane.b32.xlu0 %v651, 96
    %v653 = vpop.permute.xlu0 %652
    %v655 = vsel %vm389, %v379, 0
    %v658 = vsel %vm389, %v653, 0
    %660 = vmatpush.bf16.xpose.msra.mxu0 0
    %661 = vmatpush.bf16.xpose.msra.mxu0 0
    %662 = vmatpush.bf16.xpose.msra.mxu0 0
    %663 = vmatpush.bf16.xpose.msra.mxu0 0
    %664 = vmatpush.bf16.xpose.msra.mxu0 0
    %665 = vmatpush.bf16.xpose.msra.mxu0 0
    %666 = vmatpush.bf16.xpose.msra.mxu0 0
    %667 = vmatpush.bf16.xpose.msra.mxu0 %v658
    %668 = vmatmul.bf16.gmra.mxu0 %v655
    %v669 = vpop.f32.mrf.mxu0
    %v670 = vadd.f32 %v260, %v669
    %v671 = vpop.f32.mrf.mxu0
    %672 = vdwg.mxu0
    %v674 = vunpack.c.l.b16 %v380
    %v675 = vpack.c.b16 %v674, %v674
    %676 = vrot.lane.b32.xlu0 %v675, 96
    %v677 = vpop.permute.xlu0 %676
    %v679 = vsel %vm389, %v380, 0
    %v682 = vsel %vm389, %v677, 0
    %684 = vmatpush.bf16.xpose.msra.mxu0 0
    %685 = vmatpush.bf16.xpose.msra.mxu0 0
    %686 = vmatpush.bf16.xpose.msra.mxu0 0
    %687 = vmatpush.bf16.xpose.msra.mxu0 0
    %688 = vmatpush.bf16.xpose.msra.mxu0 0
    %689 = vmatpush.bf16.xpose.msra.mxu0 0
    %690 = vmatpush.bf16.xpose.msra.mxu0 0
    %691 = vmatpush.bf16.xpose.msra.mxu0 %v682
    %692 = vmatmul.bf16.gmra.mxu0 %v679
    %v693 = vpop.f32.mrf.mxu0
    %v694 = vadd.f32 %v260, %v693
    %v695 = vpop.f32.mrf.mxu0
    %696 = vdwg.mxu0
    %v698 = vunpack.c.l.b16 %v381
    %v699 = vpack.c.b16 %v698, %v698
    %700 = vrot.lane.b32.xlu0 %v699, 96
    %v701 = vpop.permute.xlu0 %700
    %v703 = vsel %vm389, %v381, 0
    %v706 = vsel %vm389, %v701, 0
    %708 = vmatpush.bf16.xpose.msra.mxu0 0
    %709 = vmatpush.bf16.xpose.msra.mxu0 0
    %710 = vmatpush.bf16.xpose.msra.mxu0 0
    %711 = vmatpush.bf16.xpose.msra.mxu0 0
    %712 = vmatpush.bf16.xpose.msra.mxu0 0
    %713 = vmatpush.bf16.xpose.msra.mxu0 0
    %714 = vmatpush.bf16.xpose.msra.mxu0 0
    %715 = vmatpush.bf16.xpose.msra.mxu0 %v706
    %716 = vmatmul.bf16.gmra.mxu0 %v703
    %v717 = vpop.f32.mrf.mxu0
    %v718 = vadd.f32 %v260, %v717
    %v719 = vpop.f32.mrf.mxu0
    %720 = vdwg.mxu0
    %v722 = vunpack.c.l.b16 %v382
    %v723 = vpack.c.b16 %v722, %v722
    %724 = vrot.lane.b32.xlu0 %v723, 96
    %v725 = vpop.permute.xlu0 %724
    %v727 = vsel %vm389, %v382, 0
    %v730 = vsel %vm389, %v725, 0
    %732 = vmatpush.bf16.xpose.msra.mxu0 0
    %733 = vmatpush.bf16.xpose.msra.mxu0 0
    %734 = vmatpush.bf16.xpose.msra.mxu0 0
    %735 = vmatpush.bf16.xpose.msra.mxu0 0
    %736 = vmatpush.bf16.xpose.msra.mxu0 0
    %737 = vmatpush.bf16.xpose.msra.mxu0 0
    %738 = vmatpush.bf16.xpose.msra.mxu0 0
    %739 = vmatpush.bf16.xpose.msra.mxu0 %v730
    %740 = vmatmul.bf16.gmra.mxu0 %v727
    %v741 = vpop.f32.mrf.mxu0
    %v742 = vadd.f32 %v260, %v741
    %v743 = vpop.f32.mrf.mxu0
    %744 = vdwg.mxu0
    %v746 = vunpack.c.l.b16 %v383
    %v747 = vpack.c.b16 %v746, %v746
    %748 = vrot.lane.b32.xlu0 %v747, 96
    %v749 = vpop.permute.xlu0 %748
    %v751 = vsel %vm389, %v383, 0
    %v754 = vsel %vm389, %v749, 0
    %756 = vmatpush.bf16.xpose.msra.mxu0 0
    %757 = vmatpush.bf16.xpose.msra.mxu0 0
    %758 = vmatpush.bf16.xpose.msra.mxu0 0
    %759 = vmatpush.bf16.xpose.msra.mxu0 0
    %760 = vmatpush.bf16.xpose.msra.mxu0 0
    %761 = vmatpush.bf16.xpose.msra.mxu0 0
    %762 = vmatpush.bf16.xpose.msra.mxu0 0
    %763 = vmatpush.bf16.xpose.msra.mxu0 %v754
    %764 = vmatmul.bf16.gmra.mxu0 %v751
    %v765 = vpop.f32.mrf.mxu0
    %v766 = vadd.f32 %v260, %v765
    %v767 = vpop.f32.mrf.mxu0
    %768 = vdwg.mxu0
    %v769 = vmul.f32 %v406, 1.442695
    %v770 = vpow.pop %v769
    %v771 = vmul.f32 %v430, 1.442695
    %v772 = vpow.pop %v771
    %v773 = vmul.f32 %v454, 1.442695
    %v774 = vpow.pop %v773
    %v775 = vmul.f32 %v478, 1.442695
    %v776 = vpow.pop %v775
    %v777 = vmul.f32 %v502, 1.442695
    %v778 = vpow.pop %v777
    %v779 = vmul.f32 %v526, 1.442695
    %v780 = vpow.pop %v779
    %v781 = vmul.f32 %v550, 1.442695
    %v782 = vpow.pop %v781
    %v783 = vmul.f32 %v574, 1.442695
    %v784 = vpow.pop %v783
    %v785 = vmul.f32 %v598, 1.442695
    %v786 = vpow.pop %v785
    %v787 = vmul.f32 %v622, 1.442695
    %v788 = vpow.pop %v787
    %v789 = vmul.f32 %v646, 1.442695
    %v790 = vpow.pop %v789
    %v791 = vmul.f32 %v670, 1.442695
    %v792 = vpow.pop %v791
    %v793 = vmul.f32 %v694, 1.442695
    %v794 = vpow.pop %v793
    %v795 = vmul.f32 %v718, 1.442695
    %v796 = vpow.pop %v795
    %v797 = vmul.f32 %v742, 1.442695
    %v798 = vpow.pop %v797
    %v799 = vmul.f32 %v766, 1.442695
    %v800 = vpow.pop %v799
    %vm801 = vcmask 64512
    %v802 = vsel %vm801, %v770, 0.0
    %803 = vadd.xlane.f32.xlu0 %v802
    %v804 = vpop.xlane.xlu0 %803
    %v805 = vsel %vm801, %v772, 0.0
    %806 = vadd.xlane.f32.xlu0 %v805
    %v807 = vpop.xlane.xlu0 %806
    %v808 = vsel %vm801, %v774, 0.0
    %809 = vadd.xlane.f32.xlu0 %v808
    %v810 = vpop.xlane.xlu0 %809
    %v811 = vsel %vm801, %v776, 0.0
    %812 = vadd.xlane.f32.xlu0 %v811
    %v813 = vpop.xlane.xlu0 %812
    %v814 = vsel %vm801, %v778, 0.0
    %815 = vadd.xlane.f32.xlu0 %v814
    %v816 = vpop.xlane.xlu0 %815
    %v817 = vsel %vm801, %v780, 0.0
    %818 = vadd.xlane.f32.xlu0 %v817
    %v819 = vpop.xlane.xlu0 %818
    %v820 = vsel %vm801, %v782, 0.0
    %821 = vadd.xlane.f32.xlu0 %v820
    %v822 = vpop.xlane.xlu0 %821
    %v823 = vsel %vm801, %v784, 0.0
    %824 = vadd.xlane.f32.xlu0 %v823
    %v825 = vpop.xlane.xlu0 %824
    %v826 = vsel %vm801, %v786, 0.0
    %827 = vadd.xlane.f32.xlu0 %v826
    %v828 = vpop.xlane.xlu0 %827
    %v829 = vsel %vm801, %v788, 0.0
    %830 = vadd.xlane.f32.xlu0 %v829
    %v831 = vpop.xlane.xlu0 %830
    %v832 = vsel %vm801, %v790, 0.0
    %833 = vadd.xlane.f32.xlu0 %v832
    %v834 = vpop.xlane.xlu0 %833
    %v835 = vsel %vm801, %v792, 0.0
    %836 = vadd.xlane.f32.xlu0 %v835
    %v837 = vpop.xlane.xlu0 %836
    %v838 = vsel %vm801, %v794, 0.0
    %839 = vadd.xlane.f32.xlu0 %v838
    %v840 = vpop.xlane.xlu0 %839
    %v841 = vsel %vm801, %v796, 0.0
    %842 = vadd.xlane.f32.xlu0 %v841
    %v843 = vpop.xlane.xlu0 %842
    %v844 = vsel %vm801, %v798, 0.0
    %845 = vadd.xlane.f32.xlu0 %v844
    %v846 = vpop.xlane.xlu0 %845
    %v847 = vsel %vm801, %v800, 0.0
    %848 = vadd.xlane.f32.xlu0 %v847
    %v849 = vpop.xlane.xlu0 %848
    %v850 = vrcp.pop %v804
    %v851 = vrcp.pop %v807
    %v852 = vrcp.pop %v810
    %v853 = vrcp.pop %v813
    %v854 = vrcp.pop %v816
    %v855 = vrcp.pop %v819
    %v856 = vrcp.pop %v822
    %v857 = vrcp.pop %v825
    %v858 = vrcp.pop %v828
    %v859 = vrcp.pop %v831
    %v860 = vrcp.pop %v834
    %v861 = vrcp.pop %v837
    %v862 = vrcp.pop %v840
    %v863 = vrcp.pop %v843
    %v864 = vrcp.pop %v846
    %v865 = vrcp.pop %v849
    %v866 = vmul.f32 %v770, %v850
    %v867 = vmul.f32 %v772, %v851
    %v868 = vmul.f32 %v774, %v852
    %v869 = vmul.f32 %v776, %v853
    %v870 = vmul.f32 %v778, %v854
    %v871 = vmul.f32 %v780, %v855
    %v872 = vmul.f32 %v782, %v856
    %v873 = vmul.f32 %v784, %v857
    %v874 = vmul.f32 %v786, %v858
    %v875 = vmul.f32 %v788, %v859
    %v876 = vmul.f32 %v790, %v860
    %v877 = vmul.f32 %v792, %v861
    %v878 = vmul.f32 %v794, %v862
    %v879 = vmul.f32 %v796, %v863
    %v880 = vmul.f32 %v798, %v864
    %v881 = vmul.f32 %v800, %v865
    %v882 = vpack.c.bf16 %v866, %v866
    %v883 = vpack.c.bf16 %v867, %v867
    %v884 = vpack.c.bf16 %v868, %v868
    %v885 = vpack.c.bf16 %v869, %v869
    %v886 = vpack.c.bf16 %v870, %v870
    %v887 = vpack.c.bf16 %v871, %v871
    %v888 = vpack.c.bf16 %v872, %v872
    %v889 = vpack.c.bf16 %v873, %v873
    %v890 = vpack.c.bf16 %v874, %v874
    %v891 = vpack.c.bf16 %v875, %v875
    %v892 = vpack.c.bf16 %v876, %v876
    %v893 = vpack.c.bf16 %v877, %v877
    %v894 = vpack.c.bf16 %v878, %v878
    %v895 = vpack.c.bf16 %v879, %v879
    %v896 = vpack.c.bf16 %v880, %v880
    %v897 = vpack.c.bf16 %v881, %v881
    %898 = vrot.lane.b32.xlu0 %v386, 64
    %v899 = vpop.permute.xlu0 %898
    %v901 = vsel %vm801, %v882, 0
    %vm903 = vcmask 1043456
    %v905 = vsel %vm903, %v899, 0
    %907 = vmatpush.bf16.msra.mxu0 0
    %908 = vmatpush.bf16.msra.mxu0 0
    %909 = vmatpush.bf16.msra.mxu0 0
    %910 = vmatpush.bf16.msra.mxu0 0
    %911 = vmatpush.bf16.msra.mxu0 0
    %912 = vmatpush.bf16.msra.mxu0 0
    %913 = vmatpush.bf16.msra.mxu0 0
    %914 = vmatpush.bf16.msra.mxu0 %v905
    %915 = vmatmul.bf16.gmra.mxu0 %v901
    %v916 = vpop.f32.mrf.mxu0
    %v917 = vadd.f32 0.0, %v916
    %v918 = vpop.f32.mrf.mxu0
    %919 = vdwg.mxu0
    %920 = vrot.lane.b32.xlu0 %v411, 64
    %v921 = vpop.permute.xlu0 %920
    %v923 = vsel %vm801, %v883, 0
    %v926 = vsel %vm903, %v921, 0
    %928 = vmatpush.bf16.msra.mxu0 0
    %929 = vmatpush.bf16.msra.mxu0 0
    %930 = vmatpush.bf16.msra.mxu0 0
    %931 = vmatpush.bf16.msra.mxu0 0
    %932 = vmatpush.bf16.msra.mxu0 0
    %933 = vmatpush.bf16.msra.mxu0 0
    %934 = vmatpush.bf16.msra.mxu0 0
    %935 = vmatpush.bf16.msra.mxu0 %v926
    %936 = vmatmul.bf16.gmra.mxu0 %v923
    %v937 = vpop.f32.mrf.mxu0
    %v938 = vadd.f32 0.0, %v937
    %v939 = vpop.f32.mrf.mxu0
    %940 = vdwg.mxu0
    %941 = vrot.lane.b32.xlu0 %v435, 64
    %v942 = vpop.permute.xlu0 %941
    %v944 = vsel %vm801, %v884, 0
    %v947 = vsel %vm903, %v942, 0
    %949 = vmatpush.bf16.msra.mxu0 0
    %950 = vmatpush.bf16.msra.mxu0 0
    %951 = vmatpush.bf16.msra.mxu0 0
    %952 = vmatpush.bf16.msra.mxu0 0
    %953 = vmatpush.bf16.msra.mxu0 0
    %954 = vmatpush.bf16.msra.mxu0 0
    %955 = vmatpush.bf16.msra.mxu0 0
    %956 = vmatpush.bf16.msra.mxu0 %v947
    %957 = vmatmul.bf16.gmra.mxu0 %v944
    %v958 = vpop.f32.mrf.mxu0
    %v959 = vadd.f32 0.0, %v958
    %v960 = vpop.f32.mrf.mxu0
    %961 = vdwg.mxu0
    %962 = vrot.lane.b32.xlu0 %v459, 64
    %v963 = vpop.permute.xlu0 %962
    %v965 = vsel %vm801, %v885, 0
    %v968 = vsel %vm903, %v963, 0
    %970 = vmatpush.bf16.msra.mxu0 0
    %971 = vmatpush.bf16.msra.mxu0 0
    %972 = vmatpush.bf16.msra.mxu0 0
    %973 = vmatpush.bf16.msra.mxu0 0
    %974 = vmatpush.bf16.msra.mxu0 0
    %975 = vmatpush.bf16.msra.mxu0 0
    %976 = vmatpush.bf16.msra.mxu0 0
    %977 = vmatpush.bf16.msra.mxu0 %v968
    %978 = vmatmul.bf16.gmra.mxu0 %v965
    %v979 = vpop.f32.mrf.mxu0
    %v980 = vadd.f32 0.0, %v979
    %v981 = vpop.f32.mrf.mxu0
    %982 = vdwg.mxu0
    %983 = vrot.lane.b32.xlu0 %v483, 64
    %v984 = vpop.permute.xlu0 %983
    %v986 = vsel %vm801, %v886, 0
    %v989 = vsel %vm903, %v984, 0
    %991 = vmatpush.bf16.msra.mxu0 0
    %992 = vmatpush.bf16.msra.mxu0 0
    %993 = vmatpush.bf16.msra.mxu0 0
    %994 = vmatpush.bf16.msra.mxu0 0
    %995 = vmatpush.bf16.msra.mxu0 0
    %996 = vmatpush.bf16.msra.mxu0 0
    %997 = vmatpush.bf16.msra.mxu0 0
    %998 = vmatpush.bf16.msra.mxu0 %v989
    %999 = vmatmul.bf16.gmra.mxu0 %v986
    %v1000 = vpop.f32.mrf.mxu0
    %v1001 = vadd.f32 0.0, %v1000
    %v1002 = vpop.f32.mrf.mxu0
    %1003 = vdwg.mxu0
    %1004 = vrot.lane.b32.xlu0 %v507, 64
    %v1005 = vpop.permute.xlu0 %1004
    %v1007 = vsel %vm801, %v887, 0
    %v1010 = vsel %vm903, %v1005, 0
    %1012 = vmatpush.bf16.msra.mxu0 0
    %1013 = vmatpush.bf16.msra.mxu0 0
    %1014 = vmatpush.bf16.msra.mxu0 0
    %1015 = vmatpush.bf16.msra.mxu0 0
    %1016 = vmatpush.bf16.msra.mxu0 0
    %1017 = vmatpush.bf16.msra.mxu0 0
    %1018 = vmatpush.bf16.msra.mxu0 0
    %1019 = vmatpush.bf16.msra.mxu0 %v1010
    %1020 = vmatmul.bf16.gmra.mxu0 %v1007
    %v1021 = vpop.f32.mrf.mxu0
    %v1022 = vadd.f32 0.0, %v1021
    %v1023 = vpop.f32.mrf.mxu0
    %1024 = vdwg.mxu0
    %1025 = vrot.lane.b32.xlu0 %v531, 64
    %v1026 = vpop.permute.xlu0 %1025
    %v1028 = vsel %vm801, %v888, 0
    %v1031 = vsel %vm903, %v1026, 0
    %1033 = vmatpush.bf16.msra.mxu0 0
    %1034 = vmatpush.bf16.msra.mxu0 0
    %1035 = vmatpush.bf16.msra.mxu0 0
    %1036 = vmatpush.bf16.msra.mxu0 0
    %1037 = vmatpush.bf16.msra.mxu0 0
    %1038 = vmatpush.bf16.msra.mxu0 0
    %1039 = vmatpush.bf16.msra.mxu0 0
    %1040 = vmatpush.bf16.msra.mxu0 %v1031
    %1041 = vmatmul.bf16.gmra.mxu0 %v1028
    %v1042 = vpop.f32.mrf.mxu0
    %v1043 = vadd.f32 0.0, %v1042
    %v1044 = vpop.f32.mrf.mxu0
    %1045 = vdwg.mxu0
    %1046 = vrot.lane.b32.xlu0 %v555, 64
    %v1047 = vpop.permute.xlu0 %1046
    %v1049 = vsel %vm801, %v889, 0
    %v1052 = vsel %vm903, %v1047, 0
    %1054 = vmatpush.bf16.msra.mxu0 0
    %1055 = vmatpush.bf16.msra.mxu0 0
    %1056 = vmatpush.bf16.msra.mxu0 0
    %1057 = vmatpush.bf16.msra.mxu0 0
    %1058 = vmatpush.bf16.msra.mxu0 0
    %1059 = vmatpush.bf16.msra.mxu0 0
    %1060 = vmatpush.bf16.msra.mxu0 0
    %1061 = vmatpush.bf16.msra.mxu0 %v1052
    %1062 = vmatmul.bf16.gmra.mxu0 %v1049
    %v1063 = vpop.f32.mrf.mxu0
    %v1064 = vadd.f32 0.0, %v1063
    %v1065 = vpop.f32.mrf.mxu0
    %1066 = vdwg.mxu0
    %1067 = vrot.lane.b32.xlu0 %v579, 64
    %v1068 = vpop.permute.xlu0 %1067
    %v1070 = vsel %vm801, %v890, 0
    %v1073 = vsel %vm903, %v1068, 0
    %1075 = vmatpush.bf16.msra.mxu0 0
    %1076 = vmatpush.bf16.msra.mxu0 0
    %1077 = vmatpush.bf16.msra.mxu0 0
    %1078 = vmatpush.bf16.msra.mxu0 0
    %1079 = vmatpush.bf16.msra.mxu0 0
    %1080 = vmatpush.bf16.msra.mxu0 0
    %1081 = vmatpush.bf16.msra.mxu0 0
    %1082 = vmatpush.bf16.msra.mxu0 %v1073
    %1083 = vmatmul.bf16.gmra.mxu0 %v1070
    %v1084 = vpop.f32.mrf.mxu0
    %v1085 = vadd.f32 0.0, %v1084
    %v1086 = vpop.f32.mrf.mxu0
    %1087 = vdwg.mxu0
    %1088 = vrot.lane.b32.xlu0 %v603, 64
    %v1089 = vpop.permute.xlu0 %1088
    %v1091 = vsel %vm801, %v891, 0
    %v1094 = vsel %vm903, %v1089, 0
    %1096 = vmatpush.bf16.msra.mxu0 0
    %1097 = vmatpush.bf16.msra.mxu0 0
    %1098 = vmatpush.bf16.msra.mxu0 0
    %1099 = vmatpush.bf16.msra.mxu0 0
    %1100 = vmatpush.bf16.msra.mxu0 0
    %1101 = vmatpush.bf16.msra.mxu0 0
    %1102 = vmatpush.bf16.msra.mxu0 0
    %1103 = vmatpush.bf16.msra.mxu0 %v1094
    %1104 = vmatmul.bf16.gmra.mxu0 %v1091
    %v1105 = vpop.f32.mrf.mxu0
    %v1106 = vadd.f32 0.0, %v1105
    %v1107 = vpop.f32.mrf.mxu0
    %1108 = vdwg.mxu0
    %1109 = vrot.lane.b32.xlu0 %v627, 64
    %v1110 = vpop.permute.xlu0 %1109
    %v1112 = vsel %vm801, %v892, 0
    %v1115 = vsel %vm903, %v1110, 0
    %1117 = vmatpush.bf16.msra.mxu0 0
    %1118 = vmatpush.bf16.msra.mxu0 0
    %1119 = vmatpush.bf16.msra.mxu0 0
    %1120 = vmatpush.bf16.msra.mxu0 0
    %1121 = vmatpush.bf16.msra.mxu0 0
    %1122 = vmatpush.bf16.msra.mxu0 0
    %1123 = vmatpush.bf16.msra.mxu0 0
    %1124 = vmatpush.bf16.msra.mxu0 %v1115
    %1125 = vmatmul.bf16.gmra.mxu0 %v1112
    %v1126 = vpop.f32.mrf.mxu0
    %v1127 = vadd.f32 0.0, %v1126
    %v1128 = vpop.f32.mrf.mxu0
    %1129 = vdwg.mxu0
    %1130 = vrot.lane.b32.xlu0 %v651, 64
    %v1131 = vpop.permute.xlu0 %1130
    %v1133 = vsel %vm801, %v893, 0
    %v1136 = vsel %vm903, %v1131, 0
    %1138 = vmatpush.bf16.msra.mxu0 0
    %1139 = vmatpush.bf16.msra.mxu0 0
    %1140 = vmatpush.bf16.msra.mxu0 0
    %1141 = vmatpush.bf16.msra.mxu0 0
    %1142 = vmatpush.bf16.msra.mxu0 0
    %1143 = vmatpush.bf16.msra.mxu0 0
    %1144 = vmatpush.bf16.msra.mxu0 0
    %1145 = vmatpush.bf16.msra.mxu0 %v1136
    %1146 = vmatmul.bf16.gmra.mxu0 %v1133
    %v1147 = vpop.f32.mrf.mxu0
    %v1148 = vadd.f32 0.0, %v1147
    %v1149 = vpop.f32.mrf.mxu0
    %1150 = vdwg.mxu0
    %1151 = vrot.lane.b32.xlu0 %v675, 64
    %v1152 = vpop.permute.xlu0 %1151
    %v1154 = vsel %vm801, %v894, 0
    %v1157 = vsel %vm903, %v1152, 0
    %1159 = vmatpush.bf16.msra.mxu0 0
    %1160 = vmatpush.bf16.msra.mxu0 0
    %1161 = vmatpush.bf16.msra.mxu0 0
    %1162 = vmatpush.bf16.msra.mxu0 0
    %1163 = vmatpush.bf16.msra.mxu0 0
    %1164 = vmatpush.bf16.msra.mxu0 0
    %1165 = vmatpush.bf16.msra.mxu0 0
    %1166 = vmatpush.bf16.msra.mxu0 %v1157
    %1167 = vmatmul.bf16.gmra.mxu0 %v1154
    %v1168 = vpop.f32.mrf.mxu0
    %v1169 = vadd.f32 0.0, %v1168
    %v1170 = vpop.f32.mrf.mxu0
    %1171 = vdwg.mxu0
    %1172 = vrot.lane.b32.xlu0 %v699, 64
    %v1173 = vpop.permute.xlu0 %1172
    %v1175 = vsel %vm801, %v895, 0
    %v1178 = vsel %vm903, %v1173, 0
    %1180 = vmatpush.bf16.msra.mxu0 0
    %1181 = vmatpush.bf16.msra.mxu0 0
    %1182 = vmatpush.bf16.msra.mxu0 0
    %1183 = vmatpush.bf16.msra.mxu0 0
    %1184 = vmatpush.bf16.msra.mxu0 0
    %1185 = vmatpush.bf16.msra.mxu0 0
    %1186 = vmatpush.bf16.msra.mxu0 0
    %1187 = vmatpush.bf16.msra.mxu0 %v1178
    %1188 = vmatmul.bf16.gmra.mxu0 %v1175
    %v1189 = vpop.f32.mrf.mxu0
    %v1190 = vadd.f32 0.0, %v1189
    %v1191 = vpop.f32.mrf.mxu0
    %1192 = vdwg.mxu0
    %1193 = vrot.lane.b32.xlu0 %v723, 64
    %v1194 = vpop.permute.xlu0 %1193
    %v1196 = vsel %vm801, %v896, 0
    %v1199 = vsel %vm903, %v1194, 0
    %1201 = vmatpush.bf16.msra.mxu0 0
    %1202 = vmatpush.bf16.msra.mxu0 0
    %1203 = vmatpush.bf16.msra.mxu0 0
    %1204 = vmatpush.bf16.msra.mxu0 0
    %1205 = vmatpush.bf16.msra.mxu0 0
    %1206 = vmatpush.bf16.msra.mxu0 0
    %1207 = vmatpush.bf16.msra.mxu0 0
    %1208 = vmatpush.bf16.msra.mxu0 %v1199
    %1209 = vmatmul.bf16.gmra.mxu0 %v1196
    %v1210 = vpop.f32.mrf.mxu0
    %v1211 = vadd.f32 0.0, %v1210
    %v1212 = vpop.f32.mrf.mxu0
    %1213 = vdwg.mxu0
    %1214 = vrot.lane.b32.xlu0 %v747, 64
    %v1215 = vpop.permute.xlu0 %1214
    %v1217 = vsel %vm801, %v897, 0
    %v1220 = vsel %vm903, %v1215, 0
    %1222 = vmatpush.bf16.msra.mxu0 0
    %1223 = vmatpush.bf16.msra.mxu0 0
    %1224 = vmatpush.bf16.msra.mxu0 0
    %1225 = vmatpush.bf16.msra.mxu0 0
    %1226 = vmatpush.bf16.msra.mxu0 0
    %1227 = vmatpush.bf16.msra.mxu0 0
    %1228 = vmatpush.bf16.msra.mxu0 0
    %1229 = vmatpush.bf16.msra.mxu0 %v1220
    %1230 = vmatmul.bf16.gmra.mxu0 %v1217
    %v1231 = vpop.f32.mrf.mxu0
    %v1232 = vadd.f32 0.0, %v1231
    %v1233 = vpop.f32.mrf.mxu0
    %1234 = vdwg.mxu0
    %v1235 = vpack.c.bf16 %v938, %v917
    %v1236 = vpack.c.bf16 %v980, %v959
    %v1237 = vpack.c.bf16 %v1022, %v1001
    %v1238 = vpack.c.bf16 %v1064, %v1043
    %v1239 = vpack.c.bf16 %v271, %v270
    %v1241 = vsel %vm389, %v1235, 0
    %v1244 = vsel %vm389, %v1236, 0
    %v1247 = vsel %vm389, %v1237, 0
    %v1250 = vsel %vm389, %v1238, 0
    %1252 = vmatpush.bf16.msra.mxu0 0
    %1253 = vmatpush.bf16.msra.mxu0 0
    %1254 = vmatpush.bf16.msra.mxu0 0
    %1255 = vmatpush.bf16.msra.mxu0 0
    %1256 = vmatpush.bf16.msra.mxu0 0
    %1257 = vmatpush.bf16.msra.mxu0 0
    %1258 = vmatpush.bf16.msra.mxu0 0
    %1259 = vmatpush.bf16.msra.mxu0 %v1239
    %1260 = vmatmul.bf16.gmra.mxu0 %v1241
    %v1261 = vpop.f32.mrf.mxu0
    %v1262 = vadd.f32 0.0, %v1261
    %v1263 = vpop.f32.mrf.mxu0
    %v1264 = vadd.f32 0.0, %v1263
    %1265 = vmatmul.bf16.gmra.mxu0 %v1244
    %v1266 = vpop.f32.mrf.mxu0
    %v1267 = vadd.f32 0.0, %v1266
    %v1268 = vpop.f32.mrf.mxu0
    %v1269 = vadd.f32 0.0, %v1268
    %1270 = vmatmul.bf16.gmra.mxu0 %v1247
    %v1271 = vpop.f32.mrf.mxu0
    %v1272 = vadd.f32 0.0, %v1271
    %v1273 = vpop.f32.mrf.mxu0
    %v1274 = vadd.f32 0.0, %v1273
    %1275 = vmatmul.bf16.gmra.mxu0 %v1250
    %v1276 = vpop.f32.mrf.mxu0
    %v1277 = vadd.f32 0.0, %v1276
    %v1278 = vpop.f32.mrf.mxu0
    %v1279 = vadd.f32 0.0, %v1278
    %1280 = vdwg.mxu0
    %v1281 = vperm.slane %v286, 2
    %v1282 = vadd.f32 %v1281, %v1262
    %v1283 = vadd.f32 %v1281, %v1264
    %v1284 = vadd.f32 %v1281, %v1267
    %v1285 = vadd.f32 %v1281, %v1269
    %v1286 = vadd.f32 %v1281, %v1272
    %v1287 = vadd.f32 %v1281, %v1274
    %v1288 = vadd.f32 %v1281, %v1277
    %v1289 = vadd.f32 %v1281, %v1279
    %v1290 = vpack.c.bf16 %v1106, %v1085
    %v1291 = vpack.c.bf16 %v1148, %v1127
    %v1292 = vpack.c.bf16 %v1190, %v1169
    %v1293 = vpack.c.bf16 %v1232, %v1211
    %v1294 = vpack.c.bf16 %v273, %v272
    %v1296 = vsel %vm389, %v1290, 0
    %v1299 = vsel %vm389, %v1291, 0
    %v1302 = vsel %vm389, %v1292, 0
    %v1305 = vsel %vm389, %v1293, 0
    %1307 = vmatpush.bf16.msra.mxu0 0
    %1308 = vmatpush.bf16.msra.mxu0 0
    %1309 = vmatpush.bf16.msra.mxu0 0
    %1310 = vmatpush.bf16.msra.mxu0 0
    %1311 = vmatpush.bf16.msra.mxu0 0
    %1312 = vmatpush.bf16.msra.mxu0 0
    %1313 = vmatpush.bf16.msra.mxu0 0
    %1314 = vmatpush.bf16.msra.mxu0 %v1294
    %1315 = vmatmul.bf16.gmra.mxu0 %v1296
    %v1316 = vpop.f32.mrf.mxu0
    %v1317 = vadd.f32 0.0, %v1316
    %v1318 = vpop.f32.mrf.mxu0
    %v1319 = vadd.f32 0.0, %v1318
    %1320 = vmatmul.bf16.gmra.mxu0 %v1299
    %v1321 = vpop.f32.mrf.mxu0
    %v1322 = vadd.f32 0.0, %v1321
    %v1323 = vpop.f32.mrf.mxu0
    %v1324 = vadd.f32 0.0, %v1323
    %1325 = vmatmul.bf16.gmra.mxu0 %v1302
    %v1326 = vpop.f32.mrf.mxu0
    %v1327 = vadd.f32 0.0, %v1326
    %v1328 = vpop.f32.mrf.mxu0
    %v1329 = vadd.f32 0.0, %v1328
    %1330 = vmatmul.bf16.gmra.mxu0 %v1305
    %v1331 = vpop.f32.mrf.mxu0
    %v1332 = vadd.f32 0.0, %v1331
    %v1333 = vpop.f32.mrf.mxu0
    %v1334 = vadd.f32 0.0, %v1333
    %1335 = vdwg.mxu0
    %v1336 = vadd.f32 %v1282, %v1317
    %v1337 = vadd.f32 %v1283, %v1319
    %v1338 = vadd.f32 %v1284, %v1322
    %v1339 = vadd.f32 %v1285, %v1324
    %v1340 = vadd.f32 %v1286, %v1327
    %v1341 = vadd.f32 %v1287, %v1329
    %v1342 = vadd.f32 %v1288, %v1332
    %v1343 = vadd.f32 %v1289, %v1334
    %v1344 = vadd.f32 %v252, %v1336
    %v1345 = vadd.f32 %v253, %v1337
    %v1346 = vadd.f32 %v254, %v1338
    %v1347 = vadd.f32 %v255, %v1339
    %v1348 = vadd.f32 %v256, %v1340
    %v1349 = vadd.f32 %v257, %v1341
    %v1350 = vadd.f32 %v258, %v1342
    %v1351 = vadd.f32 %v259, %v1343
    %v1352 = vsel %vm294, %v1344, 0.0
    %1353 = vadd.xlane.f32.xlu0 %v1352
    %v1354 = vpop.xlane.xlu0 %1353
    %v1355 = vsel %vm294, %v1345, 0.0
    %1356 = vadd.xlane.f32.xlu0 %v1355
    %v1357 = vpop.xlane.xlu0 %1356
    %v1358 = vsel %vm294, %v1346, 0.0
    %1359 = vadd.xlane.f32.xlu0 %v1358
    %v1360 = vpop.xlane.xlu0 %1359
    %v1361 = vsel %vm294, %v1347, 0.0
    %1362 = vadd.xlane.f32.xlu0 %v1361
    %v1363 = vpop.xlane.xlu0 %1362
    %v1364 = vsel %vm294, %v1348, 0.0
    %1365 = vadd.xlane.f32.xlu0 %v1364
    %v1366 = vpop.xlane.xlu0 %1365
    %v1367 = vsel %vm294, %v1349, 0.0
    %1368 = vadd.xlane.f32.xlu0 %v1367
    %v1369 = vpop.xlane.xlu0 %1368
    %v1370 = vsel %vm294, %v1350, 0.0
    %1371 = vadd.xlane.f32.xlu0 %v1370
    %v1372 = vpop.xlane.xlu0 %1371
    %v1373 = vsel %vm294, %v1351, 0.0
    %1374 = vadd.xlane.f32.xlu0 %v1373
    %v1375 = vpop.xlane.xlu0 %1374
    %v1376 = vrcp.pop 32.0
    %v1377 = vmul.f32 32.0, %v1376
    %v1378 = vsub.f32 1.0, %v1377
    %v1379 = vmul.f32 %v1376, %v1378
    %v1380 = vadd.f32 %v1376, %v1379
    %vm1381 = vweird.f32 %v1376
    %v1382 = vsel %vm1381, %v1376, %v1380
    %v1383 = vmul.f32 %v1354, %v1382
    %v1384 = vmul.f32 %v1357, %v1382
    %v1385 = vmul.f32 %v1360, %v1382
    %v1386 = vmul.f32 %v1363, %v1382
    %v1387 = vmul.f32 %v1366, %v1382
    %v1388 = vmul.f32 %v1369, %v1382
    %v1389 = vmul.f32 %v1372, %v1382
    %v1390 = vmul.f32 %v1375, %v1382
    %v1391 = vsub.f32 %v1344, %v1383
    %v1392 = vsub.f32 %v1345, %v1384
    %v1393 = vsub.f32 %v1346, %v1385
    %v1394 = vsub.f32 %v1347, %v1386
    %v1395 = vsub.f32 %v1348, %v1387
    %v1396 = vsub.f32 %v1349, %v1388
    %v1397 = vsub.f32 %v1350, %v1389
    %v1398 = vsub.f32 %v1351, %v1390
    %v1399 = vmul.f32 %v1391, %v1391
    %v1400 = vmul.f32 %v1392, %v1392
    %v1401 = vmul.f32 %v1393, %v1393
    %v1402 = vmul.f32 %v1394, %v1394
    %v1403 = vmul.f32 %v1395, %v1395
    %v1404 = vmul.f32 %v1396, %v1396
    %v1405 = vmul.f32 %v1397, %v1397
    %v1406 = vmul.f32 %v1398, %v1398
    %v1407 = vsel %vm294, %v1399, 0.0
    %1408 = vadd.xlane.f32.xlu0 %v1407
    %v1409 = vpop.xlane.xlu0 %1408
    %v1410 = vsel %vm294, %v1400, 0.0
    %1411 = vadd.xlane.f32.xlu0 %v1410
    %v1412 = vpop.xlane.xlu0 %1411
    %v1413 = vsel %vm294, %v1401, 0.0
    %1414 = vadd.xlane.f32.xlu0 %v1413
    %v1415 = vpop.xlane.xlu0 %1414
    %v1416 = vsel %vm294, %v1402, 0.0
    %1417 = vadd.xlane.f32.xlu0 %v1416
    %v1418 = vpop.xlane.xlu0 %1417
    %v1419 = vsel %vm294, %v1403, 0.0
    %1420 = vadd.xlane.f32.xlu0 %v1419
    %v1421 = vpop.xlane.xlu0 %1420
    %v1422 = vsel %vm294, %v1404, 0.0
    %1423 = vadd.xlane.f32.xlu0 %v1422
    %v1424 = vpop.xlane.xlu0 %1423
    %v1425 = vsel %vm294, %v1405, 0.0
    %1426 = vadd.xlane.f32.xlu0 %v1425
    %v1427 = vpop.xlane.xlu0 %1426
    %v1428 = vsel %vm294, %v1406, 0.0
    %1429 = vadd.xlane.f32.xlu0 %v1428
    %v1430 = vpop.xlane.xlu0 %1429
    %v1431 = vmul.f32 %v1409, %v1382
    %v1432 = vmul.f32 %v1412, %v1382
    %v1433 = vmul.f32 %v1415, %v1382
    %v1434 = vmul.f32 %v1418, %v1382
    %v1435 = vmul.f32 %v1421, %v1382
    %v1436 = vmul.f32 %v1424, %v1382
    %v1437 = vmul.f32 %v1427, %v1382
    %v1438 = vmul.f32 %v1430, %v1382
    %v1439 = vadd.f32 %v1431, 1e-05
    %v1440 = vadd.f32 %v1432, 1e-05
    %v1441 = vadd.f32 %v1433, 1e-05
    %v1442 = vadd.f32 %v1434, 1e-05
    %v1443 = vadd.f32 %v1435, 1e-05
    %v1444 = vadd.f32 %v1436, 1e-05
    %v1445 = vadd.f32 %v1437, 1e-05
    %v1446 = vadd.f32 %v1438, 1e-05
    %v1447 = vrsqrt.pop %v1439
    %v1448 = vmul.f32 %v1447, %v1439
    %v1449 = vmul.f32 %v1448, %v1447
    %v1450 = vmul.f32 0.5, %v1449
    %v1451 = vsub.f32 1.5, %v1450
    %v1452 = vmul.f32 %v1447, %v1451
    %vm1453 = vweird.f32 %v1439
    %vm1454 = vweird.f32 %v1447
    %vm1455 = vmor %vm1453, %vm1454
    %v1456 = vsel %vm1455, %v1447, %v1452
    %v1457 = vrsqrt.pop %v1440
    %v1458 = vmul.f32 %v1457, %v1440
    %v1459 = vmul.f32 %v1458, %v1457
    %v1460 = vmul.f32 0.5, %v1459
    %v1461 = vsub.f32 1.5, %v1460
    %v1462 = vmul.f32 %v1457, %v1461
    %vm1463 = vweird.f32 %v1440
    %vm1464 = vweird.f32 %v1457
    %vm1465 = vmor %vm1463, %vm1464
    %v1466 = vsel %vm1465, %v1457, %v1462
    %v1467 = vrsqrt.pop %v1441
    %v1468 = vmul.f32 %v1467, %v1441
    %v1469 = vmul.f32 %v1468, %v1467
    %v1470 = vmul.f32 0.5, %v1469
    %v1471 = vsub.f32 1.5, %v1470
    %v1472 = vmul.f32 %v1467, %v1471
    %vm1473 = vweird.f32 %v1441
    %vm1474 = vweird.f32 %v1467
    %vm1475 = vmor %vm1473, %vm1474
    %v1476 = vsel %vm1475, %v1467, %v1472
    %v1477 = vrsqrt.pop %v1442
    %v1478 = vmul.f32 %v1477, %v1442
    %v1479 = vmul.f32 %v1478, %v1477
    %v1480 = vmul.f32 0.5, %v1479
    %v1481 = vsub.f32 1.5, %v1480
    %v1482 = vmul.f32 %v1477, %v1481
    %vm1483 = vweird.f32 %v1442
    %vm1484 = vweird.f32 %v1477
    %vm1485 = vmor %vm1483, %vm1484
    %v1486 = vsel %vm1485, %v1477, %v1482
    %v1487 = vrsqrt.pop %v1443
    %v1488 = vmul.f32 %v1487, %v1443
    %v1489 = vmul.f32 %v1488, %v1487
    %v1490 = vmul.f32 0.5, %v1489
    %v1491 = vsub.f32 1.5, %v1490
    %v1492 = vmul.f32 %v1487, %v1491
    %vm1493 = vweird.f32 %v1443
    %vm1494 = vweird.f32 %v1487
    %vm1495 = vmor %vm1493, %vm1494
    %v1496 = vsel %vm1495, %v1487, %v1492
    %v1497 = vrsqrt.pop %v1444
    %v1498 = vmul.f32 %v1497, %v1444
    %v1499 = vmul.f32 %v1498, %v1497
    %v1500 = vmul.f32 0.5, %v1499
    %v1501 = vsub.f32 1.5, %v1500
    %v1502 = vmul.f32 %v1497, %v1501
    %vm1503 = vweird.f32 %v1444
    %vm1504 = vweird.f32 %v1497
    %vm1505 = vmor %vm1503, %vm1504
    %v1506 = vsel %vm1505, %v1497, %v1502
    %v1507 = vrsqrt.pop %v1445
    %v1508 = vmul.f32 %v1507, %v1445
    %v1509 = vmul.f32 %v1508, %v1507
    %v1510 = vmul.f32 0.5, %v1509
    %v1511 = vsub.f32 1.5, %v1510
    %v1512 = vmul.f32 %v1507, %v1511
    %vm1513 = vweird.f32 %v1445
    %vm1514 = vweird.f32 %v1507
    %vm1515 = vmor %vm1513, %vm1514
    %v1516 = vsel %vm1515, %v1507, %v1512
    %v1517 = vrsqrt.pop %v1446
    %v1518 = vmul.f32 %v1517, %v1446
    %v1519 = vmul.f32 %v1518, %v1517
    %v1520 = vmul.f32 0.5, %v1519
    %v1521 = vsub.f32 1.5, %v1520
    %v1522 = vmul.f32 %v1517, %v1521
    %vm1523 = vweird.f32 %v1446
    %vm1524 = vweird.f32 %v1517
    %vm1525 = vmor %vm1523, %vm1524
    %v1526 = vsel %vm1525, %v1517, %v1522
    %v1527 = vmul.f32 %v1391, %v1456
    %v1528 = vmul.f32 %v1392, %v1466
    %v1529 = vmul.f32 %v1393, %v1476
    %v1530 = vmul.f32 %v1394, %v1486
    %v1531 = vmul.f32 %v1395, %v1496
    %v1532 = vmul.f32 %v1396, %v1506
    %v1533 = vmul.f32 %v1397, %v1516
    %v1534 = vmul.f32 %v1398, %v1526
    %v1535 = vperm.slane %v286, 4
    %v1536 = vmul.f32 %v1527, %v1535
    %v1537 = vmul.f32 %v1528, %v1535
    %v1538 = vmul.f32 %v1529, %v1535
    %v1539 = vmul.f32 %v1530, %v1535
    %v1540 = vmul.f32 %v1531, %v1535
    %v1541 = vmul.f32 %v1532, %v1535
    %v1542 = vmul.f32 %v1533, %v1535
    %v1543 = vmul.f32 %v1534, %v1535
    %v1544 = vperm.slane %v286, 5
    %v1545 = vadd.f32 %v1536, %v1544
    %v1546 = vadd.f32 %v1537, %v1544
    %v1547 = vadd.f32 %v1538, %v1544
    %v1548 = vadd.f32 %v1539, %v1544
    %v1549 = vadd.f32 %v1540, %v1544
    %v1550 = vadd.f32 %v1541, %v1544
    %v1551 = vadd.f32 %v1542, %v1544
    %v1552 = vadd.f32 %v1543, %v1544
    %v1553 = vpack.c.bf16 %v1546, %v1545
    %v1554 = vpack.c.bf16 %v1548, %v1547
    %v1555 = vpack.c.bf16 %v1550, %v1549
    %v1556 = vpack.c.bf16 %v1552, %v1551
    %v1557 = vpack.c.bf16 %v275, %v274
    %v1558 = vpack.c.bf16 %v277, %v276
    %v1559 = vperm.slane %v286, 1
    %v1561 = vsel %vm294, %v1553, 0
    %v1564 = vsel %vm294, %v1554, 0
    %v1567 = vsel %vm294, %v1555, 0
    %v1570 = vsel %vm294, %v1556, 0
    %1572 = vmatpush.bf16.msra.mxu0 0
    %1573 = vmatpush.bf16.msra.mxu0 0
    %1574 = vmatpush.bf16.msra.mxu0 0
    %1575 = vmatpush.bf16.msra.mxu0 0
    %1576 = vmatpush.bf16.msra.mxu0 0
    %1577 = vmatpush.bf16.msra.mxu0 0
    %1578 = vmatpush.bf16.msra.mxu0 %v1558
    %1579 = vmatpush.bf16.msra.mxu0 %v1557
    %1580 = vmatmul.bf16.gmra.mxu0 %v1561
    %v1581 = vpop.f32.mrf.mxu0
    %v1582 = vadd.f32 %v1559, %v1581
    %v1583 = vpop.f32.mrf.mxu0
    %v1584 = vadd.f32 %v1559, %v1583
    %1585 = vmatmul.bf16.gmra.mxu0 %v1564
    %v1586 = vpop.f32.mrf.mxu0
    %v1587 = vadd.f32 %v1559, %v1586
    %v1588 = vpop.f32.mrf.mxu0
    %v1589 = vadd.f32 %v1559, %v1588
    %1590 = vmatmul.bf16.gmra.mxu0 %v1567
    %v1591 = vpop.f32.mrf.mxu0
    %v1592 = vadd.f32 %v1559, %v1591
    %v1593 = vpop.f32.mrf.mxu0
    %v1594 = vadd.f32 %v1559, %v1593
    %1595 = vmatmul.bf16.gmra.mxu0 %v1570
    %v1596 = vpop.f32.mrf.mxu0
    %v1597 = vadd.f32 %v1559, %v1596
    %v1598 = vpop.f32.mrf.mxu0
    %v1599 = vadd.f32 %v1559, %v1598
    %1600 = vdwg.mxu0
    %v1601 = vmul.f32 %v1582, 0.5
    %v1602 = vmul.f32 %v1584, 0.5
    %v1603 = vmul.f32 %v1587, 0.5
    %v1604 = vmul.f32 %v1589, 0.5
    %v1605 = vmul.f32 %v1592, 0.5
    %v1606 = vmul.f32 %v1594, 0.5
    %v1607 = vmul.f32 %v1597, 0.5
    %v1608 = vmul.f32 %v1599, 0.5
    %v1609 = vmul.f32 %v1582, 0.044715
    %v1610 = vmul.f32 %v1584, 0.044715
    %v1611 = vmul.f32 %v1587, 0.044715
    %v1612 = vmul.f32 %v1589, 0.044715
    %v1613 = vmul.f32 %v1592, 0.044715
    %v1614 = vmul.f32 %v1594, 0.044715
    %v1615 = vmul.f32 %v1597, 0.044715
    %v1616 = vmul.f32 %v1599, 0.044715
    %v1617 = vmul.f32 %v1609, %v1582
    %v1618 = vmul.f32 %v1610, %v1584
    %v1619 = vmul.f32 %v1611, %v1587
    %v1620 = vmul.f32 %v1612, %v1589
    %v1621 = vmul.f32 %v1613, %v1592
    %v1622 = vmul.f32 %v1614, %v1594
    %v1623 = vmul.f32 %v1615, %v1597
    %v1624 = vmul.f32 %v1616, %v1599
    %v1625 = vmul.f32 %v1617, %v1582
    %v1626 = vmul.f32 %v1618, %v1584
    %v1627 = vmul.f32 %v1619, %v1587
    %v1628 = vmul.f32 %v1620, %v1589
    %v1629 = vmul.f32 %v1621, %v1592
    %v1630 = vmul.f32 %v1622, %v1594
    %v1631 = vmul.f32 %v1623, %v1597
    %v1632 = vmul.f32 %v1624, %v1599
    %v1633 = vadd.f32 %v1582, %v1625
    %v1634 = vadd.f32 %v1584, %v1626
    %v1635 = vadd.f32 %v1587, %v1627
    %v1636 = vadd.f32 %v1589, %v1628
    %v1637 = vadd.f32 %v1592, %v1629
    %v1638 = vadd.f32 %v1594, %v1630
    %v1639 = vadd.f32 %v1597, %v1631
    %v1640 = vadd.f32 %v1599, %v1632
    %v1641 = vmul.f32 %v1633, 0.7978846
    %v1642 = vmul.f32 %v1634, 0.7978846
    %v1643 = vmul.f32 %v1635, 0.7978846
    %v1644 = vmul.f32 %v1636, 0.7978846
    %v1645 = vmul.f32 %v1637, 0.7978846
    %v1646 = vmul.f32 %v1638, 0.7978846
    %v1647 = vmul.f32 %v1639, 0.7978846
    %v1648 = vmul.f32 %v1640, 0.7978846
    %v1649 = vtanh.pop %v1641
    %v1650 = vtanh.pop %v1642
    %v1651 = vtanh.pop %v1643
    %v1652 = vtanh.pop %v1644
    %v1653 = vtanh.pop %v1645
    %v1654 = vtanh.pop %v1646
    %v1655 = vtanh.pop %v1647
    %v1656 = vtanh.pop %v1648
    %v1657 = vadd.f32 %v1649, 1.0
    %v1658 = vadd.f32 %v1650, 1.0
    %v1659 = vadd.f32 %v1651, 1.0
    %v1660 = vadd.f32 %v1652, 1.0
    %v1661 = vadd.f32 %v1653, 1.0
    %v1662 = vadd.f32 %v1654, 1.0
    %v1663 = vadd.f32 %v1655, 1.0
    %v1664 = vadd.f32 %v1656, 1.0
    %v1665 = vmul.f32 %v1601, %v1657
    %v1666 = vmul.f32 %v1602, %v1658
    %v1667 = vmul.f32 %v1603, %v1659
    %v1668 = vmul.f32 %v1604, %v1660
    %v1669 = vmul.f32 %v1605, %v1661
    %v1670 = vmul.f32 %v1606, %v1662
    %v1671 = vmul.f32 %v1607, %v1663
    %v1672 = vmul.f32 %v1608, %v1664
    %v1673 = vpack.c.bf16 %v1666, %v1665
    %v1674 = vpack.c.bf16 %v1668, %v1667
    %v1675 = vpack.c.bf16 %v1670, %v1669
    %v1676 = vpack.c.bf16 %v1672, %v1671
    %v1677 = vpack.c.bf16 %v279, %v278
    %v1678 = vpack.c.bf16 %v281, %v280
    %v1679 = vpack.c.bf16 %v283, %v282
    %v1680 = vpack.c.bf16 %v285, %v284
    %v1681 = vperm.slane %v286, 3
    %vm1682 = vcmask 523264
    %v1684 = vsel %vm1682, %v1673, 0
    %v1687 = vsel %vm1682, %v1674, 0
    %v1690 = vsel %vm1682, %v1675, 0
    %v1693 = vsel %vm1682, %v1676, 0
    %1695 = vmatpush.bf16.msra.mxu0 0
    %1696 = vmatpush.bf16.msra.mxu0 0
    %1697 = vmatpush.bf16.msra.mxu0 0
    %1698 = vmatpush.bf16.msra.mxu0 0
    %1699 = vmatpush.bf16.msra.mxu0 %v1680
    %1700 = vmatpush.bf16.msra.mxu0 %v1679
    %1701 = vmatpush.bf16.msra.mxu0 %v1678
    %1702 = vmatpush.bf16.msra.mxu0 %v1677
    %1703 = vmatmul.bf16.gmra.mxu0 %v1684
    %v1704 = vpop.f32.mrf.mxu0
    %v1705 = vadd.f32 %v1681, %v1704
    %v1706 = vpop.f32.mrf.mxu0
    %v1707 = vadd.f32 %v1681, %v1706
    %1708 = vmatmul.bf16.gmra.mxu0 %v1687
    %v1709 = vpop.f32.mrf.mxu0
    %v1710 = vadd.f32 %v1681, %v1709
    %v1711 = vpop.f32.mrf.mxu0
    %v1712 = vadd.f32 %v1681, %v1711
    %1713 = vmatmul.bf16.gmra.mxu0 %v1690
    %v1714 = vpop.f32.mrf.mxu0
    %v1715 = vadd.f32 %v1681, %v1714
    %v1716 = vpop.f32.mrf.mxu0
    %v1717 = vadd.f32 %v1681, %v1716
    %1718 = vmatmul.bf16.gmra.mxu0 %v1693
    %v1719 = vpop.f32.mrf.mxu0
    %v1720 = vadd.f32 %v1681, %v1719
    %v1721 = vpop.f32.mrf.mxu0
    %v1722 = vadd.f32 %v1681, %v1721
    %1723 = vdwg.mxu0
    %v1724 = vadd.f32 %v1545, %v1705
    %v1725 = vadd.f32 %v1546, %v1707
    %v1726 = vadd.f32 %v1547, %v1710
    %v1727 = vadd.f32 %v1548, %v1712
    %v1728 = vadd.f32 %v1549, %v1715
    %v1729 = vadd.f32 %v1550, %v1717
    %v1730 = vadd.f32 %v1551, %v1720
    %v1731 = vadd.f32 %v1552, %v1722
    %v1732 = vsel %vm294, %v1724, 0.0
    %1733 = vadd.xlane.f32.xlu0 %v1732
    %v1734 = vpop.xlane.xlu0 %1733
    %v1735 = vsel %vm294, %v1725, 0.0
    %1736 = vadd.xlane.f32.xlu0 %v1735
    %v1737 = vpop.xlane.xlu0 %1736
    %v1738 = vsel %vm294, %v1726, 0.0
    %1739 = vadd.xlane.f32.xlu0 %v1738
    %v1740 = vpop.xlane.xlu0 %1739
    %v1741 = vsel %vm294, %v1727, 0.0
    %1742 = vadd.xlane.f32.xlu0 %v1741
    %v1743 = vpop.xlane.xlu0 %1742
    %v1744 = vsel %vm294, %v1728, 0.0
    %1745 = vadd.xlane.f32.xlu0 %v1744
    %v1746 = vpop.xlane.xlu0 %1745
    %v1747 = vsel %vm294, %v1729, 0.0
    %1748 = vadd.xlane.f32.xlu0 %v1747
    %v1749 = vpop.xlane.xlu0 %1748
    %v1750 = vsel %vm294, %v1730, 0.0
    %1751 = vadd.xlane.f32.xlu0 %v1750
    %v1752 = vpop.xlane.xlu0 %1751
    %v1753 = vsel %vm294, %v1731, 0.0
    %1754 = vadd.xlane.f32.xlu0 %v1753
    %v1755 = vpop.xlane.xlu0 %1754
    %v1756 = vmul.f32 %v1734, %v1382
    %v1757 = vmul.f32 %v1737, %v1382
    %v1758 = vmul.f32 %v1740, %v1382
    %v1759 = vmul.f32 %v1743, %v1382
    %v1760 = vmul.f32 %v1746, %v1382
    %v1761 = vmul.f32 %v1749, %v1382
    %v1762 = vmul.f32 %v1752, %v1382
    %v1763 = vmul.f32 %v1755, %v1382
    %v1764 = vsub.f32 %v1724, %v1756
    %v1765 = vsub.f32 %v1725, %v1757
    %v1766 = vsub.f32 %v1726, %v1758
    %v1767 = vsub.f32 %v1727, %v1759
    %v1768 = vsub.f32 %v1728, %v1760
    %v1769 = vsub.f32 %v1729, %v1761
    %v1770 = vsub.f32 %v1730, %v1762
    %v1771 = vsub.f32 %v1731, %v1763
    %v1772 = vmul.f32 %v1764, %v1764
    %v1773 = vmul.f32 %v1765, %v1765
    %v1774 = vmul.f32 %v1766, %v1766
    %v1775 = vmul.f32 %v1767, %v1767
    %v1776 = vmul.f32 %v1768, %v1768
    %v1777 = vmul.f32 %v1769, %v1769
    %v1778 = vmul.f32 %v1770, %v1770
    %v1779 = vmul.f32 %v1771, %v1771
    %v1780 = vsel %vm294, %v1772, 0.0
    %1781 = vadd.xlane.f32.xlu0 %v1780
    %v1782 = vpop.xlane.xlu0 %1781
    %v1783 = vsel %vm294, %v1773, 0.0
    %1784 = vadd.xlane.f32.xlu0 %v1783
    %v1785 = vpop.xlane.xlu0 %1784
    %v1786 = vsel %vm294, %v1774, 0.0
    %1787 = vadd.xlane.f32.xlu0 %v1786
    %v1788 = vpop.xlane.xlu0 %1787
    %v1789 = vsel %vm294, %v1775, 0.0
    %1790 = vadd.xlane.f32.xlu0 %v1789
    %v1791 = vpop.xlane.xlu0 %1790
    %v1792 = vsel %vm294, %v1776, 0.0
    %1793 = vadd.xlane.f32.xlu0 %v1792
    %v1794 = vpop.xlane.xlu0 %1793
    %v1795 = vsel %vm294, %v1777, 0.0
    %1796 = vadd.xlane.f32.xlu0 %v1795
    %v1797 = vpop.xlane.xlu0 %1796
    %v1798 = vsel %vm294, %v1778, 0.0
    %1799 = vadd.xlane.f32.xlu0 %v1798
    %v1800 = vpop.xlane.xlu0 %1799
    %v1801 = vsel %vm294, %v1779, 0.0
    %1802 = vadd.xlane.f32.xlu0 %v1801
    %v1803 = vpop.xlane.xlu0 %1802
    %v1804 = vmul.f32 %v1782, %v1382
    %v1805 = vmul.f32 %v1785, %v1382
    %v1806 = vmul.f32 %v1788, %v1382
    %v1807 = vmul.f32 %v1791, %v1382
    %v1808 = vmul.f32 %v1794, %v1382
    %v1809 = vmul.f32 %v1797, %v1382
    %v1810 = vmul.f32 %v1800, %v1382
    %v1811 = vmul.f32 %v1803, %v1382
    %v1812 = vadd.f32 %v1804, 1e-05
    %v1813 = vadd.f32 %v1805, 1e-05
    %v1814 = vadd.f32 %v1806, 1e-05
    %v1815 = vadd.f32 %v1807, 1e-05
    %v1816 = vadd.f32 %v1808, 1e-05
    %v1817 = vadd.f32 %v1809, 1e-05
    %v1818 = vadd.f32 %v1810, 1e-05
    %v1819 = vadd.f32 %v1811, 1e-05
    %v1820 = vrsqrt.pop %v1812
    %v1821 = vmul.f32 %v1820, %v1812
    %v1822 = vmul.f32 %v1821, %v1820
    %v1823 = vmul.f32 0.5, %v1822
    %v1824 = vsub.f32 1.5, %v1823
    %v1825 = vmul.f32 %v1820, %v1824
    %vm1826 = vweird.f32 %v1812
    %vm1827 = vweird.f32 %v1820
    %vm1828 = vmor %vm1826, %vm1827
    %v1829 = vsel %vm1828, %v1820, %v1825
    %v1830 = vrsqrt.pop %v1813
    %v1831 = vmul.f32 %v1830, %v1813
    %v1832 = vmul.f32 %v1831, %v1830
    %v1833 = vmul.f32 0.5, %v1832
    %v1834 = vsub.f32 1.5, %v1833
    %v1835 = vmul.f32 %v1830, %v1834
    %vm1836 = vweird.f32 %v1813
    %vm1837 = vweird.f32 %v1830
    %vm1838 = vmor %vm1836, %vm1837
    %v1839 = vsel %vm1838, %v1830, %v1835
    %v1840 = vrsqrt.pop %v1814
    %v1841 = vmul.f32 %v1840, %v1814
    %v1842 = vmul.f32 %v1841, %v1840
    %v1843 = vmul.f32 0.5, %v1842
    %v1844 = vsub.f32 1.5, %v1843
    %v1845 = vmul.f32 %v1840, %v1844
    %vm1846 = vweird.f32 %v1814
    %vm1847 = vweird.f32 %v1840
    %vm1848 = vmor %vm1846, %vm1847
    %v1849 = vsel %vm1848, %v1840, %v1845
    %v1850 = vrsqrt.pop %v1815
    %v1851 = vmul.f32 %v1850, %v1815
    %v1852 = vmul.f32 %v1851, %v1850
    %v1853 = vmul.f32 0.5, %v1852
    %v1854 = vsub.f32 1.5, %v1853
    %v1855 = vmul.f32 %v1850, %v1854
    %vm1856 = vweird.f32 %v1815
    %vm1857 = vweird.f32 %v1850
    %vm1858 = vmor %vm1856, %vm1857
    %v1859 = vsel %vm1858, %v1850, %v1855
    %v1860 = vrsqrt.pop %v1816
    %v1861 = vmul.f32 %v1860, %v1816
    %v1862 = vmul.f32 %v1861, %v1860
    %v1863 = vmul.f32 0.5, %v1862
    %v1864 = vsub.f32 1.5, %v1863
    %v1865 = vmul.f32 %v1860, %v1864
    %vm1866 = vweird.f32 %v1816
    %vm1867 = vweird.f32 %v1860
    %vm1868 = vmor %vm1866, %vm1867
    %v1869 = vsel %vm1868, %v1860, %v1865
    %v1870 = vrsqrt.pop %v1817
    %v1871 = vmul.f32 %v1870, %v1817
    %v1872 = vmul.f32 %v1871, %v1870
    %v1873 = vmul.f32 0.5, %v1872
    %v1874 = vsub.f32 1.5, %v1873
    %v1875 = vmul.f32 %v1870, %v1874
    %vm1876 = vweird.f32 %v1817
    %vm1877 = vweird.f32 %v1870
    %vm1878 = vmor %vm1876, %vm1877
    %v1879 = vsel %vm1878, %v1870, %v1875
    %v1880 = vrsqrt.pop %v1818
    %v1881 = vmul.f32 %v1880, %v1818
    %v1882 = vmul.f32 %v1881, %v1880
    %v1883 = vmul.f32 0.5, %v1882
    %v1884 = vsub.f32 1.5, %v1883
    %v1885 = vmul.f32 %v1880, %v1884
    %vm1886 = vweird.f32 %v1818
    %vm1887 = vweird.f32 %v1880
    %vm1888 = vmor %vm1886, %vm1887
    %v1889 = vsel %vm1888, %v1880, %v1885
    %v1890 = vrsqrt.pop %v1819
    %v1891 = vmul.f32 %v1890, %v1819
    %v1892 = vmul.f32 %v1891, %v1890
    %v1893 = vmul.f32 0.5, %v1892
    %v1894 = vsub.f32 1.5, %v1893
    %v1895 = vmul.f32 %v1890, %v1894
    %vm1896 = vweird.f32 %v1819
    %vm1897 = vweird.f32 %v1890
    %vm1898 = vmor %vm1896, %vm1897
    %v1899 = vsel %vm1898, %v1890, %v1895
    %v1900 = vmul.f32 %v1764, %v1829
    %v1901 = vmul.f32 %v1765, %v1839
    %v1902 = vmul.f32 %v1766, %v1849
    %v1903 = vmul.f32 %v1767, %v1859
    %v1904 = vmul.f32 %v1768, %v1869
    %v1905 = vmul.f32 %v1769, %v1879
    %v1906 = vmul.f32 %v1770, %v1889
    %v1907 = vmul.f32 %v1771, %v1899
    %v1908 = vperm.slane %v286, 6
    %v1909 = vmul.f32 %v1900, %v1908
    %v1910 = vmul.f32 %v1901, %v1908
    %v1911 = vmul.f32 %v1902, %v1908
    %v1912 = vmul.f32 %v1903, %v1908
    %v1913 = vmul.f32 %v1904, %v1908
    %v1914 = vmul.f32 %v1905, %v1908
    %v1915 = vmul.f32 %v1906, %v1908
    %v1916 = vmul.f32 %v1907, %v1908
    %v1917 = vperm.slane %v286, 7
    %v1918 = vadd.f32 %v1909, %v1917
    %v1919 = vadd.f32 %v1910, %v1917
    %v1920 = vadd.f32 %v1911, %v1917
    %v1921 = vadd.f32 %v1912, %v1917
    %v1922 = vadd.f32 %v1913, %v1917
    %v1923 = vadd.f32 %v1914, %v1917
    %v1924 = vadd.f32 %v1915, %v1917
    %v1925 = vadd.f32 %v1916, %v1917
    %s1926 = scalar_lea.vmem %s4, 32
    %v1927 = vld [vmem:[%s1926] sm:$0xff]
    %v1928 = vld [vmem:[%s1926 + $0x8] sm:$0xff]
    %v1929 = vld [vmem:[%s1926 + $0x10] sm:$0xff]
    %v1930 = vld [vmem:[%s1926 + $0x18] sm:$0xff]
    %s1931 = scalar_lea.vmem %s5, 32
    %v1932 = vld [vmem:[%s1931] sm:$0xff]
    %v1933 = vld [vmem:[%s1931 + $0x8] sm:$0xff]
    %v1934 = vld [vmem:[%s1931 + $0x10] sm:$0xff]
    %v1935 = vld [vmem:[%s1931 + $0x18] sm:$0xff]
    %s1936 = scalar_lea.vmem %s6, 32
    %v1937 = vld [vmem:[%s1936] sm:$0xff]
    %v1938 = vld [vmem:[%s1936 + $0x8] sm:$0xff]
    %v1939 = vld [vmem:[%s1936 + $0x10] sm:$0xff]
    %v1940 = vld [vmem:[%s1936 + $0x18] sm:$0xff]
    %s1941 = scalar_lea.vmem %s7, 64
    %v1942 = vld [vmem:[%s1941] sm:$0xff]
    %v1943 = vld [vmem:[%s1941 + $0x8] sm:$0xff]
    %v1944 = vld [vmem:[%s1941 + $0x10] sm:$0xff]
    %v1945 = vld [vmem:[%s1941 + $0x18] sm:$0xff]
    %v1946 = vld [vmem:[%s1941 + $0x20] sm:$0xff]
    %v1947 = vld [vmem:[%s1941 + $0x28] sm:$0xff]
    %v1948 = vld [vmem:[%s1941 + $0x30] sm:$0xff]
    %v1949 = vld [vmem:[%s1941 + $0x38] sm:$0xff]
    %s1950 = scalar_lea.vmem [#allocation5], 8
    %v1951 = vld [vmem:[%s1950] sm:$0xff]
    %v1952 = vpack.c.bf16 %v1919, %v1918
    %v1953 = vpack.c.bf16 %v1921, %v1920
    %v1954 = vpack.c.bf16 %v1923, %v1922
    %v1955 = vpack.c.bf16 %v1925, %v1924
    %v1956 = vpack.c.bf16 %v1928, %v1927
    %v1957 = vpack.c.bf16 %v1930, %v1929
    %v1958 = vperm.slane %v1951, 0
    %v1960 = vsel %vm294, %v1952, 0
    %v1963 = vsel %vm294, %v1953, 0
    %v1966 = vsel %vm294, %v1954, 0
    %v1969 = vsel %vm294, %v1955, 0
    %1971 = vmatpush.bf16.msra.mxu0 0
    %1972 = vmatpush.bf16.msra.mxu0 0
    %1973 = vmatpush.bf16.msra.mxu0 0
    %1974 = vmatpush.bf16.msra.mxu0 0
    %1975 = vmatpush.bf16.msra.mxu0 0
    %1976 = vmatpush.bf16.msra.mxu0 0
    %1977 = vmatpush.bf16.msra.mxu0 %v1957
    %1978 = vmatpush.bf16.msra.mxu0 %v1956
    %1979 = vmatmul.bf16.gmra.mxu0 %v1960
    %v1980 = vpop.f32.mrf.mxu0
    %v1981 = vadd.f32 %v1958, %v1980
    %v1982 = vpop.f32.mrf.mxu0
    %v1983 = vadd.f32 %v1958, %v1982
    %1984 = vmatmul.bf16.gmra.mxu0 %v1963
    %v1985 = vpop.f32.mrf.mxu0
    %v1986 = vadd.f32 %v1958, %v1985
    %v1987 = vpop.f32.mrf.mxu0
    %v1988 = vadd.f32 %v1958, %v1987
    %1989 = vmatmul.bf16.gmra.mxu0 %v1966
    %v1990 = vpop.f32.mrf.mxu0
    %v1991 = vadd.f32 %v1958, %v1990
    %v1992 = vpop.f32.mrf.mxu0
    %v1993 = vadd.f32 %v1958, %v1992
    %1994 = vmatmul.bf16.gmra.mxu0 %v1969
    %v1995 = vpop.f32.mrf.mxu0
    %v1996 = vadd.f32 %v1958, %v1995
    %v1997 = vpop.f32.mrf.mxu0
    %v1998 = vadd.f32 %v1958, %v1997
    %1999 = vdwg.mxu0
    %2008 = vrot.lane.b32.xlu0 %v1981, 112
    %v2009 = vpop.permute.xlu0 %2008
    %2010 = vrot.lane.b32.xlu0 %v1983, 112
    %v2011 = vpop.permute.xlu0 %2010
    %2012 = vrot.lane.b32.xlu0 %v1986, 112
    %v2013 = vpop.permute.xlu0 %2012
    %2014 = vrot.lane.b32.xlu0 %v1988, 112
    %v2015 = vpop.permute.xlu0 %2014
    %2016 = vrot.lane.b32.xlu0 %v1991, 112
    %v2017 = vpop.permute.xlu0 %2016
    %2018 = vrot.lane.b32.xlu0 %v1993, 112
    %v2019 = vpop.permute.xlu0 %2018
    %2020 = vrot.lane.b32.xlu0 %v1996, 112
    %v2021 = vpop.permute.xlu0 %2020
    %2022 = vrot.lane.b32.xlu0 %v1998, 112
    %v2023 = vpop.permute.xlu0 %2022
    %v2032 = vpack.c.bf16 %v1981, %v1981
    %v2033 = vpack.c.bf16 %v1983, %v1983
    %v2034 = vpack.c.bf16 %v1986, %v1986
    %v2035 = vpack.c.bf16 %v1988, %v1988
    %v2036 = vpack.c.bf16 %v1991, %v1991
    %v2037 = vpack.c.bf16 %v1993, %v1993
    %v2038 = vpack.c.bf16 %v1996, %v1996
    %v2039 = vpack.c.bf16 %v1998, %v1998
    %v2040 = vpack.c.bf16 %v2009, %v2009
    %v2041 = vpack.c.bf16 %v2011, %v2011
    %v2042 = vpack.c.bf16 %v2013, %v2013
    %v2043 = vpack.c.bf16 %v2015, %v2015
    %v2044 = vpack.c.bf16 %v2017, %v2017
    %v2045 = vpack.c.bf16 %v2019, %v2019
    %v2046 = vpack.c.bf16 %v2021, %v2021
    %v2047 = vpack.c.bf16 %v2023, %v2023
    %v2049 = vunpack.c.l.b16 %v2032
    %v2050 = vpack.c.b16 %v2049, %v2049
    %2051 = vrot.lane.b32.xlu0 %v2050, 96
    %v2052 = vpop.permute.xlu0 %2051
    %v2054 = vsel %vm389, %v2032, 0
    %v2057 = vsel %vm389, %v2052, 0
    %2059 = vmatpush.bf16.xpose.msra.mxu0 0
    %2060 = vmatpush.bf16.xpose.msra.mxu0 0
    %2061 = vmatpush.bf16.xpose.msra.mxu0 0
    %2062 = vmatpush.bf16.xpose.msra.mxu0 0
    %2063 = vmatpush.bf16.xpose.msra.mxu0 0
    %2064 = vmatpush.bf16.xpose.msra.mxu0 0
    %2065 = vmatpush.bf16.xpose.msra.mxu0 0
    %2066 = vmatpush.bf16.xpose.msra.mxu0 %v2057
    %2067 = vmatmul.bf16.gmra.mxu0 %v2054
    %v2068 = vpop.f32.mrf.mxu0
    %v2069 = vadd.f32 %v260, %v2068
    %v2070 = vpop.f32.mrf.mxu0
    %2071 = vdwg.mxu0
    %v2073 = vunpack.c.l.b16 %v2033
    %v2074 = vpack.c.b16 %v2073, %v2073
    %2075 = vrot.lane.b32.xlu0 %v2074, 96
    %v2076 = vpop.permute.xlu0 %2075
    %v2078 = vsel %vm389, %v2033, 0
    %v2081 = vsel %vm389, %v2076, 0
    %2083 = vmatpush.bf16.xpose.msra.mxu0 0
    %2084 = vmatpush.bf16.xpose.msra.mxu0 0
    %2085 = vmatpush.bf16.xpose.msra.mxu0 0
    %2086 = vmatpush.bf16.xpose.msra.mxu0 0
    %2087 = vmatpush.bf16.xpose.msra.mxu0 0
    %2088 = vmatpush.bf16.xpose.msra.mxu0 0
    %2089 = vmatpush.bf16.xpose.msra.mxu0 0
    %2090 = vmatpush.bf16.xpose.msra.mxu0 %v2081
    %2091 = vmatmul.bf16.gmra.mxu0 %v2078
    %v2092 = vpop.f32.mrf.mxu0
    %v2093 = vadd.f32 %v260, %v2092
    %v2094 = vpop.f32.mrf.mxu0
    %2095 = vdwg.mxu0
    %v2097 = vunpack.c.l.b16 %v2034
    %v2098 = vpack.c.b16 %v2097, %v2097
    %2099 = vrot.lane.b32.xlu0 %v2098, 96
    %v2100 = vpop.permute.xlu0 %2099
    %v2102 = vsel %vm389, %v2034, 0
    %v2105 = vsel %vm389, %v2100, 0
    %2107 = vmatpush.bf16.xpose.msra.mxu0 0
    %2108 = vmatpush.bf16.xpose.msra.mxu0 0
    %2109 = vmatpush.bf16.xpose.msra.mxu0 0
    %2110 = vmatpush.bf16.xpose.msra.mxu0 0
    %2111 = vmatpush.bf16.xpose.msra.mxu0 0
    %2112 = vmatpush.bf16.xpose.msra.mxu0 0
    %2113 = vmatpush.bf16.xpose.msra.mxu0 0
    %2114 = vmatpush.bf16.xpose.msra.mxu0 %v2105
    %2115 = vmatmul.bf16.gmra.mxu0 %v2102
    %v2116 = vpop.f32.mrf.mxu0
    %v2117 = vadd.f32 %v260, %v2116
    %v2118 = vpop.f32.mrf.mxu0
    %2119 = vdwg.mxu0
    %v2121 = vunpack.c.l.b16 %v2035
    %v2122 = vpack.c.b16 %v2121, %v2121
    %2123 = vrot.lane.b32.xlu0 %v2122, 96
    %v2124 = vpop.permute.xlu0 %2123
    %v2126 = vsel %vm389, %v2035, 0
    %v2129 = vsel %vm389, %v2124, 0
    %2131 = vmatpush.bf16.xpose.msra.mxu0 0
    %2132 = vmatpush.bf16.xpose.msra.mxu0 0
    %2133 = vmatpush.bf16.xpose.msra.mxu0 0
    %2134 = vmatpush.bf16.xpose.msra.mxu0 0
    %2135 = vmatpush.bf16.xpose.msra.mxu0 0
    %2136 = vmatpush.bf16.xpose.msra.mxu0 0
    %2137 = vmatpush.bf16.xpose.msra.mxu0 0
    %2138 = vmatpush.bf16.xpose.msra.mxu0 %v2129
    %2139 = vmatmul.bf16.gmra.mxu0 %v2126
    %v2140 = vpop.f32.mrf.mxu0
    %v2141 = vadd.f32 %v260, %v2140
    %v2142 = vpop.f32.mrf.mxu0
    %2143 = vdwg.mxu0
    %v2145 = vunpack.c.l.b16 %v2036
    %v2146 = vpack.c.b16 %v2145, %v2145
    %2147 = vrot.lane.b32.xlu0 %v2146, 96
    %v2148 = vpop.permute.xlu0 %2147
    %v2150 = vsel %vm389, %v2036, 0
    %v2153 = vsel %vm389, %v2148, 0
    %2155 = vmatpush.bf16.xpose.msra.mxu0 0
    %2156 = vmatpush.bf16.xpose.msra.mxu0 0
    %2157 = vmatpush.bf16.xpose.msra.mxu0 0
    %2158 = vmatpush.bf16.xpose.msra.mxu0 0
    %2159 = vmatpush.bf16.xpose.msra.mxu0 0
    %2160 = vmatpush.bf16.xpose.msra.mxu0 0
    %2161 = vmatpush.bf16.xpose.msra.mxu0 0
    %2162 = vmatpush.bf16.xpose.msra.mxu0 %v2153
    %2163 = vmatmul.bf16.gmra.mxu0 %v2150
    %v2164 = vpop.f32.mrf.mxu0
    %v2165 = vadd.f32 %v260, %v2164
    %v2166 = vpop.f32.mrf.mxu0
    %2167 = vdwg.mxu0
    %v2169 = vunpack.c.l.b16 %v2037
    %v2170 = vpack.c.b16 %v2169, %v2169
    %2171 = vrot.lane.b32.xlu0 %v2170, 96
    %v2172 = vpop.permute.xlu0 %2171
    %v2174 = vsel %vm389, %v2037, 0
    %v2177 = vsel %vm389, %v2172, 0
    %2179 = vmatpush.bf16.xpose.msra.mxu0 0
    %2180 = vmatpush.bf16.xpose.msra.mxu0 0
    %2181 = vmatpush.bf16.xpose.msra.mxu0 0
    %2182 = vmatpush.bf16.xpose.msra.mxu0 0
    %2183 = vmatpush.bf16.xpose.msra.mxu0 0
    %2184 = vmatpush.bf16.xpose.msra.mxu0 0
    %2185 = vmatpush.bf16.xpose.msra.mxu0 0
    %2186 = vmatpush.bf16.xpose.msra.mxu0 %v2177
    %2187 = vmatmul.bf16.gmra.mxu0 %v2174
    %v2188 = vpop.f32.mrf.mxu0
    %v2189 = vadd.f32 %v260, %v2188
    %v2190 = vpop.f32.mrf.mxu0
    %2191 = vdwg.mxu0
    %v2193 = vunpack.c.l.b16 %v2038
    %v2194 = vpack.c.b16 %v2193, %v2193
    %2195 = vrot.lane.b32.xlu0 %v2194, 96
    %v2196 = vpop.permute.xlu0 %2195
    %v2198 = vsel %vm389, %v2038, 0
    %v2201 = vsel %vm389, %v2196, 0
    %2203 = vmatpush.bf16.xpose.msra.mxu0 0
    %2204 = vmatpush.bf16.xpose.msra.mxu0 0
    %2205 = vmatpush.bf16.xpose.msra.mxu0 0
    %2206 = vmatpush.bf16.xpose.msra.mxu0 0
    %2207 = vmatpush.bf16.xpose.msra.mxu0 0
    %2208 = vmatpush.bf16.xpose.msra.mxu0 0
    %2209 = vmatpush.bf16.xpose.msra.mxu0 0
    %2210 = vmatpush.bf16.xpose.msra.mxu0 %v2201
    %2211 = vmatmul.bf16.gmra.mxu0 %v2198
    %v2212 = vpop.f32.mrf.mxu0
    %v2213 = vadd.f32 %v260, %v2212
    %v2214 = vpop.f32.mrf.mxu0
    %2215 = vdwg.mxu0
    %v2217 = vunpack.c.l.b16 %v2039
    %v2218 = vpack.c.b16 %v2217, %v2217
    %2219 = vrot.lane.b32.xlu0 %v2218, 96
    %v2220 = vpop.permute.xlu0 %2219
    %v2222 = vsel %vm389, %v2039, 0
    %v2225 = vsel %vm389, %v2220, 0
    %2227 = vmatpush.bf16.xpose.msra.mxu0 0
    %2228 = vmatpush.bf16.xpose.msra.mxu0 0
    %2229 = vmatpush.bf16.xpose.msra.mxu0 0
    %2230 = vmatpush.bf16.xpose.msra.mxu0 0
    %2231 = vmatpush.bf16.xpose.msra.mxu0 0
    %2232 = vmatpush.bf16.xpose.msra.mxu0 0
    %2233 = vmatpush.bf16.xpose.msra.mxu0 0
    %2234 = vmatpush.bf16.xpose.msra.mxu0 %v2225
    %2235 = vmatmul.bf16.gmra.mxu0 %v2222
    %v2236 = vpop.f32.mrf.mxu0
    %v2237 = vadd.f32 %v260, %v2236
    %v2238 = vpop.f32.mrf.mxu0
    %2239 = vdwg.mxu0
    %v2241 = vunpack.c.l.b16 %v2040
    %v2242 = vpack.c.b16 %v2241, %v2241
    %2243 = vrot.lane.b32.xlu0 %v2242, 96
    %v2244 = vpop.permute.xlu0 %2243
    %v2246 = vsel %vm389, %v2040, 0
    %v2249 = vsel %vm389, %v2244, 0
    %2251 = vmatpush.bf16.xpose.msra.mxu0 0
    %2252 = vmatpush.bf16.xpose.msra.mxu0 0
    %2253 = vmatpush.bf16.xpose.msra.mxu0 0
    %2254 = vmatpush.bf16.xpose.msra.mxu0 0
    %2255 = vmatpush.bf16.xpose.msra.mxu0 0
    %2256 = vmatpush.bf16.xpose.msra.mxu0 0
    %2257 = vmatpush.bf16.xpose.msra.mxu0 0
    %2258 = vmatpush.bf16.xpose.msra.mxu0 %v2249
    %2259 = vmatmul.bf16.gmra.mxu0 %v2246
    %v2260 = vpop.f32.mrf.mxu0
    %v2261 = vadd.f32 %v260, %v2260
    %v2262 = vpop.f32.mrf.mxu0
    %2263 = vdwg.mxu0
    %v2265 = vunpack.c.l.b16 %v2041
    %v2266 = vpack.c.b16 %v2265, %v2265
    %2267 = vrot.lane.b32.xlu0 %v2266, 96
    %v2268 = vpop.permute.xlu0 %2267
    %v2270 = vsel %vm389, %v2041, 0
    %v2273 = vsel %vm389, %v2268, 0
    %2275 = vmatpush.bf16.xpose.msra.mxu0 0
    %2276 = vmatpush.bf16.xpose.msra.mxu0 0
    %2277 = vmatpush.bf16.xpose.msra.mxu0 0
    %2278 = vmatpush.bf16.xpose.msra.mxu0 0
    %2279 = vmatpush.bf16.xpose.msra.mxu0 0
    %2280 = vmatpush.bf16.xpose.msra.mxu0 0
    %2281 = vmatpush.bf16.xpose.msra.mxu0 0
    %2282 = vmatpush.bf16.xpose.msra.mxu0 %v2273
    %2283 = vmatmul.bf16.gmra.mxu0 %v2270
    %v2284 = vpop.f32.mrf.mxu0
    %v2285 = vadd.f32 %v260, %v2284
    %v2286 = vpop.f32.mrf.mxu0
    %2287 = vdwg.mxu0
    %v2289 = vunpack.c.l.b16 %v2042
    %v2290 = vpack.c.b16 %v2289, %v2289
    %2291 = vrot.lane.b32.xlu0 %v2290, 96
    %v2292 = vpop.permute.xlu0 %2291
    %v2294 = vsel %vm389, %v2042, 0
    %v2297 = vsel %vm389, %v2292, 0
    %2299 = vmatpush.bf16.xpose.msra.mxu0 0
    %2300 = vmatpush.bf16.xpose.msra.mxu0 0
    %2301 = vmatpush.bf16.xpose.msra.mxu0 0
    %2302 = vmatpush.bf16.xpose.msra.mxu0 0
    %2303 = vmatpush.bf16.xpose.msra.mxu0 0
    %2304 = vmatpush.bf16.xpose.msra.mxu0 0
    %2305 = vmatpush.bf16.xpose.msra.mxu0 0
    %2306 = vmatpush.bf16.xpose.msra.mxu0 %v2297
    %2307 = vmatmul.bf16.gmra.mxu0 %v2294
    %v2308 = vpop.f32.mrf.mxu0
    %v2309 = vadd.f32 %v260, %v2308
    %v2310 = vpop.f32.mrf.mxu0
    %2311 = vdwg.mxu0
    %v2313 = vunpack.c.l.b16 %v2043
    %v2314 = vpack.c.b16 %v2313, %v2313
    %2315 = vrot.lane.b32.xlu0 %v2314, 96
    %v2316 = vpop.permute.xlu0 %2315
    %v2318 = vsel %vm389, %v2043, 0
    %v2321 = vsel %vm389, %v2316, 0
    %2323 = vmatpush.bf16.xpose.msra.mxu0 0
    %2324 = vmatpush.bf16.xpose.msra.mxu0 0
    %2325 = vmatpush.bf16.xpose.msra.mxu0 0
    %2326 = vmatpush.bf16.xpose.msra.mxu0 0
    %2327 = vmatpush.bf16.xpose.msra.mxu0 0
    %2328 = vmatpush.bf16.xpose.msra.mxu0 0
    %2329 = vmatpush.bf16.xpose.msra.mxu0 0
    %2330 = vmatpush.bf16.xpose.msra.mxu0 %v2321
    %2331 = vmatmul.bf16.gmra.mxu0 %v2318
    %v2332 = vpop.f32.mrf.mxu0
    %v2333 = vadd.f32 %v260, %v2332
    %v2334 = vpop.f32.mrf.mxu0
    %2335 = vdwg.mxu0
    %v2337 = vunpack.c.l.b16 %v2044
    %v2338 = vpack.c.b16 %v2337, %v2337
    %2339 = vrot.lane.b32.xlu0 %v2338, 96
    %v2340 = vpop.permute.xlu0 %2339
    %v2342 = vsel %vm389, %v2044, 0
    %v2345 = vsel %vm389, %v2340, 0
    %2347 = vmatpush.bf16.xpose.msra.mxu0 0
    %2348 = vmatpush.bf16.xpose.msra.mxu0 0
    %2349 = vmatpush.bf16.xpose.msra.mxu0 0
    %2350 = vmatpush.bf16.xpose.msra.mxu0 0
    %2351 = vmatpush.bf16.xpose.msra.mxu0 0
    %2352 = vmatpush.bf16.xpose.msra.mxu0 0
    %2353 = vmatpush.bf16.xpose.msra.mxu0 0
    %2354 = vmatpush.bf16.xpose.msra.mxu0 %v2345
    %2355 = vmatmul.bf16.gmra.mxu0 %v2342
    %v2356 = vpop.f32.mrf.mxu0
    %v2357 = vadd.f32 %v260, %v2356
    %v2358 = vpop.f32.mrf.mxu0
    %2359 = vdwg.mxu0
    %v2361 = vunpack.c.l.b16 %v2045
    %v2362 = vpack.c.b16 %v2361, %v2361
    %2363 = vrot.lane.b32.xlu0 %v2362, 96
    %v2364 = vpop.permute.xlu0 %2363
    %v2366 = vsel %vm389, %v2045, 0
    %v2369 = vsel %vm389, %v2364, 0
    %2371 = vmatpush.bf16.xpose.msra.mxu0 0
    %2372 = vmatpush.bf16.xpose.msra.mxu0 0
    %2373 = vmatpush.bf16.xpose.msra.mxu0 0
    %2374 = vmatpush.bf16.xpose.msra.mxu0 0
    %2375 = vmatpush.bf16.xpose.msra.mxu0 0
    %2376 = vmatpush.bf16.xpose.msra.mxu0 0
    %2377 = vmatpush.bf16.xpose.msra.mxu0 0
    %2378 = vmatpush.bf16.xpose.msra.mxu0 %v2369
    %2379 = vmatmul.bf16.gmra.mxu0 %v2366
    %v2380 = vpop.f32.mrf.mxu0
    %v2381 = vadd.f32 %v260, %v2380
    %v2382 = vpop.f32.mrf.mxu0
    %2383 = vdwg.mxu0
    %v2385 = vunpack.c.l.b16 %v2046
    %v2386 = vpack.c.b16 %v2385, %v2385
    %2387 = vrot.lane.b32.xlu0 %v2386, 96
    %v2388 = vpop.permute.xlu0 %2387
    %v2390 = vsel %vm389, %v2046, 0
    %v2393 = vsel %vm389, %v2388, 0
    %2395 = vmatpush.bf16.xpose.msra.mxu0 0
    %2396 = vmatpush.bf16.xpose.msra.mxu0 0
    %2397 = vmatpush.bf16.xpose.msra.mxu0 0
    %2398 = vmatpush.bf16.xpose.msra.mxu0 0
    %2399 = vmatpush.bf16.xpose.msra.mxu0 0
    %2400 = vmatpush.bf16.xpose.msra.mxu0 0
    %2401 = vmatpush.bf16.xpose.msra.mxu0 0
    %2402 = vmatpush.bf16.xpose.msra.mxu0 %v2393
    %2403 = vmatmul.bf16.gmra.mxu0 %v2390
    %v2404 = vpop.f32.mrf.mxu0
    %v2405 = vadd.f32 %v260, %v2404
    %v2406 = vpop.f32.mrf.mxu0
    %2407 = vdwg.mxu0
    %v2409 = vunpack.c.l.b16 %v2047
    %v2410 = vpack.c.b16 %v2409, %v2409
    %2411 = vrot.lane.b32.xlu0 %v2410, 96
    %v2412 = vpop.permute.xlu0 %2411
    %v2414 = vsel %vm389, %v2047, 0
    %v2417 = vsel %vm389, %v2412, 0
    %2419 = vmatpush.bf16.xpose.msra.mxu0 0
    %2420 = vmatpush.bf16.xpose.msra.mxu0 0
    %2421 = vmatpush.bf16.xpose.msra.mxu0 0
    %2422 = vmatpush.bf16.xpose.msra.mxu0 0
    %2423 = vmatpush.bf16.xpose.msra.mxu0 0
    %2424 = vmatpush.bf16.xpose.msra.mxu0 0
    %2425 = vmatpush.bf16.xpose.msra.mxu0 0
    %2426 = vmatpush.bf16.xpose.msra.mxu0 %v2417
    %2427 = vmatmul.bf16.gmra.mxu0 %v2414
    %v2428 = vpop.f32.mrf.mxu0
    %v2429 = vadd.f32 %v260, %v2428
    %v2430 = vpop.f32.mrf.mxu0
    %2431 = vdwg.mxu0
    %v2432 = vmul.f32 %v2069, 1.442695
    %v2433 = vpow.pop %v2432
    %v2434 = vmul.f32 %v2093, 1.442695
    %v2435 = vpow.pop %v2434
    %v2436 = vmul.f32 %v2117, 1.442695
    %v2437 = vpow.pop %v2436
    %v2438 = vmul.f32 %v2141, 1.442695
    %v2439 = vpow.pop %v2438
    %v2440 = vmul.f32 %v2165, 1.442695
    %v2441 = vpow.pop %v2440
    %v2442 = vmul.f32 %v2189, 1.442695
    %v2443 = vpow.pop %v2442
    %v2444 = vmul.f32 %v2213, 1.442695
    %v2445 = vpow.pop %v2444
    %v2446 = vmul.f32 %v2237, 1.442695
    %v2447 = vpow.pop %v2446
    %v2448 = vmul.f32 %v2261, 1.442695
    %v2449 = vpow.pop %v2448
    %v2450 = vmul.f32 %v2285, 1.442695
    %v2451 = vpow.pop %v2450
    %v2452 = vmul.f32 %v2309, 1.442695
    %v2453 = vpow.pop %v2452
    %v2454 = vmul.f32 %v2333, 1.442695
    %v2455 = vpow.pop %v2454
    %v2456 = vmul.f32 %v2357, 1.442695
    %v2457 = vpow.pop %v2456
    %v2458 = vmul.f32 %v2381, 1.442695
    %v2459 = vpow.pop %v2458
    %v2460 = vmul.f32 %v2405, 1.442695
    %v2461 = vpow.pop %v2460
    %v2462 = vmul.f32 %v2429, 1.442695
    %v2463 = vpow.pop %v2462
    %v2464 = vsel %vm801, %v2433, 0.0
    %2465 = vadd.xlane.f32.xlu0 %v2464
    %v2466 = vpop.xlane.xlu0 %2465
    %v2467 = vsel %vm801, %v2435, 0.0
    %2468 = vadd.xlane.f32.xlu0 %v2467
    %v2469 = vpop.xlane.xlu0 %2468
    %v2470 = vsel %vm801, %v2437, 0.0
    %2471 = vadd.xlane.f32.xlu0 %v2470
    %v2472 = vpop.xlane.xlu0 %2471
    %v2473 = vsel %vm801, %v2439, 0.0
    %2474 = vadd.xlane.f32.xlu0 %v2473
    %v2475 = vpop.xlane.xlu0 %2474
    %v2476 = vsel %vm801, %v2441, 0.0
    %2477 = vadd.xlane.f32.xlu0 %v2476
    %v2478 = vpop.xlane.xlu0 %2477
    %v2479 = vsel %vm801, %v2443, 0.0
    %2480 = vadd.xlane.f32.xlu0 %v2479
    %v2481 = vpop.xlane.xlu0 %2480
    %v2482 = vsel %vm801, %v2445, 0.0
    %2483 = vadd.xlane.f32.xlu0 %v2482
    %v2484 = vpop.xlane.xlu0 %2483
    %v2485 = vsel %vm801, %v2447, 0.0
    %2486 = vadd.xlane.f32.xlu0 %v2485
    %v2487 = vpop.xlane.xlu0 %2486
    %v2488 = vsel %vm801, %v2449, 0.0
    %2489 = vadd.xlane.f32.xlu0 %v2488
    %v2490 = vpop.xlane.xlu0 %2489
    %v2491 = vsel %vm801, %v2451, 0.0
    %2492 = vadd.xlane.f32.xlu0 %v2491
    %v2493 = vpop.xlane.xlu0 %2492
    %v2494 = vsel %vm801, %v2453, 0.0
    %2495 = vadd.xlane.f32.xlu0 %v2494
    %v2496 = vpop.xlane.xlu0 %2495
    %v2497 = vsel %vm801, %v2455, 0.0
    %2498 = vadd.xlane.f32.xlu0 %v2497
    %v2499 = vpop.xlane.xlu0 %2498
    %v2500 = vsel %vm801, %v2457, 0.0
    %2501 = vadd.xlane.f32.xlu0 %v2500
    %v2502 = vpop.xlane.xlu0 %2501
    %v2503 = vsel %vm801, %v2459, 0.0
    %2504 = vadd.xlane.f32.xlu0 %v2503
    %v2505 = vpop.xlane.xlu0 %2504
    %v2506 = vsel %vm801, %v2461, 0.0
    %2507 = vadd.xlane.f32.xlu0 %v2506
    %v2508 = vpop.xlane.xlu0 %2507
    %v2509 = vsel %vm801, %v2463, 0.0
    %2510 = vadd.xlane.f32.xlu0 %v2509
    %v2511 = vpop.xlane.xlu0 %2510
    %v2512 = vrcp.pop %v2466
    %v2513 = vrcp.pop %v2469
    %v2514 = vrcp.pop %v2472
    %v2515 = vrcp.pop %v2475
    %v2516 = vrcp.pop %v2478
    %v2517 = vrcp.pop %v2481
    %v2518 = vrcp.pop %v2484
    %v2519 = vrcp.pop %v2487
    %v2520 = vrcp.pop %v2490
    %v2521 = vrcp.pop %v2493
    %v2522 = vrcp.pop %v2496
    %v2523 = vrcp.pop %v2499
    %v2524 = vrcp.pop %v2502
    %v2525 = vrcp.pop %v2505
    %v2526 = vrcp.pop %v2508
    %v2527 = vrcp.pop %v2511
    %v2528 = vmul.f32 %v2433, %v2512
    %v2529 = vmul.f32 %v2435, %v2513
    %v2530 = vmul.f32 %v2437, %v2514
    %v2531 = vmul.f32 %v2439, %v2515
    %v2532 = vmul.f32 %v2441, %v2516
    %v2533 = vmul.f32 %v2443, %v2517
    %v2534 = vmul.f32 %v2445, %v2518
    %v2535 = vmul.f32 %v2447, %v2519
    %v2536 = vmul.f32 %v2449, %v2520
    %v2537 = vmul.f32 %v2451, %v2521
    %v2538 = vmul.f32 %v2453, %v2522
    %v2539 = vmul.f32 %v2455, %v2523
    %v2540 = vmul.f32 %v2457, %v2524
    %v2541 = vmul.f32 %v2459, %v2525
    %v2542 = vmul.f32 %v2461, %v2526
    %v2543 = vmul.f32 %v2463, %v2527
    %v2544 = vpack.c.bf16 %v2528, %v2528
    %v2545 = vpack.c.bf16 %v2529, %v2529
    %v2546 = vpack.c.bf16 %v2530, %v2530
    %v2547 = vpack.c.bf16 %v2531, %v2531
    %v2548 = vpack.c.bf16 %v2532, %v2532
    %v2549 = vpack.c.bf16 %v2533, %v2533
    %v2550 = vpack.c.bf16 %v2534, %v2534
    %v2551 = vpack.c.bf16 %v2535, %v2535
    %v2552 = vpack.c.bf16 %v2536, %v2536
    %v2553 = vpack.c.bf16 %v2537, %v2537
    %v2554 = vpack.c.bf16 %v2538, %v2538
    %v2555 = vpack.c.bf16 %v2539, %v2539
    %v2556 = vpack.c.bf16 %v2540, %v2540
    %v2557 = vpack.c.bf16 %v2541, %v2541
    %v2558 = vpack.c.bf16 %v2542, %v2542
    %v2559 = vpack.c.bf16 %v2543, %v2543
    %2560 = vrot.lane.b32.xlu0 %v2050, 64
    %v2561 = vpop.permute.xlu0 %2560
    %v2563 = vsel %vm801, %v2544, 0
    %v2566 = vsel %vm903, %v2561, 0
    %2568 = vmatpush.bf16.msra.mxu0 0
    %2569 = vmatpush.bf16.msra.mxu0 0
    %2570 = vmatpush.bf16.msra.mxu0 0
    %2571 = vmatpush.bf16.msra.mxu0 0
    %2572 = vmatpush.bf16.msra.mxu0 0
    %2573 = vmatpush.bf16.msra.mxu0 0
    %2574 = vmatpush.bf16.msra.mxu0 0
    %2575 = vmatpush.bf16.msra.mxu0 %v2566
    %2576 = vmatmul.bf16.gmra.mxu0 %v2563
    %v2577 = vpop.f32.mrf.mxu0
    %v2578 = vadd.f32 0.0, %v2577
    %v2579 = vpop.f32.mrf.mxu0
    %2580 = vdwg.mxu0
    %2581 = vrot.lane.b32.xlu0 %v2074, 64
    %v2582 = vpop.permute.xlu0 %2581
    %v2584 = vsel %vm801, %v2545, 0
    %v2587 = vsel %vm903, %v2582, 0
    %2589 = vmatpush.bf16.msra.mxu0 0
    %2590 = vmatpush.bf16.msra.mxu0 0
    %2591 = vmatpush.bf16.msra.mxu0 0
    %2592 = vmatpush.bf16.msra.mxu0 0
    %2593 = vmatpush.bf16.msra.mxu0 0
    %2594 = vmatpush.bf16.msra.mxu0 0
    %2595 = vmatpush.bf16.msra.mxu0 0
    %2596 = vmatpush.bf16.msra.mxu0 %v2587
    %2597 = vmatmul.bf16.gmra.mxu0 %v2584
    %v2598 = vpop.f32.mrf.mxu0
    %v2599 = vadd.f32 0.0, %v2598
    %v2600 = vpop.f32.mrf.mxu0
    %2601 = vdwg.mxu0
    %2602 = vrot.lane.b32.xlu0 %v2098, 64
    %v2603 = vpop.permute.xlu0 %2602
    %v2605 = vsel %vm801, %v2546, 0
    %v2608 = vsel %vm903, %v2603, 0
    %2610 = vmatpush.bf16.msra.mxu0 0
    %2611 = vmatpush.bf16.msra.mxu0 0
    %2612 = vmatpush.bf16.msra.mxu0 0
    %2613 = vmatpush.bf16.msra.mxu0 0
    %2614 = vmatpush.bf16.msra.mxu0 0
    %2615 = vmatpush.bf16.msra.mxu0 0
    %2616 = vmatpush.bf16.msra.mxu0 0
    %2617 = vmatpush.bf16.msra.mxu0 %v2608
    %2618 = vmatmul.bf16.gmra.mxu0 %v2605
    %v2619 = vpop.f32.mrf.mxu0
    %v2620 = vadd.f32 0.0, %v2619
    %v2621 = vpop.f32.mrf.mxu0
    %2622 = vdwg.mxu0
    %2623 = vrot.lane.b32.xlu0 %v2122, 64
    %v2624 = vpop.permute.xlu0 %2623
    %v2626 = vsel %vm801, %v2547, 0
    %v2629 = vsel %vm903, %v2624, 0
    %2631 = vmatpush.bf16.msra.mxu0 0
    %2632 = vmatpush.bf16.msra.mxu0 0
    %2633 = vmatpush.bf16.msra.mxu0 0
    %2634 = vmatpush.bf16.msra.mxu0 0
    %2635 = vmatpush.bf16.msra.mxu0 0
    %2636 = vmatpush.bf16.msra.mxu0 0
    %2637 = vmatpush.bf16.msra.mxu0 0
    %2638 = vmatpush.bf16.msra.mxu0 %v2629
    %2639 = vmatmul.bf16.gmra.mxu0 %v2626
    %v2640 = vpop.f32.mrf.mxu0
    %v2641 = vadd.f32 0.0, %v2640
    %v2642 = vpop.f32.mrf.mxu0
    %2643 = vdwg.mxu0
    %2644 = vrot.lane.b32.xlu0 %v2146, 64
    %v2645 = vpop.permute.xlu0 %2644
    %v2647 = vsel %vm801, %v2548, 0
    %v2650 = vsel %vm903, %v2645, 0
    %2652 = vmatpush.bf16.msra.mxu0 0
    %2653 = vmatpush.bf16.msra.mxu0 0
    %2654 = vmatpush.bf16.msra.mxu0 0
    %2655 = vmatpush.bf16.msra.mxu0 0
    %2656 = vmatpush.bf16.msra.mxu0 0
    %2657 = vmatpush.bf16.msra.mxu0 0
    %2658 = vmatpush.bf16.msra.mxu0 0
    %2659 = vmatpush.bf16.msra.mxu0 %v2650
    %2660 = vmatmul.bf16.gmra.mxu0 %v2647
    %v2661 = vpop.f32.mrf.mxu0
    %v2662 = vadd.f32 0.0, %v2661
    %v2663 = vpop.f32.mrf.mxu0
    %2664 = vdwg.mxu0
    %2665 = vrot.lane.b32.xlu0 %v2170, 64
    %v2666 = vpop.permute.xlu0 %2665
    %v2668 = vsel %vm801, %v2549, 0
    %v2671 = vsel %vm903, %v2666, 0
    %2673 = vmatpush.bf16.msra.mxu0 0
    %2674 = vmatpush.bf16.msra.mxu0 0
    %2675 = vmatpush.bf16.msra.mxu0 0
    %2676 = vmatpush.bf16.msra.mxu0 0
    %2677 = vmatpush.bf16.msra.mxu0 0
    %2678 = vmatpush.bf16.msra.mxu0 0
    %2679 = vmatpush.bf16.msra.mxu0 0
    %2680 = vmatpush.bf16.msra.mxu0 %v2671
    %2681 = vmatmul.bf16.gmra.mxu0 %v2668
    %v2682 = vpop.f32.mrf.mxu0
    %v2683 = vadd.f32 0.0, %v2682
    %v2684 = vpop.f32.mrf.mxu0
    %2685 = vdwg.mxu0
    %2686 = vrot.lane.b32.xlu0 %v2194, 64
    %v2687 = vpop.permute.xlu0 %2686
    %v2689 = vsel %vm801, %v2550, 0
    %v2692 = vsel %vm903, %v2687, 0
    %2694 = vmatpush.bf16.msra.mxu0 0
    %2695 = vmatpush.bf16.msra.mxu0 0
    %2696 = vmatpush.bf16.msra.mxu0 0
    %2697 = vmatpush.bf16.msra.mxu0 0
    %2698 = vmatpush.bf16.msra.mxu0 0
    %2699 = vmatpush.bf16.msra.mxu0 0
    %2700 = vmatpush.bf16.msra.mxu0 0
    %2701 = vmatpush.bf16.msra.mxu0 %v2692
    %2702 = vmatmul.bf16.gmra.mxu0 %v2689
    %v2703 = vpop.f32.mrf.mxu0
    %v2704 = vadd.f32 0.0, %v2703
    %v2705 = vpop.f32.mrf.mxu0
    %2706 = vdwg.mxu0
    %2707 = vrot.lane.b32.xlu0 %v2218, 64
    %v2708 = vpop.permute.xlu0 %2707
    %v2710 = vsel %vm801, %v2551, 0
    %v2713 = vsel %vm903, %v2708, 0
    %2715 = vmatpush.bf16.msra.mxu0 0
    %2716 = vmatpush.bf16.msra.mxu0 0
    %2717 = vmatpush.bf16.msra.mxu0 0
    %2718 = vmatpush.bf16.msra.mxu0 0
    %2719 = vmatpush.bf16.msra.mxu0 0
    %2720 = vmatpush.bf16.msra.mxu0 0
    %2721 = vmatpush.bf16.msra.mxu0 0
    %2722 = vmatpush.bf16.msra.mxu0 %v2713
    %2723 = vmatmul.bf16.gmra.mxu0 %v2710
    %v2724 = vpop.f32.mrf.mxu0
    %v2725 = vadd.f32 0.0, %v2724
    %v2726 = vpop.f32.mrf.mxu0
    %2727 = vdwg.mxu0
    %2728 = vrot.lane.b32.xlu0 %v2242, 64
    %v2729 = vpop.permute.xlu0 %2728
    %v2731 = vsel %vm801, %v2552, 0
    %v2734 = vsel %vm903, %v2729, 0
    %2736 = vmatpush.bf16.msra.mxu0 0
    %2737 = vmatpush.bf16.msra.mxu0 0
    %2738 = vmatpush.bf16.msra.mxu0 0
    %2739 = vmatpush.bf16.msra.mxu0 0
    %2740 = vmatpush.bf16.msra.mxu0 0
    %2741 = vmatpush.bf16.msra.mxu0 0
    %2742 = vmatpush.bf16.msra.mxu0 0
    %2743 = vmatpush.bf16.msra.mxu0 %v2734
    %2744 = vmatmul.bf16.gmra.mxu0 %v2731
    %v2745 = vpop.f32.mrf.mxu0
    %v2746 = vadd.f32 0.0, %v2745
    %v2747 = vpop.f32.mrf.mxu0
    %2748 = vdwg.mxu0
    %2749 = vrot.lane.b32.xlu0 %v2266, 64
    %v2750 = vpop.permute.xlu0 %2749
    %v2752 = vsel %vm801, %v2553, 0
    %v2755 = vsel %vm903, %v2750, 0
    %2757 = vmatpush.bf16.msra.mxu0 0
    %2758 = vmatpush.bf16.msra.mxu0 0
    %2759 = vmatpush.bf16.msra.mxu0 0
    %2760 = vmatpush.bf16.msra.mxu0 0
    %2761 = vmatpush.bf16.msra.mxu0 0
    %2762 = vmatpush.bf16.msra.mxu0 0
    %2763 = vmatpush.bf16.msra.mxu0 0
    %2764 = vmatpush.bf16.msra.mxu0 %v2755
    %2765 = vmatmul.bf16.gmra.mxu0 %v2752
    %v2766 = vpop.f32.mrf.mxu0
    %v2767 = vadd.f32 0.0, %v2766
    %v2768 = vpop.f32.mrf.mxu0
    %2769 = vdwg.mxu0
    %2770 = vrot.lane.b32.xlu0 %v2290, 64
    %v2771 = vpop.permute.xlu0 %2770
    %v2773 = vsel %vm801, %v2554, 0
    %v2776 = vsel %vm903, %v2771, 0
    %2778 = vmatpush.bf16.msra.mxu0 0
    %2779 = vmatpush.bf16.msra.mxu0 0
    %2780 = vmatpush.bf16.msra.mxu0 0
    %2781 = vmatpush.bf16.msra.mxu0 0
    %2782 = vmatpush.bf16.msra.mxu0 0
    %2783 = vmatpush.bf16.msra.mxu0 0
    %2784 = vmatpush.bf16.msra.mxu0 0
    %2785 = vmatpush.bf16.msra.mxu0 %v2776
    %2786 = vmatmul.bf16.gmra.mxu0 %v2773
    %v2787 = vpop.f32.mrf.mxu0
    %v2788 = vadd.f32 0.0, %v2787
    %v2789 = vpop.f32.mrf.mxu0
    %2790 = vdwg.mxu0
    %2791 = vrot.lane.b32.xlu0 %v2314, 64
    %v2792 = vpop.permute.xlu0 %2791
    %v2794 = vsel %vm801, %v2555, 0
    %v2797 = vsel %vm903, %v2792, 0
    %2799 = vmatpush.bf16.msra.mxu0 0
    %2800 = vmatpush.bf16.msra.mxu0 0
    %2801 = vmatpush.bf16.msra.mxu0 0
    %2802 = vmatpush.bf16.msra.mxu0 0
    %2803 = vmatpush.bf16.msra.mxu0 0
    %2804 = vmatpush.bf16.msra.mxu0 0
    %2805 = vmatpush.bf16.msra.mxu0 0
    %2806 = vmatpush.bf16.msra.mxu0 %v2797
    %2807 = vmatmul.bf16.gmra.mxu0 %v2794
    %v2808 = vpop.f32.mrf.mxu0
    %v2809 = vadd.f32 0.0, %v2808
    %v2810 = vpop.f32.mrf.mxu0
    %2811 = vdwg.mxu0
    %2812 = vrot.lane.b32.xlu0 %v2338, 64
    %v2813 = vpop.permute.xlu0 %2812
    %v2815 = vsel %vm801, %v2556, 0
    %v2818 = vsel %vm903, %v2813, 0
    %2820 = vmatpush.bf16.msra.mxu0 0
    %2821 = vmatpush.bf16.msra.mxu0 0
    %2822 = vmatpush.bf16.msra.mxu0 0
    %2823 = vmatpush.bf16.msra.mxu0 0
    %2824 = vmatpush.bf16.msra.mxu0 0
    %2825 = vmatpush.bf16.msra.mxu0 0
    %2826 = vmatpush.bf16.msra.mxu0 0
    %2827 = vmatpush.bf16.msra.mxu0 %v2818
    %2828 = vmatmul.bf16.gmra.mxu0 %v2815
    %v2829 = vpop.f32.mrf.mxu0
    %v2830 = vadd.f32 0.0, %v2829
    %v2831 = vpop.f32.mrf.mxu0
    %2832 = vdwg.mxu0
    %2833 = vrot.lane.b32.xlu0 %v2362, 64
    %v2834 = vpop.permute.xlu0 %2833
    %v2836 = vsel %vm801, %v2557, 0
    %v2839 = vsel %vm903, %v2834, 0
    %2841 = vmatpush.bf16.msra.mxu0 0
    %2842 = vmatpush.bf16.msra.mxu0 0
    %2843 = vmatpush.bf16.msra.mxu0 0
    %2844 = vmatpush.bf16.msra.mxu0 0
    %2845 = vmatpush.bf16.msra.mxu0 0
    %2846 = vmatpush.bf16.msra.mxu0 0
    %2847 = vmatpush.bf16.msra.mxu0 0
    %2848 = vmatpush.bf16.msra.mxu0 %v2839
    %2849 = vmatmul.bf16.gmra.mxu0 %v2836
    %v2850 = vpop.f32.mrf.mxu0
    %v2851 = vadd.f32 0.0, %v2850
    %v2852 = vpop.f32.mrf.mxu0
    %2853 = vdwg.mxu0
    %2854 = vrot.lane.b32.xlu0 %v2386, 64
    %v2855 = vpop.permute.xlu0 %2854
    %v2857 = vsel %vm801, %v2558, 0
    %v2860 = vsel %vm903, %v2855, 0
    %2862 = vmatpush.bf16.msra.mxu0 0
    %2863 = vmatpush.bf16.msra.mxu0 0
    %2864 = vmatpush.bf16.msra.mxu0 0
    %2865 = vmatpush.bf16.msra.mxu0 0
    %2866 = vmatpush.bf16.msra.mxu0 0
    %2867 = vmatpush.bf16.msra.mxu0 0
    %2868 = vmatpush.bf16.msra.mxu0 0
    %2869 = vmatpush.bf16.msra.mxu0 %v2860
    %2870 = vmatmul.bf16.gmra.mxu0 %v2857
    %v2871 = vpop.f32.mrf.mxu0
    %v2872 = vadd.f32 0.0, %v2871
    %v2873 = vpop.f32.mrf.mxu0
    %2874 = vdwg.mxu0
    %2875 = vrot.lane.b32.xlu0 %v2410, 64
    %v2876 = vpop.permute.xlu0 %2875
    %v2878 = vsel %vm801, %v2559, 0
    %v2881 = vsel %vm903, %v2876, 0
    %2883 = vmatpush.bf16.msra.mxu0 0
    %2884 = vmatpush.bf16.msra.mxu0 0
    %2885 = vmatpush.bf16.msra.mxu0 0
    %2886 = vmatpush.bf16.msra.mxu0 0
    %2887 = vmatpush.bf16.msra.mxu0 0
    %2888 = vmatpush.bf16.msra.mxu0 0
    %2889 = vmatpush.bf16.msra.mxu0 0
    %2890 = vmatpush.bf16.msra.mxu0 %v2881
    %2891 = vmatmul.bf16.gmra.mxu0 %v2878
    %v2892 = vpop.f32.mrf.mxu0
    %v2893 = vadd.f32 0.0, %v2892
    %v2894 = vpop.f32.mrf.mxu0
    %2895 = vdwg.mxu0
    %v2896 = vpack.c.bf16 %v2599, %v2578
    %v2897 = vpack.c.bf16 %v2641, %v2620
    %v2898 = vpack.c.bf16 %v2683, %v2662
    %v2899 = vpack.c.bf16 %v2725, %v2704
    %v2900 = vpack.c.bf16 %v1933, %v1932
    %v2902 = vsel %vm389, %v2896, 0
    %v2905 = vsel %vm389, %v2897, 0
    %v2908 = vsel %vm389, %v2898, 0
    %v2911 = vsel %vm389, %v2899, 0
    %2913 = vmatpush.bf16.msra.mxu0 0
    %2914 = vmatpush.bf16.msra.mxu0 0
    %2915 = vmatpush.bf16.msra.mxu0 0
    %2916 = vmatpush.bf16.msra.mxu0 0
    %2917 = vmatpush.bf16.msra.mxu0 0
    %2918 = vmatpush.bf16.msra.mxu0 0
    %2919 = vmatpush.bf16.msra.mxu0 0
    %2920 = vmatpush.bf16.msra.mxu0 %v2900
    %2921 = vmatmul.bf16.gmra.mxu0 %v2902
    %v2922 = vpop.f32.mrf.mxu0
    %v2923 = vadd.f32 0.0, %v2922
    %v2924 = vpop.f32.mrf.mxu0
    %v2925 = vadd.f32 0.0, %v2924
    %2926 = vmatmul.bf16.gmra.mxu0 %v2905
    %v2927 = vpop.f32.mrf.mxu0
    %v2928 = vadd.f32 0.0, %v2927
    %v2929 = vpop.f32.mrf.mxu0
    %v2930 = vadd.f32 0.0, %v2929
    %2931 = vmatmul.bf16.gmra.mxu0 %v2908
    %v2932 = vpop.f32.mrf.mxu0
    %v2933 = vadd.f32 0.0, %v2932
    %v2934 = vpop.f32.mrf.mxu0
    %v2935 = vadd.f32 0.0, %v2934
    %2936 = vmatmul.bf16.gmra.mxu0 %v2911
    %v2937 = vpop.f32.mrf.mxu0
    %v2938 = vadd.f32 0.0, %v2937
    %v2939 = vpop.f32.mrf.mxu0
    %v2940 = vadd.f32 0.0, %v2939
    %2941 = vdwg.mxu0
    %v2942 = vperm.slane %v1951, 2
    %v2943 = vadd.f32 %v2942, %v2923
    %v2944 = vadd.f32 %v2942, %v2925
    %v2945 = vadd.f32 %v2942, %v2928
    %v2946 = vadd.f32 %v2942, %v2930
    %v2947 = vadd.f32 %v2942, %v2933
    %v2948 = vadd.f32 %v2942, %v2935
    %v2949 = vadd.f32 %v2942, %v2938
    %v2950 = vadd.f32 %v2942, %v2940
    %v2951 = vpack.c.bf16 %v2767, %v2746
    %v2952 = vpack.c.bf16 %v2809, %v2788
    %v2953 = vpack.c.bf16 %v2851, %v2830
    %v2954 = vpack.c.bf16 %v2893, %v2872
    %v2955 = vpack.c.bf16 %v1935, %v1934
    %v2957 = vsel %vm389, %v2951, 0
    %v2960 = vsel %vm389, %v2952, 0
    %v2963 = vsel %vm389, %v2953, 0
    %v2966 = vsel %vm389, %v2954, 0
    %2968 = vmatpush.bf16.msra.mxu0 0
    %2969 = vmatpush.bf16.msra.mxu0 0
    %2970 = vmatpush.bf16.msra.mxu0 0
    %2971 = vmatpush.bf16.msra.mxu0 0
    %2972 = vmatpush.bf16.msra.mxu0 0
    %2973 = vmatpush.bf16.msra.mxu0 0
    %2974 = vmatpush.bf16.msra.mxu0 0
    %2975 = vmatpush.bf16.msra.mxu0 %v2955
    %2976 = vmatmul.bf16.gmra.mxu0 %v2957
    %v2977 = vpop.f32.mrf.mxu0
    %v2978 = vadd.f32 0.0, %v2977
    %v2979 = vpop.f32.mrf.mxu0
    %v2980 = vadd.f32 0.0, %v2979
    %2981 = vmatmul.bf16.gmra.mxu0 %v2960
    %v2982 = vpop.f32.mrf.mxu0
    %v2983 = vadd.f32 0.0, %v2982
    %v2984 = vpop.f32.mrf.mxu0
    %v2985 = vadd.f32 0.0, %v2984
    %2986 = vmatmul.bf16.gmra.mxu0 %v2963
    %v2987 = vpop.f32.mrf.mxu0
    %v2988 = vadd.f32 0.0, %v2987
    %v2989 = vpop.f32.mrf.mxu0
    %v2990 = vadd.f32 0.0, %v2989
    %2991 = vmatmul.bf16.gmra.mxu0 %v2966
    %v2992 = vpop.f32.mrf.mxu0
    %v2993 = vadd.f32 0.0, %v2992
    %v2994 = vpop.f32.mrf.mxu0
    %v2995 = vadd.f32 0.0, %v2994
    %2996 = vdwg.mxu0
    %v2997 = vadd.f32 %v2943, %v2978
    %v2998 = vadd.f32 %v2944, %v2980
    %v2999 = vadd.f32 %v2945, %v2983
    %v3000 = vadd.f32 %v2946, %v2985
    %v3001 = vadd.f32 %v2947, %v2988
    %v3002 = vadd.f32 %v2948, %v2990
    %v3003 = vadd.f32 %v2949, %v2993
    %v3004 = vadd.f32 %v2950, %v2995
    %v3005 = vadd.f32 %v1918, %v2997
    %v3006 = vadd.f32 %v1919, %v2998
    %v3007 = vadd.f32 %v1920, %v2999
    %v3008 = vadd.f32 %v1921, %v3000
    %v3009 = vadd.f32 %v1922, %v3001
    %v3010 = vadd.f32 %v1923, %v3002
    %v3011 = vadd.f32 %v1924, %v3003
    %v3012 = vadd.f32 %v1925, %v3004
    %v3013 = vsel %vm294, %v3005, 0.0
    %3014 = vadd.xlane.f32.xlu0 %v3013
    %v3015 = vpop.xlane.xlu0 %3014
    %v3016 = vsel %vm294, %v3006, 0.0
    %3017 = vadd.xlane.f32.xlu0 %v3016
    %v3018 = vpop.xlane.xlu0 %3017
    %v3019 = vsel %vm294, %v3007, 0.0
    %3020 = vadd.xlane.f32.xlu0 %v3019
    %v3021 = vpop.xlane.xlu0 %3020
    %v3022 = vsel %vm294, %v3008, 0.0
    %3023 = vadd.xlane.f32.xlu0 %v3022
    %v3024 = vpop.xlane.xlu0 %3023
    %v3025 = vsel %vm294, %v3009, 0.0
    %3026 = vadd.xlane.f32.xlu0 %v3025
    %v3027 = vpop.xlane.xlu0 %3026
    %v3028 = vsel %vm294, %v3010, 0.0
    %3029 = vadd.xlane.f32.xlu0 %v3028
    %v3030 = vpop.xlane.xlu0 %3029
    %v3031 = vsel %vm294, %v3011, 0.0
    %3032 = vadd.xlane.f32.xlu0 %v3031
    %v3033 = vpop.xlane.xlu0 %3032
    %v3034 = vsel %vm294, %v3012, 0.0
    %3035 = vadd.xlane.f32.xlu0 %v3034
    %v3036 = vpop.xlane.xlu0 %3035
    %v3037 = vmul.f32 %v3015, %v1382
    %v3038 = vmul.f32 %v3018, %v1382
    %v3039 = vmul.f32 %v3021, %v1382
    %v3040 = vmul.f32 %v3024, %v1382
    %v3041 = vmul.f32 %v3027, %v1382
    %v3042 = vmul.f32 %v3030, %v1382
    %v3043 = vmul.f32 %v3033, %v1382
    %v3044 = vmul.f32 %v3036, %v1382
    %v3045 = vsub.f32 %v3005, %v3037
    %v3046 = vsub.f32 %v3006, %v3038
    %v3047 = vsub.f32 %v3007, %v3039
    %v3048 = vsub.f32 %v3008, %v3040
    %v3049 = vsub.f32 %v3009, %v3041
    %v3050 = vsub.f32 %v3010, %v3042
    %v3051 = vsub.f32 %v3011, %v3043
    %v3052 = vsub.f32 %v3012, %v3044
    %v3053 = vmul.f32 %v3045, %v3045
    %v3054 = vmul.f32 %v3046, %v3046
    %v3055 = vmul.f32 %v3047, %v3047
    %v3056 = vmul.f32 %v3048, %v3048
    %v3057 = vmul.f32 %v3049, %v3049
    %v3058 = vmul.f32 %v3050, %v3050
    %v3059 = vmul.f32 %v3051, %v3051
    %v3060 = vmul.f32 %v3052, %v3052
    %v3061 = vsel %vm294, %v3053, 0.0
    %3062 = vadd.xlane.f32.xlu0 %v3061
    %v3063 = vpop.xlane.xlu0 %3062
    %v3064 = vsel %vm294, %v3054, 0.0
    %3065 = vadd.xlane.f32.xlu0 %v3064
    %v3066 = vpop.xlane.xlu0 %3065
    %v3067 = vsel %vm294, %v3055, 0.0
    %3068 = vadd.xlane.f32.xlu0 %v3067
    %v3069 = vpop.xlane.xlu0 %3068
    %v3070 = vsel %vm294, %v3056, 0.0
    %3071 = vadd.xlane.f32.xlu0 %v3070
    %v3072 = vpop.xlane.xlu0 %3071
    %v3073 = vsel %vm294, %v3057, 0.0
    %3074 = vadd.xlane.f32.xlu0 %v3073
    %v3075 = vpop.xlane.xlu0 %3074
    %v3076 = vsel %vm294, %v3058, 0.0
    %3077 = vadd.xlane.f32.xlu0 %v3076
    %v3078 = vpop.xlane.xlu0 %3077
    %v3079 = vsel %vm294, %v3059, 0.0
    %3080 = vadd.xlane.f32.xlu0 %v3079
    %v3081 = vpop.xlane.xlu0 %3080
    %v3082 = vsel %vm294, %v3060, 0.0
    %3083 = vadd.xlane.f32.xlu0 %v3082
    %v3084 = vpop.xlane.xlu0 %3083
    %v3085 = vmul.f32 %v3063, %v1382
    %v3086 = vmul.f32 %v3066, %v1382
    %v3087 = vmul.f32 %v3069, %v1382
    %v3088 = vmul.f32 %v3072, %v1382
    %v3089 = vmul.f32 %v3075, %v1382
    %v3090 = vmul.f32 %v3078, %v1382
    %v3091 = vmul.f32 %v3081, %v1382
    %v3092 = vmul.f32 %v3084, %v1382
    %v3093 = vadd.f32 %v3085, 1e-05
    %v3094 = vadd.f32 %v3086, 1e-05
    %v3095 = vadd.f32 %v3087, 1e-05
    %v3096 = vadd.f32 %v3088, 1e-05
    %v3097 = vadd.f32 %v3089, 1e-05
    %v3098 = vadd.f32 %v3090, 1e-05
    %v3099 = vadd.f32 %v3091, 1e-05
    %v3100 = vadd.f32 %v3092, 1e-05
    %v3101 = vrsqrt.pop %v3093
    %v3102 = vmul.f32 %v3101, %v3093
    %v3103 = vmul.f32 %v3102, %v3101
    %v3104 = vmul.f32 0.5, %v3103
    %v3105 = vsub.f32 1.5, %v3104
    %v3106 = vmul.f32 %v3101, %v3105
    %vm3107 = vweird.f32 %v3093
    %vm3108 = vweird.f32 %v3101
    %vm3109 = vmor %vm3107, %vm3108
    %v3110 = vsel %vm3109, %v3101, %v3106
    %v3111 = vrsqrt.pop %v3094
    %v3112 = vmul.f32 %v3111, %v3094
    %v3113 = vmul.f32 %v3112, %v3111
    %v3114 = vmul.f32 0.5, %v3113
    %v3115 = vsub.f32 1.5, %v3114
    %v3116 = vmul.f32 %v3111, %v3115
    %vm3117 = vweird.f32 %v3094
    %vm3118 = vweird.f32 %v3111
    %vm3119 = vmor %vm3117, %vm3118
    %v3120 = vsel %vm3119, %v3111, %v3116
    %v3121 = vrsqrt.pop %v3095
    %v3122 = vmul.f32 %v3121, %v3095
    %v3123 = vmul.f32 %v3122, %v3121
    %v3124 = vmul.f32 0.5, %v3123
    %v3125 = vsub.f32 1.5, %v3124
    %v3126 = vmul.f32 %v3121, %v3125
    %vm3127 = vweird.f32 %v3095
    %vm3128 = vweird.f32 %v3121
    %vm3129 = vmor %vm3127, %vm3128
    %v3130 = vsel %vm3129, %v3121, %v3126
    %v3131 = vrsqrt.pop %v3096
    %v3132 = vmul.f32 %v3131, %v3096
    %v3133 = vmul.f32 %v3132, %v3131
    %v3134 = vmul.f32 0.5, %v3133
    %v3135 = vsub.f32 1.5, %v3134
    %v3136 = vmul.f32 %v3131, %v3135
    %vm3137 = vweird.f32 %v3096
    %vm3138 = vweird.f32 %v3131
    %vm3139 = vmor %vm3137, %vm3138
    %v3140 = vsel %vm3139, %v3131, %v3136
    %v3141 = vrsqrt.pop %v3097
    %v3142 = vmul.f32 %v3141, %v3097
    %v3143 = vmul.f32 %v3142, %v3141
    %v3144 = vmul.f32 0.5, %v3143
    %v3145 = vsub.f32 1.5, %v3144
    %v3146 = vmul.f32 %v3141, %v3145
    %vm3147 = vweird.f32 %v3097
    %vm3148 = vweird.f32 %v3141
    %vm3149 = vmor %vm3147, %vm3148
    %v3150 = vsel %vm3149, %v3141, %v3146
    %v3151 = vrsqrt.pop %v3098
    %v3152 = vmul.f32 %v3151, %v3098
    %v3153 = vmul.f32 %v3152, %v3151
    %v3154 = vmul.f32 0.5, %v3153
    %v3155 = vsub.f32 1.5, %v3154
    %v3156 = vmul.f32 %v3151, %v3155
    %vm3157 = vweird.f32 %v3098
    %vm3158 = vweird.f32 %v3151
    %vm3159 = vmor %vm3157, %vm3158
    %v3160 = vsel %vm3159, %v3151, %v3156
    %v3161 = vrsqrt.pop %v3099
    %v3162 = vmul.f32 %v3161, %v3099
    %v3163 = vmul.f32 %v3162, %v3161
    %v3164 = vmul.f32 0.5, %v3163
    %v3165 = vsub.f32 1.5, %v3164
    %v3166 = vmul.f32 %v3161, %v3165
    %vm3167 = vweird.f32 %v3099
    %vm3168 = vweird.f32 %v3161
    %vm3169 = vmor %vm3167, %vm3168
    %v3170 = vsel %vm3169, %v3161, %v3166
    %v3171 = vrsqrt.pop %v3100
    %v3172 = vmul.f32 %v3171, %v3100
    %v3173 = vmul.f32 %v3172, %v3171
    %v3174 = vmul.f32 0.5, %v3173
    %v3175 = vsub.f32 1.5, %v3174
    %v3176 = vmul.f32 %v3171, %v3175
    %vm3177 = vweird.f32 %v3100
    %vm3178 = vweird.f32 %v3171
    %vm3179 = vmor %vm3177, %vm3178
    %v3180 = vsel %vm3179, %v3171, %v3176
    %v3181 = vmul.f32 %v3045, %v3110
    %v3182 = vmul.f32 %v3046, %v3120
    %v3183 = vmul.f32 %v3047, %v3130
    %v3184 = vmul.f32 %v3048, %v3140
    %v3185 = vmul.f32 %v3049, %v3150
    %v3186 = vmul.f32 %v3050, %v3160
    %v3187 = vmul.f32 %v3051, %v3170
    %v3188 = vmul.f32 %v3052, %v3180
    %v3189 = vperm.slane %v1951, 4
    %v3190 = vmul.f32 %v3181, %v3189
    %v3191 = vmul.f32 %v3182, %v3189
    %v3192 = vmul.f32 %v3183, %v3189
    %v3193 = vmul.f32 %v3184, %v3189
    %v3194 = vmul.f32 %v3185, %v3189
    %v3195 = vmul.f32 %v3186, %v3189
    %v3196 = vmul.f32 %v3187, %v3189
    %v3197 = vmul.f32 %v3188, %v3189
    %v3198 = vperm.slane %v1951, 5
    %v3199 = vadd.f32 %v3190, %v3198
    %v3200 = vadd.f32 %v3191, %v3198
    %v3201 = vadd.f32 %v3192, %v3198
    %v3202 = vadd.f32 %v3193, %v3198
    %v3203 = vadd.f32 %v3194, %v3198
    %v3204 = vadd.f32 %v3195, %v3198
    %v3205 = vadd.f32 %v3196, %v3198
    %v3206 = vadd.f32 %v3197, %v3198
    %v3207 = vpack.c.bf16 %v3200, %v3199
    %v3208 = vpack.c.bf16 %v3202, %v3201
    %v3209 = vpack.c.bf16 %v3204, %v3203
    %v3210 = vpack.c.bf16 %v3206, %v3205
    %v3211 = vpack.c.bf16 %v1938, %v1937
    %v3212 = vpack.c.bf16 %v1940, %v1939
    %v3213 = vperm.slane %v1951, 1
    %v3215 = vsel %vm294, %v3207, 0
    %v3218 = vsel %vm294, %v3208, 0
    %v3221 = vsel %vm294, %v3209, 0
    %v3224 = vsel %vm294, %v3210, 0
    %3226 = vmatpush.bf16.msra.mxu0 0
    %3227 = vmatpush.bf16.msra.mxu0 0
    %3228 = vmatpush.bf16.msra.mxu0 0
    %3229 = vmatpush.bf16.msra.mxu0 0
    %3230 = vmatpush.bf16.msra.mxu0 0
    %3231 = vmatpush.bf16.msra.mxu0 0
    %3232 = vmatpush.bf16.msra.mxu0 %v3212
    %3233 = vmatpush.bf16.msra.mxu0 %v3211
    %3234 = vmatmul.bf16.gmra.mxu0 %v3215
    %v3235 = vpop.f32.mrf.mxu0
    %v3236 = vadd.f32 %v3213, %v3235
    %v3237 = vpop.f32.mrf.mxu0
    %v3238 = vadd.f32 %v3213, %v3237
    %3239 = vmatmul.bf16.gmra.mxu0 %v3218
    %v3240 = vpop.f32.mrf.mxu0
    %v3241 = vadd.f32 %v3213, %v3240
    %v3242 = vpop.f32.mrf.mxu0
    %v3243 = vadd.f32 %v3213, %v3242
    %3244 = vmatmul.bf16.gmra.mxu0 %v3221
    %v3245 = vpop.f32.mrf.mxu0
    %v3246 = vadd.f32 %v3213, %v3245
    %v3247 = vpop.f32.mrf.mxu0
    %v3248 = vadd.f32 %v3213, %v3247
    %3249 = vmatmul.bf16.gmra.mxu0 %v3224
    %v3250 = vpop.f32.mrf.mxu0
    %v3251 = vadd.f32 %v3213, %v3250
    %v3252 = vpop.f32.mrf.mxu0
    %v3253 = vadd.f32 %v3213, %v3252
    %3254 = vdwg.mxu0
    %v3255 = vmul.f32 %v3236, 0.5
    %v3256 = vmul.f32 %v3238, 0.5
    %v3257 = vmul.f32 %v3241, 0.5
    %v3258 = vmul.f32 %v3243, 0.5
    %v3259 = vmul.f32 %v3246, 0.5
    %v3260 = vmul.f32 %v3248, 0.5
    %v3261 = vmul.f32 %v3251, 0.5
    %v3262 = vmul.f32 %v3253, 0.5
    %v3263 = vmul.f32 %v3236, 0.044715
    %v3264 = vmul.f32 %v3238, 0.044715
    %v3265 = vmul.f32 %v3241, 0.044715
    %v3266 = vmul.f32 %v3243, 0.044715
    %v3267 = vmul.f32 %v3246, 0.044715
    %v3268 = vmul.f32 %v3248, 0.044715
    %v3269 = vmul.f32 %v3251, 0.044715
    %v3270 = vmul.f32 %v3253, 0.044715
    %v3271 = vmul.f32 %v3263, %v3236
    %v3272 = vmul.f32 %v3264, %v3238
    %v3273 = vmul.f32 %v3265, %v3241
    %v3274 = vmul.f32 %v3266, %v3243
    %v3275 = vmul.f32 %v3267, %v3246
    %v3276 = vmul.f32 %v3268, %v3248
    %v3277 = vmul.f32 %v3269, %v3251
    %v3278 = vmul.f32 %v3270, %v3253
    %v3279 = vmul.f32 %v3271, %v3236
    %v3280 = vmul.f32 %v3272, %v3238
    %v3281 = vmul.f32 %v3273, %v3241
    %v3282 = vmul.f32 %v3274, %v3243
    %v3283 = vmul.f32 %v3275, %v3246
    %v3284 = vmul.f32 %v3276, %v3248
    %v3285 = vmul.f32 %v3277, %v3251
    %v3286 = vmul.f32 %v3278, %v3253
    %v3287 = vadd.f32 %v3236, %v3279
    %v3288 = vadd.f32 %v3238, %v3280
    %v3289 = vadd.f32 %v3241, %v3281
    %v3290 = vadd.f32 %v3243, %v3282
    %v3291 = vadd.f32 %v3246, %v3283
    %v3292 = vadd.f32 %v3248, %v3284
    %v3293 = vadd.f32 %v3251, %v3285
    %v3294 = vadd.f32 %v3253, %v3286
    %v3295 = vmul.f32 %v3287, 0.7978846
    %v3296 = vmul.f32 %v3288, 0.7978846
    %v3297 = vmul.f32 %v3289, 0.7978846
    %v3298 = vmul.f32 %v3290, 0.7978846
    %v3299 = vmul.f32 %v3291, 0.7978846
    %v3300 = vmul.f32 %v3292, 0.7978846
    %v3301 = vmul.f32 %v3293, 0.7978846
    %v3302 = vmul.f32 %v3294, 0.7978846
    %v3303 = vtanh.pop %v3295
    %v3304 = vtanh.pop %v3296
    %v3305 = vtanh.pop %v3297
    %v3306 = vtanh.pop %v3298
    %v3307 = vtanh.pop %v3299
    %v3308 = vtanh.pop %v3300
    %v3309 = vtanh.pop %v3301
    %v3310 = vtanh.pop %v3302
    %v3311 = vadd.f32 %v3303, 1.0
    %v3312 = vadd.f32 %v3304, 1.0
    %v3313 = vadd.f32 %v3305, 1.0
    %v3314 = vadd.f32 %v3306, 1.0
    %v3315 = vadd.f32 %v3307, 1.0
    %v3316 = vadd.f32 %v3308, 1.0
    %v3317 = vadd.f32 %v3309, 1.0
    %v3318 = vadd.f32 %v3310, 1.0
    %v3319 = vmul.f32 %v3255, %v3311
    %v3320 = vmul.f32 %v3256, %v3312
    %v3321 = vmul.f32 %v3257, %v3313
    %v3322 = vmul.f32 %v3258, %v3314
    %v3323 = vmul.f32 %v3259, %v3315
    %v3324 = vmul.f32 %v3260, %v3316
    %v3325 = vmul.f32 %v3261, %v3317
    %v3326 = vmul.f32 %v3262, %v3318
    %v3327 = vpack.c.bf16 %v3320, %v3319
    %v3328 = vpack.c.bf16 %v3322, %v3321
    %v3329 = vpack.c.bf16 %v3324, %v3323
    %v3330 = vpack.c.bf16 %v3326, %v3325
    %v3331 = vpack.c.bf16 %v1943, %v1942
    %v3332 = vpack.c.bf16 %v1945, %v1944
    %v3333 = vpack.c.bf16 %v1947, %v1946
    %v3334 = vpack.c.bf16 %v1949, %v1948
    %v3335 = vperm.slane %v1951, 3
    %v3337 = vsel %vm1682, %v3327, 0
    %v3340 = vsel %vm1682, %v3328, 0
    %v3343 = vsel %vm1682, %v3329, 0
    %v3346 = vsel %vm1682, %v3330, 0
    %3348 = vmatpush.bf16.msra.mxu0 0
    %3349 = vmatpush.bf16.msra.mxu0 0
    %3350 = vmatpush.bf16.msra.mxu0 0
    %3351 = vmatpush.bf16.msra.mxu0 0
    %3352 = vmatpush.bf16.msra.mxu0 %v3334
    %3353 = vmatpush.bf16.msra.mxu0 %v3333
    %3354 = vmatpush.bf16.msra.mxu0 %v3332
    %3355 = vmatpush.bf16.msra.mxu0 %v3331
    %3356 = vmatmul.bf16.gmra.mxu0 %v3337
    %v3357 = vpop.f32.mrf.mxu0
    %v3358 = vadd.f32 %v3335, %v3357
    %v3359 = vpop.f32.mrf.mxu0
    %v3360 = vadd.f32 %v3335, %v3359
    %3361 = vmatmul.bf16.gmra.mxu0 %v3340
    %v3362 = vpop.f32.mrf.mxu0
    %v3363 = vadd.f32 %v3335, %v3362
    %v3364 = vpop.f32.mrf.mxu0
    %v3365 = vadd.f32 %v3335, %v3364
    %3366 = vmatmul.bf16.gmra.mxu0 %v3343
    %v3367 = vpop.f32.mrf.mxu0
    %v3368 = vadd.f32 %v3335, %v3367
    %v3369 = vpop.f32.mrf.mxu0
    %v3370 = vadd.f32 %v3335, %v3369
    %3371 = vmatmul.bf16.gmra.mxu0 %v3346
    %v3372 = vpop.f32.mrf.mxu0
    %v3373 = vadd.f32 %v3335, %v3372
    %v3374 = vpop.f32.mrf.mxu0
    %v3375 = vadd.f32 %v3335, %v3374
    %3376 = vdwg.mxu0
    %v3377 = vadd.f32 %v3199, %v3358
    %v3378 = vadd.f32 %v3200, %v3360
    %v3379 = vadd.f32 %v3201, %v3363
    %v3380 = vadd.f32 %v3202, %v3365
    %v3381 = vadd.f32 %v3203, %v3368
    %v3382 = vadd.f32 %v3204, %v3370
    %v3383 = vadd.f32 %v3205, %v3373
    %v3384 = vadd.f32 %v3206, %v3375
    %v3385 = vsel %vm294, %v3377, 0.0
    %3386 = vadd.xlane.f32.xlu0 %v3385
    %v3387 = vpop.xlane.xlu0 %3386
    %v3388 = vsel %vm294, %v3378, 0.0
    %3389 = vadd.xlane.f32.xlu0 %v3388
    %v3390 = vpop.xlane.xlu0 %3389
    %v3391 = vsel %vm294, %v3379, 0.0
    %3392 = vadd.xlane.f32.xlu0 %v3391
    %v3393 = vpop.xlane.xlu0 %3392
    %v3394 = vsel %vm294, %v3380, 0.0
    %3395 = vadd.xlane.f32.xlu0 %v3394
    %v3396 = vpop.xlane.xlu0 %3395
    %v3397 = vsel %vm294, %v3381, 0.0
    %3398 = vadd.xlane.f32.xlu0 %v3397
    %v3399 = vpop.xlane.xlu0 %3398
    %v3400 = vsel %vm294, %v3382, 0.0
    %3401 = vadd.xlane.f32.xlu0 %v3400
    %v3402 = vpop.xlane.xlu0 %3401
    %v3403 = vsel %vm294, %v3383, 0.0
    %3404 = vadd.xlane.f32.xlu0 %v3403
    %v3405 = vpop.xlane.xlu0 %3404
    %v3406 = vsel %vm294, %v3384, 0.0
    %3407 = vadd.xlane.f32.xlu0 %v3406
    %v3408 = vpop.xlane.xlu0 %3407
    %v3409 = vmul.f32 %v3387, %v1382
    %v3410 = vmul.f32 %v3390, %v1382
    %v3411 = vmul.f32 %v3393, %v1382
    %v3412 = vmul.f32 %v3396, %v1382
    %v3413 = vmul.f32 %v3399, %v1382
    %v3414 = vmul.f32 %v3402, %v1382
    %v3415 = vmul.f32 %v3405, %v1382
    %v3416 = vmul.f32 %v3408, %v1382
    %v3417 = vsub.f32 %v3377, %v3409
    %v3418 = vsub.f32 %v3378, %v3410
    %v3419 = vsub.f32 %v3379, %v3411
    %v3420 = vsub.f32 %v3380, %v3412
    %v3421 = vsub.f32 %v3381, %v3413
    %v3422 = vsub.f32 %v3382, %v3414
    %v3423 = vsub.f32 %v3383, %v3415
    %v3424 = vsub.f32 %v3384, %v3416
    %v3425 = vmul.f32 %v3417, %v3417
    %v3426 = vmul.f32 %v3418, %v3418
    %v3427 = vmul.f32 %v3419, %v3419
    %v3428 = vmul.f32 %v3420, %v3420
    %v3429 = vmul.f32 %v3421, %v3421
    %v3430 = vmul.f32 %v3422, %v3422
    %v3431 = vmul.f32 %v3423, %v3423
    %v3432 = vmul.f32 %v3424, %v3424
    %v3433 = vsel %vm294, %v3425, 0.0
    %3434 = vadd.xlane.f32.xlu0 %v3433
    %v3435 = vpop.xlane.xlu0 %3434
    %v3436 = vsel %vm294, %v3426, 0.0
    %3437 = vadd.xlane.f32.xlu0 %v3436
    %v3438 = vpop.xlane.xlu0 %3437
    %v3439 = vsel %vm294, %v3427, 0.0
    %3440 = vadd.xlane.f32.xlu0 %v3439
    %v3441 = vpop.xlane.xlu0 %3440
    %v3442 = vsel %vm294, %v3428, 0.0
    %3443 = vadd.xlane.f32.xlu0 %v3442
    %v3444 = vpop.xlane.xlu0 %3443
    %v3445 = vsel %vm294, %v3429, 0.0
    %3446 = vadd.xlane.f32.xlu0 %v3445
    %v3447 = vpop.xlane.xlu0 %3446
    %v3448 = vsel %vm294, %v3430, 0.0
    %3449 = vadd.xlane.f32.xlu0 %v3448
    %v3450 = vpop.xlane.xlu0 %3449
    %v3451 = vsel %vm294, %v3431, 0.0
    %3452 = vadd.xlane.f32.xlu0 %v3451
    %v3453 = vpop.xlane.xlu0 %3452
    %v3454 = vsel %vm294, %v3432, 0.0
    %3455 = vadd.xlane.f32.xlu0 %v3454
    %v3456 = vpop.xlane.xlu0 %3455
    %v3457 = vmul.f32 %v3435, %v1382
    %v3458 = vmul.f32 %v3438, %v1382
    %v3459 = vmul.f32 %v3441, %v1382
    %v3460 = vmul.f32 %v3444, %v1382
    %v3461 = vmul.f32 %v3447, %v1382
    %v3462 = vmul.f32 %v3450, %v1382
    %v3463 = vmul.f32 %v3453, %v1382
    %v3464 = vmul.f32 %v3456, %v1382
    %v3465 = vadd.f32 %v3457, 1e-05
    %v3466 = vadd.f32 %v3458, 1e-05
    %v3467 = vadd.f32 %v3459, 1e-05
    %v3468 = vadd.f32 %v3460, 1e-05
    %v3469 = vadd.f32 %v3461, 1e-05
    %v3470 = vadd.f32 %v3462, 1e-05
    %v3471 = vadd.f32 %v3463, 1e-05
    %v3472 = vadd.f32 %v3464, 1e-05
    %v3473 = vrsqrt.pop %v3465
    %v3474 = vmul.f32 %v3473, %v3465
    %v3475 = vmul.f32 %v3474, %v3473
    %v3476 = vmul.f32 0.5, %v3475
    %v3477 = vsub.f32 1.5, %v3476
    %v3478 = vmul.f32 %v3473, %v3477
    %vm3479 = vweird.f32 %v3465
    %vm3480 = vweird.f32 %v3473
    %vm3481 = vmor %vm3479, %vm3480
    %v3482 = vsel %vm3481, %v3473, %v3478
    %v3483 = vrsqrt.pop %v3466
    %v3484 = vmul.f32 %v3483, %v3466
    %v3485 = vmul.f32 %v3484, %v3483
    %v3486 = vmul.f32 0.5, %v3485
    %v3487 = vsub.f32 1.5, %v3486
    %v3488 = vmul.f32 %v3483, %v3487
    %vm3489 = vweird.f32 %v3466
    %vm3490 = vweird.f32 %v3483
    %vm3491 = vmor %vm3489, %vm3490
    %v3492 = vsel %vm3491, %v3483, %v3488
    %v3493 = vrsqrt.pop %v3467
    %v3494 = vmul.f32 %v3493, %v3467
    %v3495 = vmul.f32 %v3494, %v3493
    %v3496 = vmul.f32 0.5, %v3495
    %v3497 = vsub.f32 1.5, %v3496
    %v3498 = vmul.f32 %v3493, %v3497
    %vm3499 = vweird.f32 %v3467
    %vm3500 = vweird.f32 %v3493
    %vm3501 = vmor %vm3499, %vm3500
    %v3502 = vsel %vm3501, %v3493, %v3498
    %v3503 = vrsqrt.pop %v3468
    %v3504 = vmul.f32 %v3503, %v3468
    %v3505 = vmul.f32 %v3504, %v3503
    %v3506 = vmul.f32 0.5, %v3505
    %v3507 = vsub.f32 1.5, %v3506
    %v3508 = vmul.f32 %v3503, %v3507
    %vm3509 = vweird.f32 %v3468
    %vm3510 = vweird.f32 %v3503
    %vm3511 = vmor %vm3509, %vm3510
    %v3512 = vsel %vm3511, %v3503, %v3508
    %v3513 = vrsqrt.pop %v3469
    %v3514 = vmul.f32 %v3513, %v3469
    %v3515 = vmul.f32 %v3514, %v3513
    %v3516 = vmul.f32 0.5, %v3515
    %v3517 = vsub.f32 1.5, %v3516
    %v3518 = vmul.f32 %v3513, %v3517
    %vm3519 = vweird.f32 %v3469
    %vm3520 = vweird.f32 %v3513
    %vm3521 = vmor %vm3519, %vm3520
    %v3522 = vsel %vm3521, %v3513, %v3518
    %v3523 = vrsqrt.pop %v3470
    %v3524 = vmul.f32 %v3523, %v3470
    %v3525 = vmul.f32 %v3524, %v3523
    %v3526 = vmul.f32 0.5, %v3525
    %v3527 = vsub.f32 1.5, %v3526
    %v3528 = vmul.f32 %v3523, %v3527
    %vm3529 = vweird.f32 %v3470
    %vm3530 = vweird.f32 %v3523
    %vm3531 = vmor %vm3529, %vm3530
    %v3532 = vsel %vm3531, %v3523, %v3528
    %v3533 = vrsqrt.pop %v3471
    %v3534 = vmul.f32 %v3533, %v3471
    %v3535 = vmul.f32 %v3534, %v3533
    %v3536 = vmul.f32 0.5, %v3535
    %v3537 = vsub.f32 1.5, %v3536
    %v3538 = vmul.f32 %v3533, %v3537
    %vm3539 = vweird.f32 %v3471
    %vm3540 = vweird.f32 %v3533
    %vm3541 = vmor %vm3539, %vm3540
    %v3542 = vsel %vm3541, %v3533, %v3538
    %v3543 = vrsqrt.pop %v3472
    %v3544 = vmul.f32 %v3543, %v3472
    %v3545 = vmul.f32 %v3544, %v3543
    %v3546 = vmul.f32 0.5, %v3545
    %v3547 = vsub.f32 1.5, %v3546
    %v3548 = vmul.f32 %v3543, %v3547
    %vm3549 = vweird.f32 %v3472
    %vm3550 = vweird.f32 %v3543
    %vm3551 = vmor %vm3549, %vm3550
    %v3552 = vsel %vm3551, %v3543, %v3548
    %v3553 = vmul.f32 %v3417, %v3482
    %v3554 = vmul.f32 %v3418, %v3492
    %v3555 = vmul.f32 %v3419, %v3502
    %v3556 = vmul.f32 %v3420, %v3512
    %v3557 = vmul.f32 %v3421, %v3522
    %v3558 = vmul.f32 %v3422, %v3532
    %v3559 = vmul.f32 %v3423, %v3542
    %v3560 = vmul.f32 %v3424, %v3552
    %v3561 = vperm.slane %v1951, 6
    %v3562 = vmul.f32 %v3553, %v3561
    %v3563 = vmul.f32 %v3554, %v3561
    %v3564 = vmul.f32 %v3555, %v3561
    %v3565 = vmul.f32 %v3556, %v3561
    %v3566 = vmul.f32 %v3557, %v3561
    %v3567 = vmul.f32 %v3558, %v3561
    %v3568 = vmul.f32 %v3559, %v3561
    %v3569 = vmul.f32 %v3560, %v3561
    %v3570 = vperm.slane %v1951, 7
    %v3571 = vadd.f32 %v3562, %v3570
    %v3572 = vadd.f32 %v3563, %v3570
    %v3573 = vadd.f32 %v3564, %v3570
    %v3574 = vadd.f32 %v3565, %v3570
    %v3575 = vadd.f32 %v3566, %v3570
    %v3576 = vadd.f32 %v3567, %v3570
    %v3577 = vadd.f32 %v3568, %v3570
    %v3578 = vadd.f32 %v3569, %v3570
    %v3579 = vpack.c.bf16 %v3572, %v3571
    %v3580 = vpack.c.bf16 %v3574, %v3573
    %v3581 = vpack.c.bf16 %v3576, %v3575
    %v3582 = vpack.c.bf16 %v3578, %v3577
    %v3583 = vpack.c.bf16 %v262, %v261
    %v3584 = vpack.c.bf16 %v264, %v263
    %v3586 = vperm.slane %v265, 0
    %v3589 = vsel %vm294, %v3579, 0
    %v3592 = vsel %vm294, %v3580, 0
    %v3595 = vsel %vm294, %v3581, 0
    %v3598 = vsel %vm294, %v3582, 0
    %3600 = vmatpush.bf16.msra.mxu0 0
    %3601 = vmatpush.bf16.msra.mxu0 0
    %3602 = vmatpush.bf16.msra.mxu0 0
    %3603 = vmatpush.bf16.msra.mxu0 0
    %3604 = vmatpush.bf16.msra.mxu0 0
    %3605 = vmatpush.bf16.msra.mxu0 0
    %3606 = vmatpush.bf16.msra.mxu0 %v3584
    %3607 = vmatpush.bf16.msra.mxu0 %v3583
    %3608 = vmatmul.bf16.gmra.mxu0 %v3589
    %v3609 = vpop.f32.mrf.mxu0
    %v3610 = vadd.f32 %v3586, %v3609
    %v3611 = vpop.f32.mrf.mxu0
    %v3612 = vadd.f32 %v3586, %v3611
    %3613 = vmatmul.bf16.gmra.mxu0 %v3592
    %v3614 = vpop.f32.mrf.mxu0
    %v3615 = vadd.f32 %v3586, %v3614
    %v3616 = vpop.f32.mrf.mxu0
    %v3617 = vadd.f32 %v3586, %v3616
    %3618 = vmatmul.bf16.gmra.mxu0 %v3595
    %v3619 = vpop.f32.mrf.mxu0
    %v3620 = vadd.f32 %v3586, %v3619
    %v3621 = vpop.f32.mrf.mxu0
    %v3622 = vadd.f32 %v3586, %v3621
    %3623 = vmatmul.bf16.gmra.mxu0 %v3598
    %v3624 = vpop.f32.mrf.mxu0
    %v3625 = vadd.f32 %v3586, %v3624
    %v3626 = vpop.f32.mrf.mxu0
    %v3627 = vadd.f32 %v3586, %v3626
    %3628 = vdwg.mxu0
    %3629 = vst [vmem:[#allocation8] sm:$0xff] %v3610
    %3630 = vst [vmem:[#allocation8 + $0x8] sm:$0xff] %v3612
    %3631 = vst [vmem:[#allocation8 + $0x10] sm:$0xff] %v3615
    %3632 = vst [vmem:[#allocation8 + $0x18] sm:$0xff] %v3617
    %3633 = vst [vmem:[#allocation8 + $0x20] sm:$0xff] %v3620
    %3634 = vst [vmem:[#allocation8 + $0x28] sm:$0xff] %v3622
    %3635 = vst [vmem:[#allocation8 + $0x30] sm:$0xff] %v3625
    %3636 = vst [vmem:[#allocation8 + $0x38] sm:$0xff] %v3627
    // Predicated region
    $region58: #{_lambda_.1} parent=1 // pred_check
      _
    $region59: #{_lambda_.1} parent=1 // pred_check_branch
      %3638 = sbr.rel (0) target = $region61
    $region60: #{_lambda_.1} parent=1 // pred_region
      %3640 = vsyncadd [#allocation4], 0
      %s3641 = sshll.u32 [#allocation8], 4
      %s3642 = int_to_ptr.vmem [resolvable:$true] %s3641
      %s3643 = sshll.u32 %s11, 4
      %s3644 = int_to_ptr.hbm [resolvable:$true] %s3643
      %3649 = dma.vmem_to_hbm [thread:$0]  %s3642, 1024, %s3644, [#allocation4], 128, 128, 8
    $region61: #{_lambda_.1} parent=1 // pred_fallthru
      _
    // Predicated region
    $region62: #{_lambda_.1} parent=1 // pred_check
      _
    $region63: #{_lambda_.1} parent=1 // pred_check_branch
      %3651 = sbr.rel (0) target = $region65
    $region64: #{_lambda_.1} parent=1 // pred_region
      %3653 = dma.done [#allocation4], 1024
    $region65: #{_lambda_.1} parent=1 // pred_fallthru
      _
    %3654 = vsyncpa [#allocation3], 1
    %3655 = vsyncpa [#allocation6], 1
    %3656 = vsyncpa [#allocation4], 1

</llo_original>
